<compile_context>
chip_gen: v5e
topology: v5e:2x2
jax: 0.10.0
libtpu: 0.0.40
codegen_flags: <defaults>
</compile_context>

<pallas_src>
import jax
import jax.numpy as jnp
from jax.experimental import pallas as pl
from jax.experimental.pallas import tpu as pltpu

# ---- sizes (small, consistent with the module's forward) ----
B = 2            # batch
C_IN = 1         # image channels into the encoder
IMG = 16         # image H = W
K, STRIDE, PAD = 3, 2, 1
EMBED = 16       # embed_size
HIDDEN = 32      # hidden_size (decoder_dim)
ENC = 8          # encoder_size (encoder_dim)
ATTN = 16        # attention_dim
VOCAB = 32       # len(vocab)
SEQ = 8          # seq_length == vocab.max_len
HO = (IMG + 2 * PAD - K) // STRIDE + 1   # 8
N_FEAT = HO * HO                         # 64 attention locations
OUT_W = 128                              # lane-dense packed output width


# ------------------------------------------------------------------
# One fused Pallas kernel: encoder conv + SEQ-step attention/LSTM decode
# ------------------------------------------------------------------
def fused_decoder_kernel(patches_ref, conv_w_ref, embeds_ref,
                         w_enc_ref, b_enc_ref, a_w_ref,
                         w_xe_ref, w_ch_ref, w_hout_ref, b_fcn_ref,
                         out_ref):
    f32 = jnp.float32

    # ---- encoder: conv as im2col matmul (+bias via ones-column) + ReLU ----
    feats2d = jnp.maximum(
        jnp.dot(patches_ref[...], conv_w_ref[...],
                preferred_element_type=f32), 0.0)                # (B*N, ENC)
    feats3 = feats2d.reshape(B, N_FEAT, ENC)                     # (B, N, ENC)

    # ---- step-invariant projections (hoisted out of the recurrence) ----
    # w_enc packs [U.T | init_h.T | init_c.T]; b_enc packs the matching biases
    # (with W.bias folded into the U part: tanh argument bias).
    proj = (jnp.dot(feats2d, w_enc_ref[...], preferred_element_type=f32)
            + b_enc_ref[...])                                    # (B*N, ATTN+2H)
    u_hs = proj[:, :ATTN].reshape(B, N_FEAT, ATTN)               # attention keys
    # init_hidden_state: mean over locations (bias is mean-invariant)
    init_hc = jnp.mean(proj[:, ATTN:].reshape(B, N_FEAT, 2 * HIDDEN), axis=1)
    h = init_hc[:, :HIDDEN]                                      # (B, H)
    c = init_hc[:, HIDDEN:]                                      # (B, H)

    # embedding (+ LSTM bias) contribution to the gates for ALL steps at once
    embed_gates = jnp.dot(embeds_ref[...], w_xe_ref[...],
                          preferred_element_type=f32
                          ).reshape(SEQ, B, 4 * HIDDEN)          # (S, B, 4H)

    a_w = a_w_ref[...]                                           # (1, ATTN)
    w_ch = w_ch_ref[...]                                         # (ENC+H, 4H)
    w_hout = w_hout_ref[...]                                     # (H, VOCAB+ATTN)
    b_fcn = b_fcn_ref[...]                                       # (1, VOCAB)
    zeros_pad = jnp.zeros((B, OUT_W - VOCAB - N_FEAT), dtype=f32)

    # attention query for step 0 (only the ATTN columns of the fused proj used)
    w_ah = jnp.dot(h, w_hout, preferred_element_type=f32)[:, VOCAB:]

    for s in range(SEQ):                 # fully unrolled; tensors are tiny
        # ---- Attention ----
        # A.bias is a per-row constant -> softmax-invariant -> dropped exactly.
        comb = jnp.tanh(u_hs + w_ah[:, None, :])                 # (B, N, ATTN)
        scores = jnp.sum(comb * a_w, axis=-1)                    # (B, N)
        scores = scores - jnp.max(scores, axis=1, keepdims=True)
        e = jnp.exp(scores)
        alpha = e * pl.reciprocal(jnp.sum(e, axis=1, keepdims=True),
                                  approx=True)                   # (B, N)
        context = jnp.sum(feats3 * alpha[:, :, None], axis=1)    # (B, ENC)

        # ---- LSTMCell: fused [context, h] matmul + precomputed embed gates ----
        xh = jnp.concatenate([context, h], axis=1)               # (B, ENC+H)
        gates = embed_gates[s] + jnp.dot(xh, w_ch,
                                         preferred_element_type=f32)  # (B, 4H)
        i_g = jax.nn.sigmoid(gates[:, 0 * HIDDEN:1 * HIDDEN])
        f_g = jax.nn.sigmoid(gates[:, 1 * HIDDEN:2 * HIDDEN])
        g_g = jnp.tanh(gates[:, 2 * HIDDEN:3 * HIDDEN])
        o_g = jax.nn.sigmoid(gates[:, 3 * HIDDEN:4 * HIDDEN])
        c = f_g * c + i_g * g_g
        h = o_g * jnp.tanh(c)

        # ---- fused: output logits (dropout == identity in eval mode) and
        #             next step's attention query, one MXU op ----
        proj_h = jnp.dot(h, w_hout, preferred_element_type=f32)  # (B, VOCAB+ATTN)
        logits = proj_h[:, :VOCAB] + b_fcn
        w_ah = proj_h[:, VOCAB:]

        # lane-dense (B, 128) store: [logits | alpha | zero pad]
        out_ref[s] = jnp.concatenate([logits, alpha, zeros_pad], axis=1)


# ------------------------------------------------------------------
# wrapper: layout plumbing (im2col, embedding gathers, weight packing)
# ------------------------------------------------------------------
def im2col_nhwc(x_nhwc):
    """(B,H,W,C) -> (B*Ho*Wo, K*K*C) patch matrix (stride 2, pad 1)."""
    xp = jnp.pad(x_nhwc, ((0, 0), (PAD, PAD), (PAD, PAD), (0, 0)))
    patches = []
    for di in range(K):
        for dj in range(K):
            patches.append(xp[:, di:di + STRIDE * HO:STRIDE,
                               dj:dj + STRIDE * HO:STRIDE, :])
    p = jnp.stack(patches, axis=-2)              # (B, Ho, Wo, K*K, C)
    return p.reshape(B * HO * HO, K * K * C_IN)


def _full_spec(shape):
    return pl.BlockSpec(shape, lambda i, _s=len(shape): (0,) * _s)


@jax.jit
def attention_decoder_forward(imgs, decoder_input, p):
    f32 = jnp.float32
    # --- encoder-side glue (plain JAX: transpose, pad, gather) ---
    x = jnp.transpose(imgs, (0, 2, 3, 1))                        # NCHW -> NHWC
    patches = im2col_nhwc(x)                                     # (B*N, K*K*Cin)
    patches_aug = jnp.concatenate(
        [patches, jnp.ones((B * N_FEAT, 1), f32)], axis=1)       # bias column
    conv_w_flat = jnp.transpose(p["conv_w"], (2, 3, 1, 0)).reshape(
        K * K * C_IN, ENC)
    conv_w_aug = jnp.concatenate(
        [conv_w_flat, p["conv_b"].reshape(1, ENC)], axis=0)      # (K*K*Cin+1, ENC)

    # token + positional embedding lookups (gather glue in plain JAX)
    tok_emb = p["emb"][decoder_input]                            # (B, S, E)
    pos_emb = p["pos"][jnp.arange(SEQ)]                          # (S, E)
    embeds_flat = (jnp.transpose(tok_emb, (1, 0, 2))
                   + pos_emb[:, None, :]).reshape(SEQ * B, EMBED)  # row = s*B + b
    embeds_aug = jnp.concatenate(
        [embeds_flat, jnp.ones((SEQ * B, 1), f32)], axis=1)      # bias column

    # --- packed weight slabs ---
    w_enc = jnp.concatenate([p["U_w"].T, p["init_h_w"].T, p["init_c_w"].T],
                            axis=1)                              # (ENC, ATTN+2H)
    b_enc = jnp.concatenate([p["U_b"] + p["W_b"], p["init_h_b"], p["init_c_b"]]
                            ).reshape(1, ATTN + 2 * HIDDEN)
    a_w = p["A_w"].reshape(1, ATTN)
    w_xe_aug = jnp.concatenate(
        [p["W_ih"][:, :EMBED].T,
         (p["b_ih"] + p["b_hh"]).reshape(1, 4 * HIDDEN)], axis=0)  # (E+1, 4H)
    w_ch = jnp.concatenate([p["W_ih"][:, EMBED:].T, p["W_hh"].T],
                           axis=0)                               # (ENC+H, 4H)
    w_hout = jnp.concatenate([p["fcn_w"].T, p["W_w"].T], axis=1)  # (H, VOCAB+ATTN)
    b_fcn = p["fcn_b"].reshape(1, VOCAB)

    in_arrays = (patches_aug, conv_w_aug, embeds_aug,
                 w_enc, b_enc, a_w, w_xe_aug, w_ch, w_hout, b_fcn)
    in_specs = [_full_spec(a.shape) for a in in_arrays]

    combined = pl.pallas_call(
        fused_decoder_kernel,
        out_shape=jax.ShapeDtypeStruct((SEQ, B, OUT_W), f32),
        grid_spec=pltpu.PrefetchScalarGridSpec(
            num_scalar_prefetch=0,
            grid=(1,),                  # one grid step: whole recurrence in-kernel
            in_specs=in_specs,
            out_specs=_full_spec((SEQ, B, OUT_W)),
        ),
        compiler_params=pltpu.CompilerParams(
            dimension_semantics=("arbitrary",)),
    )(*in_arrays)

    # back to PyTorch convention: (batch, seq, ...)
    outs = jnp.transpose(combined[:, :, :VOCAB], (1, 0, 2))
    alphas = jnp.transpose(combined[:, :, VOCAB:VOCAB + N_FEAT], (1, 0, 2))
    return outs, alphas


# ------------------------------------------------------------------
# pure-JAX reference (mirrors the PyTorch forward) for verification
# ------------------------------------------------------------------
def reference_forward(imgs, tokens, p):
    enc = jax.lax.conv_general_dilated(
        imgs, p["conv_w"], (STRIDE, STRIDE), ((PAD, PAD), (PAD, PAD)),
        dimension_numbers=("NCHW", "OIHW", "NCHW"))
    enc = jnp.maximum(enc + p["conv_b"][None, :, None, None], 0.0)
    feats = jnp.transpose(enc, (0, 2, 3, 1)).reshape(B, -1, ENC)
    mean = feats.mean(axis=1)
    h = mean @ p["init_h_w"].T + p["init_h_b"]
    c = mean @ p["init_c_w"].T + p["init_c_b"]
    outs, als = [], []
    for s in range(SEQ):
        emb = p["emb"][tokens[:, s]] + p["pos"][s]
        u_hs = feats @ p["U_w"].T + p["U_b"]
        w_ah = h @ p["W_w"].T + p["W_b"]
        comb = jnp.tanh(u_hs + w_ah[:, None, :])
        scr = (comb @ p["A_w"].T)[..., 0] + p["A_b"][0]
        alpha = jax.nn.softmax(scr, axis=1)
        ctx = (feats * alpha[:, :, None]).sum(axis=1)
        x = jnp.concatenate([emb, ctx], axis=1)
        gates = x @ p["W_ih"].T + p["b_ih"] + h @ p["W_hh"].T + p["b_hh"]
        i_g, f_g, g_g, o_g = jnp.split(gates, 4, axis=1)
        i_g, f_g = jax.nn.sigmoid(i_g), jax.nn.sigmoid(f_g)
        g_g, o_g = jnp.tanh(g_g), jax.nn.sigmoid(o_g)
        c = f_g * c + i_g * g_g
        h = o_g * jnp.tanh(c)
        outs.append(h @ p["fcn_w"].T + p["fcn_b"])
        als.append(alpha)
    return jnp.stack(outs, axis=1), jnp.stack(als, axis=1)


def make_params(key):
    ks = jax.random.split(key, 24)
    n = lambda k, shape, s=0.1: (s * jax.random.normal(k, shape)).astype(jnp.float32)
    emb = n(ks[0], (VOCAB, EMBED))
    emb = emb.at[0].set(0.0)  # padding_idx = 0
    return dict(
        conv_w=n(ks[1], (ENC, C_IN, K, K), 0.2), conv_b=n(ks[2], (ENC,), 0.05),
        emb=emb, pos=n(ks[3], (SEQ, EMBED)),
        U_w=n(ks[4], (ATTN, ENC)), U_b=n(ks[5], (ATTN,), 0.05),
        W_w=n(ks[6], (ATTN, HIDDEN)), W_b=n(ks[7], (ATTN,), 0.05),
        A_w=n(ks[8], (1, ATTN)), A_b=n(ks[9], (1,), 0.05),
        init_h_w=n(ks[10], (HIDDEN, ENC)), init_h_b=n(ks[11], (HIDDEN,), 0.05),
        init_c_w=n(ks[12], (HIDDEN, ENC)), init_c_b=n(ks[13], (HIDDEN,), 0.05),
        W_ih=n(ks[14], (4 * HIDDEN, EMBED + ENC)), W_hh=n(ks[15], (4 * HIDDEN, HIDDEN)),
        b_ih=n(ks[16], (4 * HIDDEN,), 0.05), b_hh=n(ks[17], (4 * HIDDEN,), 0.05),
        fcn_w=n(ks[18], (VOCAB, HIDDEN)), fcn_b=n(ks[19], (VOCAB,), 0.05),
    )


if __name__ == "__main__":
    key = jax.random.PRNGKey(0)
    k_img, k_tok, k_par = jax.random.split(key, 3)
    imgs = jax.random.normal(k_img, (B, C_IN, IMG, IMG), dtype=jnp.float32)
    decoder_input = jax.random.randint(k_tok, (B, SEQ), 0, VOCAB, dtype=jnp.int32)
    params = make_params(k_par)

    outputs, alphas = attention_decoder_forward(imgs, decoder_input, params)
    outputs, alphas = jax.block_until_ready((outputs, alphas))

    ref_out, ref_alpha = reference_forward(imgs, decoder_input, params)
    assert outputs.shape == (B, SEQ, VOCAB) and alphas.shape == (B, SEQ, N_FEAT)
    assert jnp.allclose(outputs, ref_out, atol=1e-2, rtol=1e-2)
    assert jnp.allclose(alphas, ref_alpha, atol=1e-2, rtol=1e-2)
    print("KERNEL_OK")
</pallas_src>

<mosaic_0001>
module attributes {stable_mosaic.version = 11 : i64} {
  func.func @fused_decoder_kernel(%arg0: i32, %arg1: memref<128x10xf32, #tpu.memory_space<vmem>>, %arg2: memref<10x8xf32, #tpu.memory_space<vmem>>, %arg3: memref<16x17xf32, #tpu.memory_space<vmem>>, %arg4: memref<8x80xf32, #tpu.memory_space<vmem>>, %arg5: memref<1x80xf32, #tpu.memory_space<vmem>>, %arg6: memref<1x16xf32, #tpu.memory_space<vmem>>, %arg7: memref<17x128xf32, #tpu.memory_space<vmem>>, %arg8: memref<40x128xf32, #tpu.memory_space<vmem>>, %arg9: memref<32x48xf32, #tpu.memory_space<vmem>>, %arg10: memref<1x32xf32, #tpu.memory_space<vmem>>, %arg11: memref<8x2x128xf32, #tpu.memory_space<vmem>>) attributes {dimension_semantics = [#tpu.dimension_semantics<arbitrary>], iteration_bounds = array<i64: 1>, scalar_prefetch = 0 : i64, scratch_operands = 0 : i64, tpu.core_type = #tpu.core_type<tc>, window_params = [{pipeline_mode = #tpu.pipeline_mode<synchronous>, transform_indices = @transform_0, window_bounds = array<i64: 128, 10>}, {pipeline_mode = #tpu.pipeline_mode<synchronous>, transform_indices = @transform_1, window_bounds = array<i64: 10, 8>}, {pipeline_mode = #tpu.pipeline_mode<synchronous>, transform_indices = @transform_2, window_bounds = array<i64: 16, 17>}, {pipeline_mode = #tpu.pipeline_mode<synchronous>, transform_indices = @transform_3, window_bounds = array<i64: 8, 80>}, {pipeline_mode = #tpu.pipeline_mode<synchronous>, transform_indices = @transform_4, window_bounds = array<i64: 1, 80>}, {pipeline_mode = #tpu.pipeline_mode<synchronous>, transform_indices = @transform_5, window_bounds = array<i64: 1, 16>}, {pipeline_mode = #tpu.pipeline_mode<synchronous>, transform_indices = @transform_6, window_bounds = array<i64: 17, 128>}, {pipeline_mode = #tpu.pipeline_mode<synchronous>, transform_indices = @transform_7, window_bounds = array<i64: 40, 128>}, {pipeline_mode = #tpu.pipeline_mode<synchronous>, transform_indices = @transform_8, window_bounds = array<i64: 32, 48>}, {pipeline_mode = #tpu.pipeline_mode<synchronous>, transform_indices = @transform_9, window_bounds = array<i64: 1, 32>}, {pipeline_mode = #tpu.pipeline_mode<synchronous>, transform_indices = @transform_10, window_bounds = array<i64: 8, 2, 128>}]} {
    %c0 = arith.constant 0 : index
    %c0_0 = arith.constant 0 : index
    %0 = vector.load %arg1[%c0, %c0_0] : memref<128x10xf32, #tpu.memory_space<vmem>>, vector<128x10xf32>
    %c0_1 = arith.constant 0 : index
    %c0_2 = arith.constant 0 : index
    %1 = vector.load %arg2[%c0_1, %c0_2] : memref<10x8xf32, #tpu.memory_space<vmem>>, vector<10x8xf32>
    %cst = arith.constant dense<0.000000e+00> : vector<128x8xf32>
    %2 = tpu.matmul %0, %1, %cst {dimension_numbers = #tpu.dot_dimension_numbers<[1], [0], [0], [1], [0, 0, 1, 1], [], []>} : vector<128x10xf32>, vector<10x8xf32>, vector<128x8xf32> -> vector<128x8xf32>
    %cst_3 = arith.constant 0.000000e+00 : f32
    %3 = vector.broadcast %cst_3 : f32 to vector<128x8xf32>
    %4 = arith.maximumf %2, %3 : vector<128x8xf32>
    %5 = vector.shape_cast %4 : vector<128x8xf32> to vector<2x64x8xf32>
    %c0_4 = arith.constant 0 : index
    %c0_5 = arith.constant 0 : index
    %6 = vector.load %arg4[%c0_4, %c0_5] : memref<8x80xf32, #tpu.memory_space<vmem>>, vector<8x80xf32>
    %cst_6 = arith.constant dense<0.000000e+00> : vector<128x80xf32>
    %7 = tpu.matmul %4, %6, %cst_6 {dimension_numbers = #tpu.dot_dimension_numbers<[1], [0], [0], [1], [0, 0, 1, 1], [], []>} : vector<128x8xf32>, vector<8x80xf32>, vector<128x80xf32> -> vector<128x80xf32>
    %c0_7 = arith.constant 0 : index
    %c0_8 = arith.constant 0 : index
    %8 = vector.load %arg5[%c0_7, %c0_8] : memref<1x80xf32, #tpu.memory_space<vmem>>, vector<1x80xf32>
    %9 = vector.broadcast %8 : vector<1x80xf32> to vector<128x80xf32>
    %10 = arith.addf %7, %9 : vector<128x80xf32>
    %11 = vector.extract_strided_slice %10 {offsets = [0, 0], sizes = [128, 16], strides = [1, 1]} : vector<128x80xf32> to vector<128x16xf32>
    %12 = vector.shape_cast %11 : vector<128x16xf32> to vector<2x64x16xf32>
    %13 = vector.extract_strided_slice %10 {offsets = [0, 16], sizes = [128, 64], strides = [1, 1]} : vector<128x80xf32> to vector<128x64xf32>
    %14 = vector.shape_cast %13 : vector<128x64xf32> to vector<2x64x64xf32>
    %cst_9 = arith.constant dense<0.000000e+00> : vector<2x64xf32>
    %15 = vector.multi_reduction <add>, %14, %cst_9 [1] : vector<2x64x64xf32> to vector<2x64xf32>
    %cst_10 = arith.constant 6.400000e+01 : f32
    %16 = vector.broadcast %cst_10 : f32 to vector<2x64xf32>
    %17 = arith.divf %15, %16 : vector<2x64xf32>
    %18 = vector.extract_strided_slice %17 {offsets = [0, 0], sizes = [2, 32], strides = [1, 1]} : vector<2x64xf32> to vector<2x32xf32>
    %19 = vector.extract_strided_slice %17 {offsets = [0, 32], sizes = [2, 32], strides = [1, 1]} : vector<2x64xf32> to vector<2x32xf32>
    %c0_11 = arith.constant 0 : index
    %c0_12 = arith.constant 0 : index
    %20 = vector.load %arg3[%c0_11, %c0_12] : memref<16x17xf32, #tpu.memory_space<vmem>>, vector<16x17xf32>
    %c0_13 = arith.constant 0 : index
    %c0_14 = arith.constant 0 : index
    %21 = vector.load %arg7[%c0_13, %c0_14] : memref<17x128xf32, #tpu.memory_space<vmem>>, vector<17x128xf32>
    %cst_15 = arith.constant dense<0.000000e+00> : vector<16x128xf32>
    %22 = tpu.matmul %20, %21, %cst_15 {dimension_numbers = #tpu.dot_dimension_numbers<[1], [0], [0], [1], [0, 0, 1, 1], [], []>} : vector<16x17xf32>, vector<17x128xf32>, vector<16x128xf32> -> vector<16x128xf32>
    %23 = vector.shape_cast %22 : vector<16x128xf32> to vector<8x2x128xf32>
    %c0_16 = arith.constant 0 : index
    %c0_17 = arith.constant 0 : index
    %24 = vector.load %arg6[%c0_16, %c0_17] : memref<1x16xf32, #tpu.memory_space<vmem>>, vector<1x16xf32>
    %c0_18 = arith.constant 0 : index
    %c0_19 = arith.constant 0 : index
    %25 = vector.load %arg8[%c0_18, %c0_19] : memref<40x128xf32, #tpu.memory_space<vmem>>, vector<40x128xf32>
    %c0_20 = arith.constant 0 : index
    %c0_21 = arith.constant 0 : index
    %26 = vector.load %arg9[%c0_20, %c0_21] : memref<32x48xf32, #tpu.memory_space<vmem>>, vector<32x48xf32>
    %c0_22 = arith.constant 0 : index
    %c0_23 = arith.constant 0 : index
    %27 = vector.load %arg10[%c0_22, %c0_23] : memref<1x32xf32, #tpu.memory_space<vmem>>, vector<1x32xf32>
    %cst_24 = arith.constant 0.000000e+00 : f32
    %28 = vector.broadcast %cst_24 : f32 to vector<2x32xf32>
    %cst_25 = arith.constant dense<0.000000e+00> : vector<2x48xf32>
    %29 = tpu.matmul %18, %26, %cst_25 {dimension_numbers = #tpu.dot_dimension_numbers<[1], [0], [0], [1], [0, 0, 1, 1], [], []>} : vector<2x32xf32>, vector<32x48xf32>, vector<2x48xf32> -> vector<2x48xf32>
    %30 = vector.extract_strided_slice %29 {offsets = [0, 32], sizes = [2, 16], strides = [1, 1]} : vector<2x48xf32> to vector<2x16xf32>
    %31 = vector.shape_cast %30 : vector<2x16xf32> to vector<2x1x16xf32>
    %32 = vector.broadcast %31 : vector<2x1x16xf32> to vector<2x64x16xf32>
    %33 = arith.addf %12, %32 : vector<2x64x16xf32>
    %34 = math.tanh %33 : vector<2x64x16xf32>
    %35 = vector.shape_cast %24 : vector<1x16xf32> to vector<1x1x16xf32>
    %36 = vector.broadcast %35 : vector<1x1x16xf32> to vector<2x64x16xf32>
    %37 = arith.mulf %34, %36 : vector<2x64x16xf32>
    %cst_26 = arith.constant dense<0.000000e+00> : vector<2x64xf32>
    %38 = vector.multi_reduction <add>, %37, %cst_26 [2] : vector<2x64x16xf32> to vector<2x64xf32>
    %cst_27 = arith.constant dense<0xFF800000> : vector<2xf32>
    %39 = vector.multi_reduction <maximumf>, %38, %cst_27 [1] : vector<2x64xf32> to vector<2xf32>
    %40 = vector.shape_cast %39 : vector<2xf32> to vector<2x1xf32>
    %41 = vector.broadcast %40 : vector<2x1xf32> to vector<2x64xf32>
    %42 = arith.subf %38, %41 : vector<2x64xf32>
    %43 = math.exp %42 : vector<2x64xf32>
    %cst_28 = arith.constant dense<0.000000e+00> : vector<2xf32>
    %44 = vector.multi_reduction <add>, %43, %cst_28 [1] : vector<2x64xf32> to vector<2xf32>
    %45 = vector.shape_cast %44 : vector<2xf32> to vector<2x1xf32>
    %46 = tpu.reciprocal %45 {approx = true} : vector<2x1xf32> -> vector<2x1xf32>
    %47 = vector.broadcast %46 : vector<2x1xf32> to vector<2x64xf32>
    %48 = arith.mulf %43, %47 : vector<2x64xf32>
    %49 = vector.shape_cast %48 : vector<2x64xf32> to vector<2x64x1xf32>
    %50 = vector.broadcast %49 : vector<2x64x1xf32> to vector<2x64x8xf32>
    %51 = arith.mulf %5, %50 : vector<2x64x8xf32>
    %cst_29 = arith.constant dense<0.000000e+00> : vector<2x8xf32>
    %52 = vector.multi_reduction <add>, %51, %cst_29 [1] : vector<2x64x8xf32> to vector<2x8xf32>
    %53 = tpu.concatenate %52, %18 in 1 : vector<2x8xf32>, vector<2x32xf32> -> vector<2x40xf32>
    %54 = vector.extract_strided_slice %23 {offsets = [0, 0, 0], sizes = [1, 2, 128], strides = [1, 1, 1]} : vector<8x2x128xf32> to vector<1x2x128xf32>
    %55 = vector.shape_cast %54 : vector<1x2x128xf32> to vector<2x128xf32>
    %cst_30 = arith.constant dense<0.000000e+00> : vector<2x128xf32>
    %56 = tpu.matmul %53, %25, %cst_30 {dimension_numbers = #tpu.dot_dimension_numbers<[1], [0], [0], [1], [0, 0, 1, 1], [], []>} : vector<2x40xf32>, vector<40x128xf32>, vector<2x128xf32> -> vector<2x128xf32>
    %57 = arith.addf %55, %56 : vector<2x128xf32>
    %58 = vector.extract_strided_slice %57 {offsets = [0, 0], sizes = [2, 32], strides = [1, 1]} : vector<2x128xf32> to vector<2x32xf32>
    %59 = arith.negf %58 : vector<2x32xf32>
    %60 = math.exp %59 : vector<2x32xf32>
    %cst_31 = arith.constant 1.000000e+00 : f32
    %61 = vector.broadcast %cst_31 : f32 to vector<2x32xf32>
    %62 = arith.addf %61, %60 : vector<2x32xf32>
    %63 = arith.divf %61, %62 : vector<2x32xf32>
    %64 = vector.extract_strided_slice %57 {offsets = [0, 32], sizes = [2, 32], strides = [1, 1]} : vector<2x128xf32> to vector<2x32xf32>
    %65 = arith.negf %64 : vector<2x32xf32>
    %66 = math.exp %65 : vector<2x32xf32>
    %cst_32 = arith.constant 1.000000e+00 : f32
    %67 = vector.broadcast %cst_32 : f32 to vector<2x32xf32>
    %68 = arith.addf %67, %66 : vector<2x32xf32>
    %69 = arith.divf %67, %68 : vector<2x32xf32>
    %70 = vector.extract_strided_slice %57 {offsets = [0, 64], sizes = [2, 32], strides = [1, 1]} : vector<2x128xf32> to vector<2x32xf32>
    %71 = math.tanh %70 : vector<2x32xf32>
    %72 = vector.extract_strided_slice %57 {offsets = [0, 96], sizes = [2, 32], strides = [1, 1]} : vector<2x128xf32> to vector<2x32xf32>
    %73 = arith.negf %72 : vector<2x32xf32>
    %74 = math.exp %73 : vector<2x32xf32>
    %cst_33 = arith.constant 1.000000e+00 : f32
    %75 = vector.broadcast %cst_33 : f32 to vector<2x32xf32>
    %76 = arith.addf %75, %74 : vector<2x32xf32>
    %77 = arith.divf %75, %76 : vector<2x32xf32>
    %78 = arith.mulf %69, %19 : vector<2x32xf32>
    %79 = arith.mulf %63, %71 : vector<2x32xf32>
    %80 = arith.addf %78, %79 : vector<2x32xf32>
    %81 = math.tanh %80 : vector<2x32xf32>
    %82 = arith.mulf %77, %81 : vector<2x32xf32>
    %cst_34 = arith.constant dense<0.000000e+00> : vector<2x48xf32>
    %83 = tpu.matmul %82, %26, %cst_34 {dimension_numbers = #tpu.dot_dimension_numbers<[1], [0], [0], [1], [0, 0, 1, 1], [], []>} : vector<2x32xf32>, vector<32x48xf32>, vector<2x48xf32> -> vector<2x48xf32>
    %84 = vector.extract_strided_slice %83 {offsets = [0, 0], sizes = [2, 32], strides = [1, 1]} : vector<2x48xf32> to vector<2x32xf32>
    %85 = vector.broadcast %27 : vector<1x32xf32> to vector<2x32xf32>
    %86 = arith.addf %84, %85 : vector<2x32xf32>
    %87 = vector.extract_strided_slice %83 {offsets = [0, 32], sizes = [2, 16], strides = [1, 1]} : vector<2x48xf32> to vector<2x16xf32>
    %88 = tpu.concatenate %86, %48, %28 in 1 : vector<2x32xf32>, vector<2x64xf32>, vector<2x32xf32> -> vector<2x128xf32>
    %c0_35 = arith.constant 0 : index
    %c0_36 = arith.constant 0 : index
    %c0_37 = arith.constant 0 : index
    %89 = vector.load %arg11[%c0_35, %c0_36, %c0_37] : memref<8x2x128xf32, #tpu.memory_space<vmem>>, vector<1x2x128xf32>
    %90 = vector.shape_cast %89 : vector<1x2x128xf32> to vector<2x128xf32>
    %91 = vector.shape_cast %88 : vector<2x128xf32> to vector<1x2x128xf32>
    tpu.vector_store %arg11[%c0_35, %c0_36, %c0_37], %91 {strides = array<i32>} : memref<8x2x128xf32, #tpu.memory_space<vmem>>, vector<1x2x128xf32>,
    %92 = vector.shape_cast %87 : vector<2x16xf32> to vector<2x1x16xf32>
    %93 = vector.broadcast %92 : vector<2x1x16xf32> to vector<2x64x16xf32>
    %94 = arith.addf %12, %93 : vector<2x64x16xf32>
    %95 = math.tanh %94 : vector<2x64x16xf32>
    %96 = vector.shape_cast %24 : vector<1x16xf32> to vector<1x1x16xf32>
    %97 = vector.broadcast %96 : vector<1x1x16xf32> to vector<2x64x16xf32>
    %98 = arith.mulf %95, %97 : vector<2x64x16xf32>
    %cst_38 = arith.constant dense<0.000000e+00> : vector<2x64xf32>
    %99 = vector.multi_reduction <add>, %98, %cst_38 [2] : vector<2x64x16xf32> to vector<2x64xf32>
    %cst_39 = arith.constant dense<0xFF800000> : vector<2xf32>
    %100 = vector.multi_reduction <maximumf>, %99, %cst_39 [1] : vector<2x64xf32> to vector<2xf32>
    %101 = vector.shape_cast %100 : vector<2xf32> to vector<2x1xf32>
    %102 = vector.broadcast %101 : vector<2x1xf32> to vector<2x64xf32>
    %103 = arith.subf %99, %102 : vector<2x64xf32>
    %104 = math.exp %103 : vector<2x64xf32>
    %cst_40 = arith.constant dense<0.000000e+00> : vector<2xf32>
    %105 = vector.multi_reduction <add>, %104, %cst_40 [1] : vector<2x64xf32> to vector<2xf32>
    %106 = vector.shape_cast %105 : vector<2xf32> to vector<2x1xf32>
    %107 = tpu.reciprocal %106 {approx = true} : vector<2x1xf32> -> vector<2x1xf32>
    %108 = vector.broadcast %107 : vector<2x1xf32> to vector<2x64xf32>
    %109 = arith.mulf %104, %108 : vector<2x64xf32>
    %110 = vector.shape_cast %109 : vector<2x64xf32> to vector<2x64x1xf32>
    %111 = vector.broadcast %110 : vector<2x64x1xf32> to vector<2x64x8xf32>
    %112 = arith.mulf %5, %111 : vector<2x64x8xf32>
    %cst_41 = arith.constant dense<0.000000e+00> : vector<2x8xf32>
    %113 = vector.multi_reduction <add>, %112, %cst_41 [1] : vector<2x64x8xf32> to vector<2x8xf32>
    %114 = tpu.concatenate %113, %82 in 1 : vector<2x8xf32>, vector<2x32xf32> -> vector<2x40xf32>
    %115 = vector.extract_strided_slice %23 {offsets = [1, 0, 0], sizes = [1, 2, 128], strides = [1, 1, 1]} : vector<8x2x128xf32> to vector<1x2x128xf32>
    %116 = vector.shape_cast %115 : vector<1x2x128xf32> to vector<2x128xf32>
    %cst_42 = arith.constant dense<0.000000e+00> : vector<2x128xf32>
    %117 = tpu.matmul %114, %25, %cst_42 {dimension_numbers = #tpu.dot_dimension_numbers<[1], [0], [0], [1], [0, 0, 1, 1], [], []>} : vector<2x40xf32>, vector<40x128xf32>, vector<2x128xf32> -> vector<2x128xf32>
    %118 = arith.addf %116, %117 : vector<2x128xf32>
    %119 = vector.extract_strided_slice %118 {offsets = [0, 0], sizes = [2, 32], strides = [1, 1]} : vector<2x128xf32> to vector<2x32xf32>
    %120 = arith.negf %119 : vector<2x32xf32>
    %121 = math.exp %120 : vector<2x32xf32>
    %cst_43 = arith.constant 1.000000e+00 : f32
    %122 = vector.broadcast %cst_43 : f32 to vector<2x32xf32>
    %123 = arith.addf %122, %121 : vector<2x32xf32>
    %124 = arith.divf %122, %123 : vector<2x32xf32>
    %125 = vector.extract_strided_slice %118 {offsets = [0, 32], sizes = [2, 32], strides = [1, 1]} : vector<2x128xf32> to vector<2x32xf32>
    %126 = arith.negf %125 : vector<2x32xf32>
    %127 = math.exp %126 : vector<2x32xf32>
    %cst_44 = arith.constant 1.000000e+00 : f32
    %128 = vector.broadcast %cst_44 : f32 to vector<2x32xf32>
    %129 = arith.addf %128, %127 : vector<2x32xf32>
    %130 = arith.divf %128, %129 : vector<2x32xf32>
    %131 = vector.extract_strided_slice %118 {offsets = [0, 64], sizes = [2, 32], strides = [1, 1]} : vector<2x128xf32> to vector<2x32xf32>
    %132 = math.tanh %131 : vector<2x32xf32>
    %133 = vector.extract_strided_slice %118 {offsets = [0, 96], sizes = [2, 32], strides = [1, 1]} : vector<2x128xf32> to vector<2x32xf32>
    %134 = arith.negf %133 : vector<2x32xf32>
    %135 = math.exp %134 : vector<2x32xf32>
    %cst_45 = arith.constant 1.000000e+00 : f32
    %136 = vector.broadcast %cst_45 : f32 to vector<2x32xf32>
    %137 = arith.addf %136, %135 : vector<2x32xf32>
    %138 = arith.divf %136, %137 : vector<2x32xf32>
    %139 = arith.mulf %130, %80 : vector<2x32xf32>
    %140 = arith.mulf %124, %132 : vector<2x32xf32>
    %141 = arith.addf %139, %140 : vector<2x32xf32>
    %142 = math.tanh %141 : vector<2x32xf32>
    %143 = arith.mulf %138, %142 : vector<2x32xf32>
    %cst_46 = arith.constant dense<0.000000e+00> : vector<2x48xf32>
    %144 = tpu.matmul %143, %26, %cst_46 {dimension_numbers = #tpu.dot_dimension_numbers<[1], [0], [0], [1], [0, 0, 1, 1], [], []>} : vector<2x32xf32>, vector<32x48xf32>, vector<2x48xf32> -> vector<2x48xf32>
    %145 = vector.extract_strided_slice %144 {offsets = [0, 0], sizes = [2, 32], strides = [1, 1]} : vector<2x48xf32> to vector<2x32xf32>
    %146 = vector.broadcast %27 : vector<1x32xf32> to vector<2x32xf32>
    %147 = arith.addf %145, %146 : vector<2x32xf32>
    %148 = vector.extract_strided_slice %144 {offsets = [0, 32], sizes = [2, 16], strides = [1, 1]} : vector<2x48xf32> to vector<2x16xf32>
    %149 = tpu.concatenate %147, %109, %28 in 1 : vector<2x32xf32>, vector<2x64xf32>, vector<2x32xf32> -> vector<2x128xf32>
    %c1 = arith.constant 1 : index
    %c0_47 = arith.constant 0 : index
    %c0_48 = arith.constant 0 : index
    %150 = vector.load %arg11[%c1, %c0_47, %c0_48] : memref<8x2x128xf32, #tpu.memory_space<vmem>>, vector<1x2x128xf32>
    %151 = vector.shape_cast %150 : vector<1x2x128xf32> to vector<2x128xf32>
    %152 = vector.shape_cast %149 : vector<2x128xf32> to vector<1x2x128xf32>
    tpu.vector_store %arg11[%c1, %c0_47, %c0_48], %152 {strides = array<i32>} : memref<8x2x128xf32, #tpu.memory_space<vmem>>, vector<1x2x128xf32>,
    %153 = vector.shape_cast %148 : vector<2x16xf32> to vector<2x1x16xf32>
    %154 = vector.broadcast %153 : vector<2x1x16xf32> to vector<2x64x16xf32>
    %155 = arith.addf %12, %154 : vector<2x64x16xf32>
    %156 = math.tanh %155 : vector<2x64x16xf32>
    %157 = vector.shape_cast %24 : vector<1x16xf32> to vector<1x1x16xf32>
    %158 = vector.broadcast %157 : vector<1x1x16xf32> to vector<2x64x16xf32>
    %159 = arith.mulf %156, %158 : vector<2x64x16xf32>
    %cst_49 = arith.constant dense<0.000000e+00> : vector<2x64xf32>
    %160 = vector.multi_reduction <add>, %159, %cst_49 [2] : vector<2x64x16xf32> to vector<2x64xf32>
    %cst_50 = arith.constant dense<0xFF800000> : vector<2xf32>
    %161 = vector.multi_reduction <maximumf>, %160, %cst_50 [1] : vector<2x64xf32> to vector<2xf32>
    %162 = vector.shape_cast %161 : vector<2xf32> to vector<2x1xf32>
    %163 = vector.broadcast %162 : vector<2x1xf32> to vector<2x64xf32>
    %164 = arith.subf %160, %163 : vector<2x64xf32>
    %165 = math.exp %164 : vector<2x64xf32>
    %cst_51 = arith.constant dense<0.000000e+00> : vector<2xf32>
    %166 = vector.multi_reduction <add>, %165, %cst_51 [1] : vector<2x64xf32> to vector<2xf32>
    %167 = vector.shape_cast %166 : vector<2xf32> to vector<2x1xf32>
    %168 = tpu.reciprocal %167 {approx = true} : vector<2x1xf32> -> vector<2x1xf32>
    %169 = vector.broadcast %168 : vector<2x1xf32> to vector<2x64xf32>
    %170 = arith.mulf %165, %169 : vector<2x64xf32>
    %171 = vector.shape_cast %170 : vector<2x64xf32> to vector<2x64x1xf32>
    %172 = vector.broadcast %171 : vector<2x64x1xf32> to vector<2x64x8xf32>
    %173 = arith.mulf %5, %172 : vector<2x64x8xf32>
    %cst_52 = arith.constant dense<0.000000e+00> : vector<2x8xf32>
    %174 = vector.multi_reduction <add>, %173, %cst_52 [1] : vector<2x64x8xf32> to vector<2x8xf32>
    %175 = tpu.concatenate %174, %143 in 1 : vector<2x8xf32>, vector<2x32xf32> -> vector<2x40xf32>
    %176 = vector.extract_strided_slice %23 {offsets = [2, 0, 0], sizes = [1, 2, 128], strides = [1, 1, 1]} : vector<8x2x128xf32> to vector<1x2x128xf32>
    %177 = vector.shape_cast %176 : vector<1x2x128xf32> to vector<2x128xf32>
    %cst_53 = arith.constant dense<0.000000e+00> : vector<2x128xf32>
    %178 = tpu.matmul %175, %25, %cst_53 {dimension_numbers = #tpu.dot_dimension_numbers<[1], [0], [0], [1], [0, 0, 1, 1], [], []>} : vector<2x40xf32>, vector<40x128xf32>, vector<2x128xf32> -> vector<2x128xf32>
    %179 = arith.addf %177, %178 : vector<2x128xf32>
    %180 = vector.extract_strided_slice %179 {offsets = [0, 0], sizes = [2, 32], strides = [1, 1]} : vector<2x128xf32> to vector<2x32xf32>
    %181 = arith.negf %180 : vector<2x32xf32>
    %182 = math.exp %181 : vector<2x32xf32>
    %cst_54 = arith.constant 1.000000e+00 : f32
    %183 = vector.broadcast %cst_54 : f32 to vector<2x32xf32>
    %184 = arith.addf %183, %182 : vector<2x32xf32>
    %185 = arith.divf %183, %184 : vector<2x32xf32>
    %186 = vector.extract_strided_slice %179 {offsets = [0, 32], sizes = [2, 32], strides = [1, 1]} : vector<2x128xf32> to vector<2x32xf32>
    %187 = arith.negf %186 : vector<2x32xf32>
    %188 = math.exp %187 : vector<2x32xf32>
    %cst_55 = arith.constant 1.000000e+00 : f32
    %189 = vector.broadcast %cst_55 : f32 to vector<2x32xf32>
    %190 = arith.addf %189, %188 : vector<2x32xf32>
    %191 = arith.divf %189, %190 : vector<2x32xf32>
    %192 = vector.extract_strided_slice %179 {offsets = [0, 64], sizes = [2, 32], strides = [1, 1]} : vector<2x128xf32> to vector<2x32xf32>
    %193 = math.tanh %192 : vector<2x32xf32>
    %194 = vector.extract_strided_slice %179 {offsets = [0, 96], sizes = [2, 32], strides = [1, 1]} : vector<2x128xf32> to vector<2x32xf32>
    %195 = arith.negf %194 : vector<2x32xf32>
    %196 = math.exp %195 : vector<2x32xf32>
    %cst_56 = arith.constant 1.000000e+00 : f32
    %197 = vector.broadcast %cst_56 : f32 to vector<2x32xf32>
    %198 = arith.addf %197, %196 : vector<2x32xf32>
    %199 = arith.divf %197, %198 : vector<2x32xf32>
    %200 = arith.mulf %191, %141 : vector<2x32xf32>
    %201 = arith.mulf %185, %193 : vector<2x32xf32>
    %202 = arith.addf %200, %201 : vector<2x32xf32>
    %203 = math.tanh %202 : vector<2x32xf32>
    %204 = arith.mulf %199, %203 : vector<2x32xf32>
    %cst_57 = arith.constant dense<0.000000e+00> : vector<2x48xf32>
    %205 = tpu.matmul %204, %26, %cst_57 {dimension_numbers = #tpu.dot_dimension_numbers<[1], [0], [0], [1], [0, 0, 1, 1], [], []>} : vector<2x32xf32>, vector<32x48xf32>, vector<2x48xf32> -> vector<2x48xf32>
    %206 = vector.extract_strided_slice %205 {offsets = [0, 0], sizes = [2, 32], strides = [1, 1]} : vector<2x48xf32> to vector<2x32xf32>
    %207 = vector.broadcast %27 : vector<1x32xf32> to vector<2x32xf32>
    %208 = arith.addf %206, %207 : vector<2x32xf32>
    %209 = vector.extract_strided_slice %205 {offsets = [0, 32], sizes = [2, 16], strides = [1, 1]} : vector<2x48xf32> to vector<2x16xf32>
    %210 = tpu.concatenate %208, %170, %28 in 1 : vector<2x32xf32>, vector<2x64xf32>, vector<2x32xf32> -> vector<2x128xf32>
    %c2 = arith.constant 2 : index
    %c0_58 = arith.constant 0 : index
    %c0_59 = arith.constant 0 : index
    %211 = vector.load %arg11[%c2, %c0_58, %c0_59] : memref<8x2x128xf32, #tpu.memory_space<vmem>>, vector<1x2x128xf32>
    %212 = vector.shape_cast %211 : vector<1x2x128xf32> to vector<2x128xf32>
    %213 = vector.shape_cast %210 : vector<2x128xf32> to vector<1x2x128xf32>
    tpu.vector_store %arg11[%c2, %c0_58, %c0_59], %213 {strides = array<i32>} : memref<8x2x128xf32, #tpu.memory_space<vmem>>, vector<1x2x128xf32>,
    %214 = vector.shape_cast %209 : vector<2x16xf32> to vector<2x1x16xf32>
    %215 = vector.broadcast %214 : vector<2x1x16xf32> to vector<2x64x16xf32>
    %216 = arith.addf %12, %215 : vector<2x64x16xf32>
    %217 = math.tanh %216 : vector<2x64x16xf32>
    %218 = vector.shape_cast %24 : vector<1x16xf32> to vector<1x1x16xf32>
    %219 = vector.broadcast %218 : vector<1x1x16xf32> to vector<2x64x16xf32>
    %220 = arith.mulf %217, %219 : vector<2x64x16xf32>
    %cst_60 = arith.constant dense<0.000000e+00> : vector<2x64xf32>
    %221 = vector.multi_reduction <add>, %220, %cst_60 [2] : vector<2x64x16xf32> to vector<2x64xf32>
    %cst_61 = arith.constant dense<0xFF800000> : vector<2xf32>
    %222 = vector.multi_reduction <maximumf>, %221, %cst_61 [1] : vector<2x64xf32> to vector<2xf32>
    %223 = vector.shape_cast %222 : vector<2xf32> to vector<2x1xf32>
    %224 = vector.broadcast %223 : vector<2x1xf32> to vector<2x64xf32>
    %225 = arith.subf %221, %224 : vector<2x64xf32>
    %226 = math.exp %225 : vector<2x64xf32>
    %cst_62 = arith.constant dense<0.000000e+00> : vector<2xf32>
    %227 = vector.multi_reduction <add>, %226, %cst_62 [1] : vector<2x64xf32> to vector<2xf32>
    %228 = vector.shape_cast %227 : vector<2xf32> to vector<2x1xf32>
    %229 = tpu.reciprocal %228 {approx = true} : vector<2x1xf32> -> vector<2x1xf32>
    %230 = vector.broadcast %229 : vector<2x1xf32> to vector<2x64xf32>
    %231 = arith.mulf %226, %230 : vector<2x64xf32>
    %232 = vector.shape_cast %231 : vector<2x64xf32> to vector<2x64x1xf32>
    %233 = vector.broadcast %232 : vector<2x64x1xf32> to vector<2x64x8xf32>
    %234 = arith.mulf %5, %233 : vector<2x64x8xf32>
    %cst_63 = arith.constant dense<0.000000e+00> : vector<2x8xf32>
    %235 = vector.multi_reduction <add>, %234, %cst_63 [1] : vector<2x64x8xf32> to vector<2x8xf32>
    %236 = tpu.concatenate %235, %204 in 1 : vector<2x8xf32>, vector<2x32xf32> -> vector<2x40xf32>
    %237 = vector.extract_strided_slice %23 {offsets = [3, 0, 0], sizes = [1, 2, 128], strides = [1, 1, 1]} : vector<8x2x128xf32> to vector<1x2x128xf32>
    %238 = vector.shape_cast %237 : vector<1x2x128xf32> to vector<2x128xf32>
    %cst_64 = arith.constant dense<0.000000e+00> : vector<2x128xf32>
    %239 = tpu.matmul %236, %25, %cst_64 {dimension_numbers = #tpu.dot_dimension_numbers<[1], [0], [0], [1], [0, 0, 1, 1], [], []>} : vector<2x40xf32>, vector<40x128xf32>, vector<2x128xf32> -> vector<2x128xf32>
    %240 = arith.addf %238, %239 : vector<2x128xf32>
    %241 = vector.extract_strided_slice %240 {offsets = [0, 0], sizes = [2, 32], strides = [1, 1]} : vector<2x128xf32> to vector<2x32xf32>
    %242 = arith.negf %241 : vector<2x32xf32>
    %243 = math.exp %242 : vector<2x32xf32>
    %cst_65 = arith.constant 1.000000e+00 : f32
    %244 = vector.broadcast %cst_65 : f32 to vector<2x32xf32>
    %245 = arith.addf %244, %243 : vector<2x32xf32>
    %246 = arith.divf %244, %245 : vector<2x32xf32>
    %247 = vector.extract_strided_slice %240 {offsets = [0, 32], sizes = [2, 32], strides = [1, 1]} : vector<2x128xf32> to vector<2x32xf32>
    %248 = arith.negf %247 : vector<2x32xf32>
    %249 = math.exp %248 : vector<2x32xf32>
    %cst_66 = arith.constant 1.000000e+00 : f32
    %250 = vector.broadcast %cst_66 : f32 to vector<2x32xf32>
    %251 = arith.addf %250, %249 : vector<2x32xf32>
    %252 = arith.divf %250, %251 : vector<2x32xf32>
    %253 = vector.extract_strided_slice %240 {offsets = [0, 64], sizes = [2, 32], strides = [1, 1]} : vector<2x128xf32> to vector<2x32xf32>
    %254 = math.tanh %253 : vector<2x32xf32>
    %255 = vector.extract_strided_slice %240 {offsets = [0, 96], sizes = [2, 32], strides = [1, 1]} : vector<2x128xf32> to vector<2x32xf32>
    %256 = arith.negf %255 : vector<2x32xf32>
    %257 = math.exp %256 : vector<2x32xf32>
    %cst_67 = arith.constant 1.000000e+00 : f32
    %258 = vector.broadcast %cst_67 : f32 to vector<2x32xf32>
    %259 = arith.addf %258, %257 : vector<2x32xf32>
    %260 = arith.divf %258, %259 : vector<2x32xf32>
    %261 = arith.mulf %252, %202 : vector<2x32xf32>
    %262 = arith.mulf %246, %254 : vector<2x32xf32>
    %263 = arith.addf %261, %262 : vector<2x32xf32>
    %264 = math.tanh %263 : vector<2x32xf32>
    %265 = arith.mulf %260, %264 : vector<2x32xf32>
    %cst_68 = arith.constant dense<0.000000e+00> : vector<2x48xf32>
    %266 = tpu.matmul %265, %26, %cst_68 {dimension_numbers = #tpu.dot_dimension_numbers<[1], [0], [0], [1], [0, 0, 1, 1], [], []>} : vector<2x32xf32>, vector<32x48xf32>, vector<2x48xf32> -> vector<2x48xf32>
    %267 = vector.extract_strided_slice %266 {offsets = [0, 0], sizes = [2, 32], strides = [1, 1]} : vector<2x48xf32> to vector<2x32xf32>
    %268 = vector.broadcast %27 : vector<1x32xf32> to vector<2x32xf32>
    %269 = arith.addf %267, %268 : vector<2x32xf32>
    %270 = vector.extract_strided_slice %266 {offsets = [0, 32], sizes = [2, 16], strides = [1, 1]} : vector<2x48xf32> to vector<2x16xf32>
    %271 = tpu.concatenate %269, %231, %28 in 1 : vector<2x32xf32>, vector<2x64xf32>, vector<2x32xf32> -> vector<2x128xf32>
    %c3 = arith.constant 3 : index
    %c0_69 = arith.constant 0 : index
    %c0_70 = arith.constant 0 : index
    %272 = vector.load %arg11[%c3, %c0_69, %c0_70] : memref<8x2x128xf32, #tpu.memory_space<vmem>>, vector<1x2x128xf32>
    %273 = vector.shape_cast %272 : vector<1x2x128xf32> to vector<2x128xf32>
    %274 = vector.shape_cast %271 : vector<2x128xf32> to vector<1x2x128xf32>
    tpu.vector_store %arg11[%c3, %c0_69, %c0_70], %274 {strides = array<i32>} : memref<8x2x128xf32, #tpu.memory_space<vmem>>, vector<1x2x128xf32>,
    %275 = vector.shape_cast %270 : vector<2x16xf32> to vector<2x1x16xf32>
    %276 = vector.broadcast %275 : vector<2x1x16xf32> to vector<2x64x16xf32>
    %277 = arith.addf %12, %276 : vector<2x64x16xf32>
    %278 = math.tanh %277 : vector<2x64x16xf32>
    %279 = vector.shape_cast %24 : vector<1x16xf32> to vector<1x1x16xf32>
    %280 = vector.broadcast %279 : vector<1x1x16xf32> to vector<2x64x16xf32>
    %281 = arith.mulf %278, %280 : vector<2x64x16xf32>
    %cst_71 = arith.constant dense<0.000000e+00> : vector<2x64xf32>
    %282 = vector.multi_reduction <add>, %281, %cst_71 [2] : vector<2x64x16xf32> to vector<2x64xf32>
    %cst_72 = arith.constant dense<0xFF800000> : vector<2xf32>
    %283 = vector.multi_reduction <maximumf>, %282, %cst_72 [1] : vector<2x64xf32> to vector<2xf32>
    %284 = vector.shape_cast %283 : vector<2xf32> to vector<2x1xf32>
    %285 = vector.broadcast %284 : vector<2x1xf32> to vector<2x64xf32>
    %286 = arith.subf %282, %285 : vector<2x64xf32>
    %287 = math.exp %286 : vector<2x64xf32>
    %cst_73 = arith.constant dense<0.000000e+00> : vector<2xf32>
    %288 = vector.multi_reduction <add>, %287, %cst_73 [1] : vector<2x64xf32> to vector<2xf32>
    %289 = vector.shape_cast %288 : vector<2xf32> to vector<2x1xf32>
    %290 = tpu.reciprocal %289 {approx = true} : vector<2x1xf32> -> vector<2x1xf32>
    %291 = vector.broadcast %290 : vector<2x1xf32> to vector<2x64xf32>
    %292 = arith.mulf %287, %291 : vector<2x64xf32>
    %293 = vector.shape_cast %292 : vector<2x64xf32> to vector<2x64x1xf32>
    %294 = vector.broadcast %293 : vector<2x64x1xf32> to vector<2x64x8xf32>
    %295 = arith.mulf %5, %294 : vector<2x64x8xf32>
    %cst_74 = arith.constant dense<0.000000e+00> : vector<2x8xf32>
    %296 = vector.multi_reduction <add>, %295, %cst_74 [1] : vector<2x64x8xf32> to vector<2x8xf32>
    %297 = tpu.concatenate %296, %265 in 1 : vector<2x8xf32>, vector<2x32xf32> -> vector<2x40xf32>
    %298 = vector.extract_strided_slice %23 {offsets = [4, 0, 0], sizes = [1, 2, 128], strides = [1, 1, 1]} : vector<8x2x128xf32> to vector<1x2x128xf32>
    %299 = vector.shape_cast %298 : vector<1x2x128xf32> to vector<2x128xf32>
    %cst_75 = arith.constant dense<0.000000e+00> : vector<2x128xf32>
    %300 = tpu.matmul %297, %25, %cst_75 {dimension_numbers = #tpu.dot_dimension_numbers<[1], [0], [0], [1], [0, 0, 1, 1], [], []>} : vector<2x40xf32>, vector<40x128xf32>, vector<2x128xf32> -> vector<2x128xf32>
    %301 = arith.addf %299, %300 : vector<2x128xf32>
    %302 = vector.extract_strided_slice %301 {offsets = [0, 0], sizes = [2, 32], strides = [1, 1]} : vector<2x128xf32> to vector<2x32xf32>
    %303 = arith.negf %302 : vector<2x32xf32>
    %304 = math.exp %303 : vector<2x32xf32>
    %cst_76 = arith.constant 1.000000e+00 : f32
    %305 = vector.broadcast %cst_76 : f32 to vector<2x32xf32>
    %306 = arith.addf %305, %304 : vector<2x32xf32>
    %307 = arith.divf %305, %306 : vector<2x32xf32>
    %308 = vector.extract_strided_slice %301 {offsets = [0, 32], sizes = [2, 32], strides = [1, 1]} : vector<2x128xf32> to vector<2x32xf32>
    %309 = arith.negf %308 : vector<2x32xf32>
    %310 = math.exp %309 : vector<2x32xf32>
    %cst_77 = arith.constant 1.000000e+00 : f32
    %311 = vector.broadcast %cst_77 : f32 to vector<2x32xf32>
    %312 = arith.addf %311, %310 : vector<2x32xf32>
    %313 = arith.divf %311, %312 : vector<2x32xf32>
    %314 = vector.extract_strided_slice %301 {offsets = [0, 64], sizes = [2, 32], strides = [1, 1]} : vector<2x128xf32> to vector<2x32xf32>
    %315 = math.tanh %314 : vector<2x32xf32>
    %316 = vector.extract_strided_slice %301 {offsets = [0, 96], sizes = [2, 32], strides = [1, 1]} : vector<2x128xf32> to vector<2x32xf32>
    %317 = arith.negf %316 : vector<2x32xf32>
    %318 = math.exp %317 : vector<2x32xf32>
    %cst_78 = arith.constant 1.000000e+00 : f32
    %319 = vector.broadcast %cst_78 : f32 to vector<2x32xf32>
    %320 = arith.addf %319, %318 : vector<2x32xf32>
    %321 = arith.divf %319, %320 : vector<2x32xf32>
    %322 = arith.mulf %313, %263 : vector<2x32xf32>
    %323 = arith.mulf %307, %315 : vector<2x32xf32>
    %324 = arith.addf %322, %323 : vector<2x32xf32>
    %325 = math.tanh %324 : vector<2x32xf32>
    %326 = arith.mulf %321, %325 : vector<2x32xf32>
    %cst_79 = arith.constant dense<0.000000e+00> : vector<2x48xf32>
    %327 = tpu.matmul %326, %26, %cst_79 {dimension_numbers = #tpu.dot_dimension_numbers<[1], [0], [0], [1], [0, 0, 1, 1], [], []>} : vector<2x32xf32>, vector<32x48xf32>, vector<2x48xf32> -> vector<2x48xf32>
    %328 = vector.extract_strided_slice %327 {offsets = [0, 0], sizes = [2, 32], strides = [1, 1]} : vector<2x48xf32> to vector<2x32xf32>
    %329 = vector.broadcast %27 : vector<1x32xf32> to vector<2x32xf32>
    %330 = arith.addf %328, %329 : vector<2x32xf32>
    %331 = vector.extract_strided_slice %327 {offsets = [0, 32], sizes = [2, 16], strides = [1, 1]} : vector<2x48xf32> to vector<2x16xf32>
    %332 = tpu.concatenate %330, %292, %28 in 1 : vector<2x32xf32>, vector<2x64xf32>, vector<2x32xf32> -> vector<2x128xf32>
    %c4 = arith.constant 4 : index
    %c0_80 = arith.constant 0 : index
    %c0_81 = arith.constant 0 : index
    %333 = vector.load %arg11[%c4, %c0_80, %c0_81] : memref<8x2x128xf32, #tpu.memory_space<vmem>>, vector<1x2x128xf32>
    %334 = vector.shape_cast %333 : vector<1x2x128xf32> to vector<2x128xf32>
    %335 = vector.shape_cast %332 : vector<2x128xf32> to vector<1x2x128xf32>
    tpu.vector_store %arg11[%c4, %c0_80, %c0_81], %335 {strides = array<i32>} : memref<8x2x128xf32, #tpu.memory_space<vmem>>, vector<1x2x128xf32>,
    %336 = vector.shape_cast %331 : vector<2x16xf32> to vector<2x1x16xf32>
    %337 = vector.broadcast %336 : vector<2x1x16xf32> to vector<2x64x16xf32>
    %338 = arith.addf %12, %337 : vector<2x64x16xf32>
    %339 = math.tanh %338 : vector<2x64x16xf32>
    %340 = vector.shape_cast %24 : vector<1x16xf32> to vector<1x1x16xf32>
    %341 = vector.broadcast %340 : vector<1x1x16xf32> to vector<2x64x16xf32>
    %342 = arith.mulf %339, %341 : vector<2x64x16xf32>
    %cst_82 = arith.constant dense<0.000000e+00> : vector<2x64xf32>
    %343 = vector.multi_reduction <add>, %342, %cst_82 [2] : vector<2x64x16xf32> to vector<2x64xf32>
    %cst_83 = arith.constant dense<0xFF800000> : vector<2xf32>
    %344 = vector.multi_reduction <maximumf>, %343, %cst_83 [1] : vector<2x64xf32> to vector<2xf32>
    %345 = vector.shape_cast %344 : vector<2xf32> to vector<2x1xf32>
    %346 = vector.broadcast %345 : vector<2x1xf32> to vector<2x64xf32>
    %347 = arith.subf %343, %346 : vector<2x64xf32>
    %348 = math.exp %347 : vector<2x64xf32>
    %cst_84 = arith.constant dense<0.000000e+00> : vector<2xf32>
    %349 = vector.multi_reduction <add>, %348, %cst_84 [1] : vector<2x64xf32> to vector<2xf32>
    %350 = vector.shape_cast %349 : vector<2xf32> to vector<2x1xf32>
    %351 = tpu.reciprocal %350 {approx = true} : vector<2x1xf32> -> vector<2x1xf32>
    %352 = vector.broadcast %351 : vector<2x1xf32> to vector<2x64xf32>
    %353 = arith.mulf %348, %352 : vector<2x64xf32>
    %354 = vector.shape_cast %353 : vector<2x64xf32> to vector<2x64x1xf32>
    %355 = vector.broadcast %354 : vector<2x64x1xf32> to vector<2x64x8xf32>
    %356 = arith.mulf %5, %355 : vector<2x64x8xf32>
    %cst_85 = arith.constant dense<0.000000e+00> : vector<2x8xf32>
    %357 = vector.multi_reduction <add>, %356, %cst_85 [1] : vector<2x64x8xf32> to vector<2x8xf32>
    %358 = tpu.concatenate %357, %326 in 1 : vector<2x8xf32>, vector<2x32xf32> -> vector<2x40xf32>
    %359 = vector.extract_strided_slice %23 {offsets = [5, 0, 0], sizes = [1, 2, 128], strides = [1, 1, 1]} : vector<8x2x128xf32> to vector<1x2x128xf32>
    %360 = vector.shape_cast %359 : vector<1x2x128xf32> to vector<2x128xf32>
    %cst_86 = arith.constant dense<0.000000e+00> : vector<2x128xf32>
    %361 = tpu.matmul %358, %25, %cst_86 {dimension_numbers = #tpu.dot_dimension_numbers<[1], [0], [0], [1], [0, 0, 1, 1], [], []>} : vector<2x40xf32>, vector<40x128xf32>, vector<2x128xf32> -> vector<2x128xf32>
    %362 = arith.addf %360, %361 : vector<2x128xf32>
    %363 = vector.extract_strided_slice %362 {offsets = [0, 0], sizes = [2, 32], strides = [1, 1]} : vector<2x128xf32> to vector<2x32xf32>
    %364 = arith.negf %363 : vector<2x32xf32>
    %365 = math.exp %364 : vector<2x32xf32>
    %cst_87 = arith.constant 1.000000e+00 : f32
    %366 = vector.broadcast %cst_87 : f32 to vector<2x32xf32>
    %367 = arith.addf %366, %365 : vector<2x32xf32>
    %368 = arith.divf %366, %367 : vector<2x32xf32>
    %369 = vector.extract_strided_slice %362 {offsets = [0, 32], sizes = [2, 32], strides = [1, 1]} : vector<2x128xf32> to vector<2x32xf32>
    %370 = arith.negf %369 : vector<2x32xf32>
    %371 = math.exp %370 : vector<2x32xf32>
    %cst_88 = arith.constant 1.000000e+00 : f32
    %372 = vector.broadcast %cst_88 : f32 to vector<2x32xf32>
    %373 = arith.addf %372, %371 : vector<2x32xf32>
    %374 = arith.divf %372, %373 : vector<2x32xf32>
    %375 = vector.extract_strided_slice %362 {offsets = [0, 64], sizes = [2, 32], strides = [1, 1]} : vector<2x128xf32> to vector<2x32xf32>
    %376 = math.tanh %375 : vector<2x32xf32>
    %377 = vector.extract_strided_slice %362 {offsets = [0, 96], sizes = [2, 32], strides = [1, 1]} : vector<2x128xf32> to vector<2x32xf32>
    %378 = arith.negf %377 : vector<2x32xf32>
    %379 = math.exp %378 : vector<2x32xf32>
    %cst_89 = arith.constant 1.000000e+00 : f32
    %380 = vector.broadcast %cst_89 : f32 to vector<2x32xf32>
    %381 = arith.addf %380, %379 : vector<2x32xf32>
    %382 = arith.divf %380, %381 : vector<2x32xf32>
    %383 = arith.mulf %374, %324 : vector<2x32xf32>
    %384 = arith.mulf %368, %376 : vector<2x32xf32>
    %385 = arith.addf %383, %384 : vector<2x32xf32>
    %386 = math.tanh %385 : vector<2x32xf32>
    %387 = arith.mulf %382, %386 : vector<2x32xf32>
    %cst_90 = arith.constant dense<0.000000e+00> : vector<2x48xf32>
    %388 = tpu.matmul %387, %26, %cst_90 {dimension_numbers = #tpu.dot_dimension_numbers<[1], [0], [0], [1], [0, 0, 1, 1], [], []>} : vector<2x32xf32>, vector<32x48xf32>, vector<2x48xf32> -> vector<2x48xf32>
    %389 = vector.extract_strided_slice %388 {offsets = [0, 0], sizes = [2, 32], strides = [1, 1]} : vector<2x48xf32> to vector<2x32xf32>
    %390 = vector.broadcast %27 : vector<1x32xf32> to vector<2x32xf32>
    %391 = arith.addf %389, %390 : vector<2x32xf32>
    %392 = vector.extract_strided_slice %388 {offsets = [0, 32], sizes = [2, 16], strides = [1, 1]} : vector<2x48xf32> to vector<2x16xf32>
    %393 = tpu.concatenate %391, %353, %28 in 1 : vector<2x32xf32>, vector<2x64xf32>, vector<2x32xf32> -> vector<2x128xf32>
    %c5 = arith.constant 5 : index
    %c0_91 = arith.constant 0 : index
    %c0_92 = arith.constant 0 : index
    %394 = vector.load %arg11[%c5, %c0_91, %c0_92] : memref<8x2x128xf32, #tpu.memory_space<vmem>>, vector<1x2x128xf32>
    %395 = vector.shape_cast %394 : vector<1x2x128xf32> to vector<2x128xf32>
    %396 = vector.shape_cast %393 : vector<2x128xf32> to vector<1x2x128xf32>
    tpu.vector_store %arg11[%c5, %c0_91, %c0_92], %396 {strides = array<i32>} : memref<8x2x128xf32, #tpu.memory_space<vmem>>, vector<1x2x128xf32>,
    %397 = vector.shape_cast %392 : vector<2x16xf32> to vector<2x1x16xf32>
    %398 = vector.broadcast %397 : vector<2x1x16xf32> to vector<2x64x16xf32>
    %399 = arith.addf %12, %398 : vector<2x64x16xf32>
    %400 = math.tanh %399 : vector<2x64x16xf32>
    %401 = vector.shape_cast %24 : vector<1x16xf32> to vector<1x1x16xf32>
    %402 = vector.broadcast %401 : vector<1x1x16xf32> to vector<2x64x16xf32>
    %403 = arith.mulf %400, %402 : vector<2x64x16xf32>
    %cst_93 = arith.constant dense<0.000000e+00> : vector<2x64xf32>
    %404 = vector.multi_reduction <add>, %403, %cst_93 [2] : vector<2x64x16xf32> to vector<2x64xf32>
    %cst_94 = arith.constant dense<0xFF800000> : vector<2xf32>
    %405 = vector.multi_reduction <maximumf>, %404, %cst_94 [1] : vector<2x64xf32> to vector<2xf32>
    %406 = vector.shape_cast %405 : vector<2xf32> to vector<2x1xf32>
    %407 = vector.broadcast %406 : vector<2x1xf32> to vector<2x64xf32>
    %408 = arith.subf %404, %407 : vector<2x64xf32>
    %409 = math.exp %408 : vector<2x64xf32>
    %cst_95 = arith.constant dense<0.000000e+00> : vector<2xf32>
    %410 = vector.multi_reduction <add>, %409, %cst_95 [1] : vector<2x64xf32> to vector<2xf32>
    %411 = vector.shape_cast %410 : vector<2xf32> to vector<2x1xf32>
    %412 = tpu.reciprocal %411 {approx = true} : vector<2x1xf32> -> vector<2x1xf32>
    %413 = vector.broadcast %412 : vector<2x1xf32> to vector<2x64xf32>
    %414 = arith.mulf %409, %413 : vector<2x64xf32>
    %415 = vector.shape_cast %414 : vector<2x64xf32> to vector<2x64x1xf32>
    %416 = vector.broadcast %415 : vector<2x64x1xf32> to vector<2x64x8xf32>
    %417 = arith.mulf %5, %416 : vector<2x64x8xf32>
    %cst_96 = arith.constant dense<0.000000e+00> : vector<2x8xf32>
    %418 = vector.multi_reduction <add>, %417, %cst_96 [1] : vector<2x64x8xf32> to vector<2x8xf32>
    %419 = tpu.concatenate %418, %387 in 1 : vector<2x8xf32>, vector<2x32xf32> -> vector<2x40xf32>
    %420 = vector.extract_strided_slice %23 {offsets = [6, 0, 0], sizes = [1, 2, 128], strides = [1, 1, 1]} : vector<8x2x128xf32> to vector<1x2x128xf32>
    %421 = vector.shape_cast %420 : vector<1x2x128xf32> to vector<2x128xf32>
    %cst_97 = arith.constant dense<0.000000e+00> : vector<2x128xf32>
    %422 = tpu.matmul %419, %25, %cst_97 {dimension_numbers = #tpu.dot_dimension_numbers<[1], [0], [0], [1], [0, 0, 1, 1], [], []>} : vector<2x40xf32>, vector<40x128xf32>, vector<2x128xf32> -> vector<2x128xf32>
    %423 = arith.addf %421, %422 : vector<2x128xf32>
    %424 = vector.extract_strided_slice %423 {offsets = [0, 0], sizes = [2, 32], strides = [1, 1]} : vector<2x128xf32> to vector<2x32xf32>
    %425 = arith.negf %424 : vector<2x32xf32>
    %426 = math.exp %425 : vector<2x32xf32>
    %cst_98 = arith.constant 1.000000e+00 : f32
    %427 = vector.broadcast %cst_98 : f32 to vector<2x32xf32>
    %428 = arith.addf %427, %426 : vector<2x32xf32>
    %429 = arith.divf %427, %428 : vector<2x32xf32>
    %430 = vector.extract_strided_slice %423 {offsets = [0, 32], sizes = [2, 32], strides = [1, 1]} : vector<2x128xf32> to vector<2x32xf32>
    %431 = arith.negf %430 : vector<2x32xf32>
    %432 = math.exp %431 : vector<2x32xf32>
    %cst_99 = arith.constant 1.000000e+00 : f32
    %433 = vector.broadcast %cst_99 : f32 to vector<2x32xf32>
    %434 = arith.addf %433, %432 : vector<2x32xf32>
    %435 = arith.divf %433, %434 : vector<2x32xf32>
    %436 = vector.extract_strided_slice %423 {offsets = [0, 64], sizes = [2, 32], strides = [1, 1]} : vector<2x128xf32> to vector<2x32xf32>
    %437 = math.tanh %436 : vector<2x32xf32>
    %438 = vector.extract_strided_slice %423 {offsets = [0, 96], sizes = [2, 32], strides = [1, 1]} : vector<2x128xf32> to vector<2x32xf32>
    %439 = arith.negf %438 : vector<2x32xf32>
    %440 = math.exp %439 : vector<2x32xf32>
    %cst_100 = arith.constant 1.000000e+00 : f32
    %441 = vector.broadcast %cst_100 : f32 to vector<2x32xf32>
    %442 = arith.addf %441, %440 : vector<2x32xf32>
    %443 = arith.divf %441, %442 : vector<2x32xf32>
    %444 = arith.mulf %435, %385 : vector<2x32xf32>
    %445 = arith.mulf %429, %437 : vector<2x32xf32>
    %446 = arith.addf %444, %445 : vector<2x32xf32>
    %447 = math.tanh %446 : vector<2x32xf32>
    %448 = arith.mulf %443, %447 : vector<2x32xf32>
    %cst_101 = arith.constant dense<0.000000e+00> : vector<2x48xf32>
    %449 = tpu.matmul %448, %26, %cst_101 {dimension_numbers = #tpu.dot_dimension_numbers<[1], [0], [0], [1], [0, 0, 1, 1], [], []>} : vector<2x32xf32>, vector<32x48xf32>, vector<2x48xf32> -> vector<2x48xf32>
    %450 = vector.extract_strided_slice %449 {offsets = [0, 0], sizes = [2, 32], strides = [1, 1]} : vector<2x48xf32> to vector<2x32xf32>
    %451 = vector.broadcast %27 : vector<1x32xf32> to vector<2x32xf32>
    %452 = arith.addf %450, %451 : vector<2x32xf32>
    %453 = vector.extract_strided_slice %449 {offsets = [0, 32], sizes = [2, 16], strides = [1, 1]} : vector<2x48xf32> to vector<2x16xf32>
    %454 = tpu.concatenate %452, %414, %28 in 1 : vector<2x32xf32>, vector<2x64xf32>, vector<2x32xf32> -> vector<2x128xf32>
    %c6 = arith.constant 6 : index
    %c0_102 = arith.constant 0 : index
    %c0_103 = arith.constant 0 : index
    %455 = vector.load %arg11[%c6, %c0_102, %c0_103] : memref<8x2x128xf32, #tpu.memory_space<vmem>>, vector<1x2x128xf32>
    %456 = vector.shape_cast %455 : vector<1x2x128xf32> to vector<2x128xf32>
    %457 = vector.shape_cast %454 : vector<2x128xf32> to vector<1x2x128xf32>
    tpu.vector_store %arg11[%c6, %c0_102, %c0_103], %457 {strides = array<i32>} : memref<8x2x128xf32, #tpu.memory_space<vmem>>, vector<1x2x128xf32>,
    %458 = vector.shape_cast %453 : vector<2x16xf32> to vector<2x1x16xf32>
    %459 = vector.broadcast %458 : vector<2x1x16xf32> to vector<2x64x16xf32>
    %460 = arith.addf %12, %459 : vector<2x64x16xf32>
    %461 = math.tanh %460 : vector<2x64x16xf32>
    %462 = vector.shape_cast %24 : vector<1x16xf32> to vector<1x1x16xf32>
    %463 = vector.broadcast %462 : vector<1x1x16xf32> to vector<2x64x16xf32>
    %464 = arith.mulf %461, %463 : vector<2x64x16xf32>
    %cst_104 = arith.constant dense<0.000000e+00> : vector<2x64xf32>
    %465 = vector.multi_reduction <add>, %464, %cst_104 [2] : vector<2x64x16xf32> to vector<2x64xf32>
    %cst_105 = arith.constant dense<0xFF800000> : vector<2xf32>
    %466 = vector.multi_reduction <maximumf>, %465, %cst_105 [1] : vector<2x64xf32> to vector<2xf32>
    %467 = vector.shape_cast %466 : vector<2xf32> to vector<2x1xf32>
    %468 = vector.broadcast %467 : vector<2x1xf32> to vector<2x64xf32>
    %469 = arith.subf %465, %468 : vector<2x64xf32>
    %470 = math.exp %469 : vector<2x64xf32>
    %cst_106 = arith.constant dense<0.000000e+00> : vector<2xf32>
    %471 = vector.multi_reduction <add>, %470, %cst_106 [1] : vector<2x64xf32> to vector<2xf32>
    %472 = vector.shape_cast %471 : vector<2xf32> to vector<2x1xf32>
    %473 = tpu.reciprocal %472 {approx = true} : vector<2x1xf32> -> vector<2x1xf32>
    %474 = vector.broadcast %473 : vector<2x1xf32> to vector<2x64xf32>
    %475 = arith.mulf %470, %474 : vector<2x64xf32>
    %476 = vector.shape_cast %475 : vector<2x64xf32> to vector<2x64x1xf32>
    %477 = vector.broadcast %476 : vector<2x64x1xf32> to vector<2x64x8xf32>
    %478 = arith.mulf %5, %477 : vector<2x64x8xf32>
    %cst_107 = arith.constant dense<0.000000e+00> : vector<2x8xf32>
    %479 = vector.multi_reduction <add>, %478, %cst_107 [1] : vector<2x64x8xf32> to vector<2x8xf32>
    %480 = tpu.concatenate %479, %448 in 1 : vector<2x8xf32>, vector<2x32xf32> -> vector<2x40xf32>
    %481 = vector.extract_strided_slice %23 {offsets = [7, 0, 0], sizes = [1, 2, 128], strides = [1, 1, 1]} : vector<8x2x128xf32> to vector<1x2x128xf32>
    %482 = vector.shape_cast %481 : vector<1x2x128xf32> to vector<2x128xf32>
    %cst_108 = arith.constant dense<0.000000e+00> : vector<2x128xf32>
    %483 = tpu.matmul %480, %25, %cst_108 {dimension_numbers = #tpu.dot_dimension_numbers<[1], [0], [0], [1], [0, 0, 1, 1], [], []>} : vector<2x40xf32>, vector<40x128xf32>, vector<2x128xf32> -> vector<2x128xf32>
    %484 = arith.addf %482, %483 : vector<2x128xf32>
    %485 = vector.extract_strided_slice %484 {offsets = [0, 0], sizes = [2, 32], strides = [1, 1]} : vector<2x128xf32> to vector<2x32xf32>
    %486 = arith.negf %485 : vector<2x32xf32>
    %487 = math.exp %486 : vector<2x32xf32>
    %cst_109 = arith.constant 1.000000e+00 : f32
    %488 = vector.broadcast %cst_109 : f32 to vector<2x32xf32>
    %489 = arith.addf %488, %487 : vector<2x32xf32>
    %490 = arith.divf %488, %489 : vector<2x32xf32>
    %491 = vector.extract_strided_slice %484 {offsets = [0, 32], sizes = [2, 32], strides = [1, 1]} : vector<2x128xf32> to vector<2x32xf32>
    %492 = arith.negf %491 : vector<2x32xf32>
    %493 = math.exp %492 : vector<2x32xf32>
    %cst_110 = arith.constant 1.000000e+00 : f32
    %494 = vector.broadcast %cst_110 : f32 to vector<2x32xf32>
    %495 = arith.addf %494, %493 : vector<2x32xf32>
    %496 = arith.divf %494, %495 : vector<2x32xf32>
    %497 = vector.extract_strided_slice %484 {offsets = [0, 64], sizes = [2, 32], strides = [1, 1]} : vector<2x128xf32> to vector<2x32xf32>
    %498 = math.tanh %497 : vector<2x32xf32>
    %499 = vector.extract_strided_slice %484 {offsets = [0, 96], sizes = [2, 32], strides = [1, 1]} : vector<2x128xf32> to vector<2x32xf32>
    %500 = arith.negf %499 : vector<2x32xf32>
    %501 = math.exp %500 : vector<2x32xf32>
    %cst_111 = arith.constant 1.000000e+00 : f32
    %502 = vector.broadcast %cst_111 : f32 to vector<2x32xf32>
    %503 = arith.addf %502, %501 : vector<2x32xf32>
    %504 = arith.divf %502, %503 : vector<2x32xf32>
    %505 = arith.mulf %496, %446 : vector<2x32xf32>
    %506 = arith.mulf %490, %498 : vector<2x32xf32>
    %507 = arith.addf %505, %506 : vector<2x32xf32>
    %508 = math.tanh %507 : vector<2x32xf32>
    %509 = arith.mulf %504, %508 : vector<2x32xf32>
    %cst_112 = arith.constant dense<0.000000e+00> : vector<2x48xf32>
    %510 = tpu.matmul %509, %26, %cst_112 {dimension_numbers = #tpu.dot_dimension_numbers<[1], [0], [0], [1], [0, 0, 1, 1], [], []>} : vector<2x32xf32>, vector<32x48xf32>, vector<2x48xf32> -> vector<2x48xf32>
    %511 = vector.extract_strided_slice %510 {offsets = [0, 0], sizes = [2, 32], strides = [1, 1]} : vector<2x48xf32> to vector<2x32xf32>
    %512 = vector.broadcast %27 : vector<1x32xf32> to vector<2x32xf32>
    %513 = arith.addf %511, %512 : vector<2x32xf32>
    %514 = tpu.concatenate %513, %475, %28 in 1 : vector<2x32xf32>, vector<2x64xf32>, vector<2x32xf32> -> vector<2x128xf32>
    %c7 = arith.constant 7 : index
    %c0_113 = arith.constant 0 : index
    %c0_114 = arith.constant 0 : index
    %515 = vector.load %arg11[%c7, %c0_113, %c0_114] : memref<8x2x128xf32, #tpu.memory_space<vmem>>, vector<1x2x128xf32>
    %516 = vector.shape_cast %515 : vector<1x2x128xf32> to vector<2x128xf32>
    %517 = vector.shape_cast %514 : vector<2x128xf32> to vector<1x2x128xf32>
    tpu.vector_store %arg11[%c7, %c0_113, %c0_114], %517 {strides = array<i32>} : memref<8x2x128xf32, #tpu.memory_space<vmem>>, vector<1x2x128xf32>,
    return
  }
  func.func @transform_0(%arg0: i32) -> (i32, i32) {
    %c0_i32 = arith.constant 0 : i32
    %c0_i32_0 = arith.constant 0 : i32
    %c0_i32_1 = arith.constant 0 : i32
    return %c0_i32, %c0_i32_0 : i32, i32
  }
  func.func @transform_1(%arg0: i32) -> (i32, i32) {
    %c0_i32 = arith.constant 0 : i32
    %c0_i32_0 = arith.constant 0 : i32
    %c0_i32_1 = arith.constant 0 : i32
    return %c0_i32, %c0_i32_0 : i32, i32
  }
  func.func @transform_2(%arg0: i32) -> (i32, i32) {
    %c0_i32 = arith.constant 0 : i32
    %c0_i32_0 = arith.constant 0 : i32
    %c0_i32_1 = arith.constant 0 : i32
    return %c0_i32, %c0_i32_0 : i32, i32
  }
  func.func @transform_3(%arg0: i32) -> (i32, i32) {
    %c0_i32 = arith.constant 0 : i32
    %c0_i32_0 = arith.constant 0 : i32
    %c0_i32_1 = arith.constant 0 : i32
    return %c0_i32, %c0_i32_0 : i32, i32
  }
  func.func @transform_4(%arg0: i32) -> (i32, i32) {
    %c0_i32 = arith.constant 0 : i32
    %c0_i32_0 = arith.constant 0 : i32
    %c0_i32_1 = arith.constant 0 : i32
    return %c0_i32, %c0_i32_0 : i32, i32
  }
  func.func @transform_5(%arg0: i32) -> (i32, i32) {
    %c0_i32 = arith.constant 0 : i32
    %c0_i32_0 = arith.constant 0 : i32
    %c0_i32_1 = arith.constant 0 : i32
    return %c0_i32, %c0_i32_0 : i32, i32
  }
  func.func @transform_6(%arg0: i32) -> (i32, i32) {
    %c0_i32 = arith.constant 0 : i32
    %c0_i32_0 = arith.constant 0 : i32
    %c0_i32_1 = arith.constant 0 : i32
    return %c0_i32, %c0_i32_0 : i32, i32
  }
  func.func @transform_7(%arg0: i32) -> (i32, i32) {
    %c0_i32 = arith.constant 0 : i32
    %c0_i32_0 = arith.constant 0 : i32
    %c0_i32_1 = arith.constant 0 : i32
    return %c0_i32, %c0_i32_0 : i32, i32
  }
  func.func @transform_8(%arg0: i32) -> (i32, i32) {
    %c0_i32 = arith.constant 0 : i32
    %c0_i32_0 = arith.constant 0 : i32
    %c0_i32_1 = arith.constant 0 : i32
    return %c0_i32, %c0_i32_0 : i32, i32
  }
  func.func @transform_9(%arg0: i32) -> (i32, i32) {
    %c0_i32 = arith.constant 0 : i32
    %c0_i32_0 = arith.constant 0 : i32
    %c0_i32_1 = arith.constant 0 : i32
    return %c0_i32, %c0_i32_0 : i32, i32
  }
  func.func @transform_10(%arg0: i32) -> (i32, i32, i32) {
    %c0_i32 = arith.constant 0 : i32
    %c0_i32_0 = arith.constant 0 : i32
    %c0_i32_1 = arith.constant 0 : i32
    %c0_i32_2 = arith.constant 0 : i32
    return %c0_i32, %c0_i32_0, %c0_i32_1 : i32, i32, i32
  }
}

</mosaic_0001>

<llo_original>
// kernel: attention_decoder_forward.1
$region0: #{attention_decoder_forward.1}
  #allocation0 [shape = 'u32[]', space=smem, size = 0x4, offset = 0x4, fixed_abs, tag = 'smem constant byte address 0x4 - core index']
  #allocation1 [shape = 'u32[72,128]{1,0:T(1,128)}', space=vmem, size = 0x9000, scoped, tag = 'internal scratch']
  %s0 = inlined_call_operand.vmem [shape: f32[128,10], index: 0, kind: input, shape index: {}]
  %s1 = inlined_call_operand.vmem [shape: f32[10,8], index: 1, kind: input, shape index: {}]
  %s2 = inlined_call_operand.vmem [shape: f32[16,17], index: 2, kind: input, shape index: {}]
  %s3 = inlined_call_operand.vmem [shape: f32[8,80], index: 3, kind: input, shape index: {}]
  %s4 = inlined_call_operand.vmem [shape: f32[1,80], index: 4, kind: input, shape index: {}]
  %s5 = inlined_call_operand.vmem [shape: f32[1,16], index: 5, kind: input, shape index: {}]
  %s6 = inlined_call_operand.vmem [shape: f32[17,128], index: 6, kind: input, shape index: {}]
  %s7 = inlined_call_operand.vmem [shape: f32[40,128], index: 7, kind: input, shape index: {}]
  %s8 = inlined_call_operand.vmem [shape: f32[32,48], index: 8, kind: input, shape index: {}]
  %s9 = inlined_call_operand.vmem [shape: f32[1,32], index: 9, kind: input, shape index: {}]
  %s10 = inlined_call_operand.vmem [shape: f32[8,2,128], index: 10, kind: output, shape index: {}]
  %s11 = sld [smem:[#allocation0]]
  $region50: #{attention_decoder_forward.1} parent=0
    _
  %s13 = ssub.s32 1, %s11
  %s14 = scalar_select 0, %s13, %s11
  // Predicated region
  $region2: #{attention_decoder_forward.1} parent=0 // pred_check
    _
  $region3: #{attention_decoder_forward.1} parent=0 // pred_check_branch
    %16 = sbr.rel (0) target = $region5
  $region4: #{attention_decoder_forward.1} parent=0 // pred_region
    _
  $region5: #{attention_decoder_forward.1} parent=0 // pred_fallthru
    _
  // Predicated region
  $region6: #{attention_decoder_forward.1} parent=0 // pred_check
    _
  $region7: #{attention_decoder_forward.1} parent=0 // pred_check_branch
    %18 = sbr.rel (0) target = $region9
  $region8: #{attention_decoder_forward.1} parent=0 // pred_region
    _
  $region9: #{attention_decoder_forward.1} parent=0 // pred_fallthru
    _
  // Predicated region
  $region10: #{attention_decoder_forward.1} parent=0 // pred_check
    _
  $region11: #{attention_decoder_forward.1} parent=0 // pred_check_branch
    %20 = sbr.rel (0) target = $region13
  $region12: #{attention_decoder_forward.1} parent=0 // pred_region
    _
  $region13: #{attention_decoder_forward.1} parent=0 // pred_fallthru
    _
  // Predicated region
  $region14: #{attention_decoder_forward.1} parent=0 // pred_check
    _
  $region15: #{attention_decoder_forward.1} parent=0 // pred_check_branch
    %22 = sbr.rel (0) target = $region17
  $region16: #{attention_decoder_forward.1} parent=0 // pred_region
    _
  $region17: #{attention_decoder_forward.1} parent=0 // pred_fallthru
    _
  // Predicated region
  $region18: #{attention_decoder_forward.1} parent=0 // pred_check
    _
  $region19: #{attention_decoder_forward.1} parent=0 // pred_check_branch
    %24 = sbr.rel (0) target = $region21
  $region20: #{attention_decoder_forward.1} parent=0 // pred_region
    _
  $region21: #{attention_decoder_forward.1} parent=0 // pred_fallthru
    _
  // Predicated region
  $region22: #{attention_decoder_forward.1} parent=0 // pred_check
    _
  $region23: #{attention_decoder_forward.1} parent=0 // pred_check_branch
    %26 = sbr.rel (0) target = $region25
  $region24: #{attention_decoder_forward.1} parent=0 // pred_region
    _
  $region25: #{attention_decoder_forward.1} parent=0 // pred_fallthru
    _
  // Predicated region
  $region26: #{attention_decoder_forward.1} parent=0 // pred_check
    _
  $region27: #{attention_decoder_forward.1} parent=0 // pred_check_branch
    %28 = sbr.rel (0) target = $region29
  $region28: #{attention_decoder_forward.1} parent=0 // pred_region
    _
  $region29: #{attention_decoder_forward.1} parent=0 // pred_fallthru
    _
  // Predicated region
  $region30: #{attention_decoder_forward.1} parent=0 // pred_check
    _
  $region31: #{attention_decoder_forward.1} parent=0 // pred_check_branch
    %30 = sbr.rel (0) target = $region33
  $region32: #{attention_decoder_forward.1} parent=0 // pred_region
    _
  $region33: #{attention_decoder_forward.1} parent=0 // pred_fallthru
    _
  // Predicated region
  $region34: #{attention_decoder_forward.1} parent=0 // pred_check
    _
  $region35: #{attention_decoder_forward.1} parent=0 // pred_check_branch
    %32 = sbr.rel (0) target = $region37
  $region36: #{attention_decoder_forward.1} parent=0 // pred_region
    _
  $region37: #{attention_decoder_forward.1} parent=0 // pred_fallthru
    _
  // Predicated region
  $region38: #{attention_decoder_forward.1} parent=0 // pred_check
    _
  $region39: #{attention_decoder_forward.1} parent=0 // pred_check_branch
    %34 = sbr.rel (0) target = $region41
  $region40: #{attention_decoder_forward.1} parent=0 // pred_region
    _
  $region41: #{attention_decoder_forward.1} parent=0 // pred_fallthru
    _
  %v35 = vld [vmem:[%s0] sm:$0xff]
  %v36 = vld [vmem:[%s0 + $0x8] sm:$0xff]
  %v37 = vld [vmem:[%s0 + $0x10] sm:$0xff]
  %v38 = vld [vmem:[%s0 + $0x18] sm:$0xff]
  %v39 = vld [vmem:[%s0 + $0x20] sm:$0xff]
  %v40 = vld [vmem:[%s0 + $0x28] sm:$0xff]
  %v41 = vld [vmem:[%s0 + $0x30] sm:$0xff]
  %v42 = vld [vmem:[%s0 + $0x38] sm:$0xff]
  %v43 = vld [vmem:[%s0 + $0x40] sm:$0xff]
  %v44 = vld [vmem:[%s0 + $0x48] sm:$0xff]
  %v45 = vld [vmem:[%s0 + $0x50] sm:$0xff]
  %v46 = vld [vmem:[%s0 + $0x58] sm:$0xff]
  %v47 = vld [vmem:[%s0 + $0x60] sm:$0xff]
  %v48 = vld [vmem:[%s0 + $0x68] sm:$0xff]
  %v49 = vld [vmem:[%s0 + $0x70] sm:$0xff]
  %v50 = vld [vmem:[%s0 + $0x78] sm:$0xff]
  %v51 = vld [vmem:[%s1] sm:$0xff]
  %v52 = vld [vmem:[%s1 + $0x8] sm:$0x3]
  %vm53 = vcmask 80896
  %v55 = vsel %vm53, %v35, 0
  %v58 = vsel %vm53, %v36, 0
  %v61 = vsel %vm53, %v37, 0
  %v64 = vsel %vm53, %v38, 0
  %v67 = vsel %vm53, %v39, 0
  %v70 = vsel %vm53, %v40, 0
  %v73 = vsel %vm53, %v41, 0
  %v76 = vsel %vm53, %v42, 0
  %v79 = vsel %vm53, %v43, 0
  %v82 = vsel %vm53, %v44, 0
  %v85 = vsel %vm53, %v45, 0
  %v88 = vsel %vm53, %v46, 0
  %v91 = vsel %vm53, %v47, 0
  %v94 = vsel %vm53, %v48, 0
  %v97 = vsel %vm53, %v49, 0
  %v100 = vsel %vm53, %v50, 0
  %vm102 = vcmask 1041408
  %v104 = vsel %vm102, %v52, 0
  %106 = vmatpush.msra.mxu0 0.0
  %107 = vmatpush.msra.mxu0 0.0
  %108 = vmatpush.msra.mxu0 0.0
  %109 = vmatpush.msra.mxu0 0.0
  %110 = vmatpush.msra.mxu0 0.0
  %111 = vmatpush.msra.mxu0 0.0
  %112 = vmatpush.msra.mxu0 0.0
  %113 = vmatpush.msra.mxu0 0.0
  %114 = vmatpush.msra.mxu0 0.0
  %115 = vmatpush.msra.mxu0 0.0
  %116 = vmatpush.msra.mxu0 0.0
  %117 = vmatpush.msra.mxu0 0.0
  %118 = vmatpush.msra.mxu0 0.0
  %119 = vmatpush.msra.mxu0 0.0
  %120 = vmatpush.msra.mxu0 %v104
  %121 = vmatpush.msra.mxu0 %v51
  %122 = vmatmul.f32.gmra.mxu0 %v55
  %v123 = vpop.f32.mrf.mxu0
  %v124 = vadd.f32 0.0, %v123
  %125 = vmatmul.f32.gmra.mxu0 %v58
  %v126 = vpop.f32.mrf.mxu0
  %v127 = vadd.f32 0.0, %v126
  %128 = vmatmul.f32.gmra.mxu0 %v61
  %v129 = vpop.f32.mrf.mxu0
  %v130 = vadd.f32 0.0, %v129
  %131 = vmatmul.f32.gmra.mxu0 %v64
  %v132 = vpop.f32.mrf.mxu0
  %v133 = vadd.f32 0.0, %v132
  %134 = vmatmul.f32.gmra.mxu0 %v67
  %v135 = vpop.f32.mrf.mxu0
  %v136 = vadd.f32 0.0, %v135
  %137 = vmatmul.f32.gmra.mxu0 %v70
  %v138 = vpop.f32.mrf.mxu0
  %v139 = vadd.f32 0.0, %v138
  %140 = vmatmul.f32.gmra.mxu0 %v73
  %v141 = vpop.f32.mrf.mxu0
  %v142 = vadd.f32 0.0, %v141
  %143 = vmatmul.f32.gmra.mxu0 %v76
  %v144 = vpop.f32.mrf.mxu0
  %v145 = vadd.f32 0.0, %v144
  %146 = vmatmul.f32.gmra.mxu0 %v79
  %v147 = vpop.f32.mrf.mxu0
  %v148 = vadd.f32 0.0, %v147
  %149 = vmatmul.f32.gmra.mxu0 %v82
  %v150 = vpop.f32.mrf.mxu0
  %v151 = vadd.f32 0.0, %v150
  %152 = vmatmul.f32.gmra.mxu0 %v85
  %v153 = vpop.f32.mrf.mxu0
  %v154 = vadd.f32 0.0, %v153
  %155 = vmatmul.f32.gmra.mxu0 %v88
  %v156 = vpop.f32.mrf.mxu0
  %v157 = vadd.f32 0.0, %v156
  %158 = vmatmul.f32.gmra.mxu0 %v91
  %v159 = vpop.f32.mrf.mxu0
  %v160 = vadd.f32 0.0, %v159
  %161 = vmatmul.f32.gmra.mxu0 %v94
  %v162 = vpop.f32.mrf.mxu0
  %v163 = vadd.f32 0.0, %v162
  %164 = vmatmul.f32.gmra.mxu0 %v97
  %v165 = vpop.f32.mrf.mxu0
  %v166 = vadd.f32 0.0, %v165
  %167 = vmatmul.f32.gmra.mxu0 %v100
  %v168 = vpop.f32.mrf.mxu0
  %v169 = vadd.f32 0.0, %v168
  %170 = vdwg.mxu0
  %v171 = vmax.f32 %v124, 0.0
  %v172 = vmax.f32 %v127, 0.0
  %v173 = vmax.f32 %v130, 0.0
  %v174 = vmax.f32 %v133, 0.0
  %v175 = vmax.f32 %v136, 0.0
  %v176 = vmax.f32 %v139, 0.0
  %v177 = vmax.f32 %v142, 0.0
  %v178 = vmax.f32 %v145, 0.0
  %v179 = vmax.f32 %v148, 0.0
  %v180 = vmax.f32 %v151, 0.0
  %v181 = vmax.f32 %v154, 0.0
  %v182 = vmax.f32 %v157, 0.0
  %v183 = vmax.f32 %v160, 0.0
  %v184 = vmax.f32 %v163, 0.0
  %v185 = vmax.f32 %v166, 0.0
  %v186 = vmax.f32 %v169, 0.0
  %v187 = vld [vmem:[%s3] sm:$0xff]
  %v188 = vld [vmem:[%s4] sm:$0x1]
  %v190 = vperm.slane %v188, 0
  %vm192 = vcmask 64512
  %v194 = vsel %vm192, %v171, 0
  %v197 = vsel %vm192, %v172, 0
  %v200 = vsel %vm192, %v173, 0
  %v203 = vsel %vm192, %v174, 0
  %v206 = vsel %vm192, %v175, 0
  %v209 = vsel %vm192, %v176, 0
  %v212 = vsel %vm192, %v177, 0
  %v215 = vsel %vm192, %v178, 0
  %v218 = vsel %vm192, %v179, 0
  %v221 = vsel %vm192, %v180, 0
  %v224 = vsel %vm192, %v181, 0
  %v227 = vsel %vm192, %v182, 0
  %v230 = vsel %vm192, %v183, 0
  %v233 = vsel %vm192, %v184, 0
  %v236 = vsel %vm192, %v185, 0
  %v239 = vsel %vm192, %v186, 0
  %241 = vmatpush.msra.mxu0 0.0
  %242 = vmatpush.msra.mxu0 0.0
  %243 = vmatpush.msra.mxu0 0.0
  %244 = vmatpush.msra.mxu0 0.0
  %245 = vmatpush.msra.mxu0 0.0
  %246 = vmatpush.msra.mxu0 0.0
  %247 = vmatpush.msra.mxu0 0.0
  %248 = vmatpush.msra.mxu0 0.0
  %249 = vmatpush.msra.mxu0 0.0
  %250 = vmatpush.msra.mxu0 0.0
  %251 = vmatpush.msra.mxu0 0.0
  %252 = vmatpush.msra.mxu0 0.0
  %253 = vmatpush.msra.mxu0 0.0
  %254 = vmatpush.msra.mxu0 0.0
  %255 = vmatpush.msra.mxu0 0.0
  %256 = vmatpush.msra.mxu0 %v187
  %257 = vmatmul.f32.gmra.mxu0 %v194
  %v258 = vpop.f32.mrf.mxu0
  %v259 = vadd.f32 %v190, %v258
  %260 = vmatmul.f32.gmra.mxu0 %v197
  %v261 = vpop.f32.mrf.mxu0
  %v262 = vadd.f32 %v190, %v261
  %263 = vmatmul.f32.gmra.mxu0 %v200
  %v264 = vpop.f32.mrf.mxu0
  %v265 = vadd.f32 %v190, %v264
  %266 = vmatmul.f32.gmra.mxu0 %v203
  %v267 = vpop.f32.mrf.mxu0
  %v268 = vadd.f32 %v190, %v267
  %269 = vmatmul.f32.gmra.mxu0 %v206
  %v270 = vpop.f32.mrf.mxu0
  %v271 = vadd.f32 %v190, %v270
  %272 = vmatmul.f32.gmra.mxu0 %v209
  %v273 = vpop.f32.mrf.mxu0
  %v274 = vadd.f32 %v190, %v273
  %275 = vmatmul.f32.gmra.mxu0 %v212
  %v276 = vpop.f32.mrf.mxu0
  %v277 = vadd.f32 %v190, %v276
  %278 = vmatmul.f32.gmra.mxu0 %v215
  %v279 = vpop.f32.mrf.mxu0
  %v280 = vadd.f32 %v190, %v279
  %281 = vmatmul.f32.gmra.mxu0 %v218
  %v282 = vpop.f32.mrf.mxu0
  %v283 = vadd.f32 %v190, %v282
  %284 = vmatmul.f32.gmra.mxu0 %v221
  %v285 = vpop.f32.mrf.mxu0
  %v286 = vadd.f32 %v190, %v285
  %287 = vmatmul.f32.gmra.mxu0 %v224
  %v288 = vpop.f32.mrf.mxu0
  %v289 = vadd.f32 %v190, %v288
  %290 = vmatmul.f32.gmra.mxu0 %v227
  %v291 = vpop.f32.mrf.mxu0
  %v292 = vadd.f32 %v190, %v291
  %293 = vmatmul.f32.gmra.mxu0 %v230
  %v294 = vpop.f32.mrf.mxu0
  %v295 = vadd.f32 %v190, %v294
  %296 = vmatmul.f32.gmra.mxu0 %v233
  %v297 = vpop.f32.mrf.mxu0
  %v298 = vadd.f32 %v190, %v297
  %299 = vmatmul.f32.gmra.mxu0 %v236
  %v300 = vpop.f32.mrf.mxu0
  %v301 = vadd.f32 %v190, %v300
  %302 = vmatmul.f32.gmra.mxu0 %v239
  %v303 = vpop.f32.mrf.mxu0
  %v304 = vadd.f32 %v190, %v303
  %305 = vdwg.mxu0
  %vm306 = vcmask 654464
  %v307 = vsel %vm306, %v259, 0.0
  %v308 = vsel %vm306, %v262, 0.0
  %v309 = vadd.f32 %v307, %v308
  %v310 = vsel %vm306, %v265, 0.0
  %v311 = vadd.f32 %v309, %v310
  %v312 = vsel %vm306, %v268, 0.0
  %v313 = vadd.f32 %v311, %v312
  %v314 = vsel %vm306, %v271, 0.0
  %v315 = vadd.f32 %v313, %v314
  %v316 = vsel %vm306, %v274, 0.0
  %v317 = vadd.f32 %v315, %v316
  %v318 = vsel %vm306, %v277, 0.0
  %v319 = vadd.f32 %v317, %v318
  %v320 = vsel %vm306, %v280, 0.0
  %v321 = vadd.f32 %v319, %v320
  %v322 = vrot.slane %v321, 4
  %v323 = vadd.f32 %v321, %v322
  %v324 = vrot.slane %v323, 2
  %v325 = vadd.f32 %v323, %v324
  %v326 = vrot.slane %v325, 1
  %v327 = vadd.f32 %v325, %v326
  %v328 = vsel %vm306, %v283, 0.0
  %v329 = vsel %vm306, %v286, 0.0
  %v330 = vadd.f32 %v328, %v329
  %v331 = vsel %vm306, %v289, 0.0
  %v332 = vadd.f32 %v330, %v331
  %v333 = vsel %vm306, %v292, 0.0
  %v334 = vadd.f32 %v332, %v333
  %v335 = vsel %vm306, %v295, 0.0
  %v336 = vadd.f32 %v334, %v335
  %v337 = vsel %vm306, %v298, 0.0
  %v338 = vadd.f32 %v336, %v337
  %v339 = vsel %vm306, %v301, 0.0
  %v340 = vadd.f32 %v338, %v339
  %v341 = vsel %vm306, %v304, 0.0
  %v342 = vadd.f32 %v340, %v341
  %v343 = vrot.slane %v342, 4
  %v344 = vadd.f32 %v342, %v343
  %v345 = vrot.slane %v344, 2
  %v346 = vadd.f32 %v344, %v345
  %v347 = vrot.slane %v346, 1
  %v348 = vadd.f32 %v346, %v347
  %v349 = vrcp.pop 64.0
  %v350 = vmul.f32 64.0, %v349
  %v351 = vsub.f32 1.0, %v350
  %v352 = vmul.f32 %v349, %v351
  %v353 = vadd.f32 %v349, %v352
  %vm354 = vweird.f32 %v349
  %v355 = vsel %vm354, %v349, %v353
  %v356 = vmul.f32 %v327, %v355
  %v357 = vmul.f32 %v348, %v355
  %v358 = vld [vmem:[%s2] sm:$0xff]
  %v359 = vld [vmem:[%s2 + $0x8] sm:$0xff]
  %v360 = vld [vmem:[%s6] sm:$0xff]
  %v361 = vld [vmem:[%s6 + $0x8] sm:$0xff]
  %v362 = vld [vmem:[%s6 + $0x10] sm:$0x1]
  %vm363 = vcmask 138240
  %v365 = vsel %vm363, %v358, 0
  %v368 = vsel %vm363, %v359, 0
  %vm370 = vcmask 1040384
  %v372 = vsel %vm370, %v362, 0
  %374 = vmatpush.msra.mxu0 0.0
  %375 = vmatpush.msra.mxu0 0.0
  %376 = vmatpush.msra.mxu0 0.0
  %377 = vmatpush.msra.mxu0 0.0
  %378 = vmatpush.msra.mxu0 0.0
  %379 = vmatpush.msra.mxu0 0.0
  %380 = vmatpush.msra.mxu0 0.0
  %381 = vmatpush.msra.mxu0 0.0
  %382 = vmatpush.msra.mxu0 0.0
  %383 = vmatpush.msra.mxu0 0.0
  %384 = vmatpush.msra.mxu0 0.0
  %385 = vmatpush.msra.mxu0 0.0
  %386 = vmatpush.msra.mxu0 0.0
  %387 = vmatpush.msra.mxu0 %v372
  %388 = vmatpush.msra.mxu0 %v361
  %389 = vmatpush.msra.mxu0 %v360
  %390 = vmatmul.f32.gmra.mxu0 %v365
  %v391 = vpop.f32.mrf.mxu0
  %v392 = vadd.f32 0.0, %v391
  %393 = vmatmul.f32.gmra.mxu0 %v368
  %v394 = vpop.f32.mrf.mxu0
  %v395 = vadd.f32 0.0, %v394
  %396 = vdwg.mxu0
  %v399 = vrot.slane %v392, 2
  %v400 = vrot.slane %v392, 4
  %v401 = vrot.slane %v392, 6
  %v402 = vrot.slane %v395, 2
  %v403 = vrot.slane %v395, 4
  %v404 = vrot.slane %v395, 6
  %v411 = vld [vmem:[%s5] sm:$0x1]
  %v412 = vld [vmem:[%s7] sm:$0xff]
  %v413 = vld [vmem:[%s7 + $0x8] sm:$0xff]
  %v414 = vld [vmem:[%s7 + $0x10] sm:$0xff]
  %v415 = vld [vmem:[%s7 + $0x18] sm:$0xff]
  %v416 = vld [vmem:[%s7 + $0x20] sm:$0xff]
  %v417 = vld [vmem:[%s8] sm:$0xff]
  %v418 = vld [vmem:[%s8 + $0x8] sm:$0xff]
  %v419 = vld [vmem:[%s8 + $0x10] sm:$0xff]
  %v420 = vld [vmem:[%s8 + $0x18] sm:$0xff]
  %v421 = vld [vmem:[%s9] sm:$0x1]
  %vm424 = vcmask 1041409
  %v425 = vsel %vm424, %v357, %v356
  %426 = vrot.lane.b32.xlu0 %v425, 112
  %v427 = vpop.permute.xlu0 %426
  %vm428 = vcmask 261120
  %v429 = vsel %vm428, %v427, 0
  %431 = vmatpush.msra.mxu0 0.0
  %432 = vmatpush.msra.mxu0 0.0
  %433 = vmatpush.msra.mxu0 0.0
  %434 = vmatpush.msra.mxu0 0.0
  %435 = vmatpush.msra.mxu0 0.0
  %436 = vmatpush.msra.mxu0 0.0
  %437 = vmatpush.msra.mxu0 0.0
  %438 = vmatpush.msra.mxu0 0.0
  %439 = vmatpush.msra.mxu0 0.0
  %440 = vmatpush.msra.mxu0 0.0
  %441 = vmatpush.msra.mxu0 0.0
  %442 = vmatpush.msra.mxu0 0.0
  %443 = vmatpush.msra.mxu0 %v420
  %444 = vmatpush.msra.mxu0 %v419
  %445 = vmatpush.msra.mxu0 %v418
  %446 = vmatpush.msra.mxu0 %v417
  %447 = vmatmul.f32.gmra.mxu0 %v429
  %v448 = vpop.f32.mrf.mxu0
  %v449 = vadd.f32 0.0, %v448
  %450 = vdwg.mxu0
  %v452 = vrot.slane %v449, 1
  %v453 = vperm.slane %v449, 0
  %v454 = vperm.slane %v452, 0
  %455 = vrot.lane.b32.xlu0 %v453, 96
  %v456 = vpop.permute.xlu0 %455
  %457 = vrot.lane.b32.xlu0 %v454, 96
  %v458 = vpop.permute.xlu0 %457
  %v461 = vadd.f32 %v259, %v456
  %v462 = vadd.f32 %v262, %v456
  %v463 = vadd.f32 %v265, %v456
  %v464 = vadd.f32 %v268, %v456
  %v465 = vadd.f32 %v271, %v456
  %v466 = vadd.f32 %v274, %v456
  %v467 = vadd.f32 %v277, %v456
  %v468 = vadd.f32 %v280, %v456
  %v469 = vadd.f32 %v283, %v458
  %v470 = vadd.f32 %v286, %v458
  %v471 = vadd.f32 %v289, %v458
  %v472 = vadd.f32 %v292, %v458
  %v473 = vadd.f32 %v295, %v458
  %v474 = vadd.f32 %v298, %v458
  %v475 = vadd.f32 %v301, %v458
  %v476 = vadd.f32 %v304, %v458
  %v477 = vtanh.pop %v461
  %v478 = vtanh.pop %v462
  %v479 = vtanh.pop %v463
  %v480 = vtanh.pop %v464
  %v481 = vtanh.pop %v465
  %v482 = vtanh.pop %v466
  %v483 = vtanh.pop %v467
  %v484 = vtanh.pop %v468
  %v485 = vtanh.pop %v469
  %v486 = vtanh.pop %v470
  %v487 = vtanh.pop %v471
  %v488 = vtanh.pop %v472
  %v489 = vtanh.pop %v473
  %v490 = vtanh.pop %v474
  %v491 = vtanh.pop %v475
  %v492 = vtanh.pop %v476
  %v494 = vperm.slane %v411, 0
  %v496 = vmul.f32 %v477, %v494
  %v497 = vmul.f32 %v478, %v494
  %v498 = vmul.f32 %v479, %v494
  %v499 = vmul.f32 %v480, %v494
  %v500 = vmul.f32 %v481, %v494
  %v501 = vmul.f32 %v482, %v494
  %v502 = vmul.f32 %v483, %v494
  %v503 = vmul.f32 %v484, %v494
  %v504 = vmul.f32 %v485, %v494
  %v505 = vmul.f32 %v486, %v494
  %v506 = vmul.f32 %v487, %v494
  %v507 = vmul.f32 %v488, %v494
  %v508 = vmul.f32 %v489, %v494
  %v509 = vmul.f32 %v490, %v494
  %v510 = vmul.f32 %v491, %v494
  %v511 = vmul.f32 %v492, %v494
  %vm512 = vcmask 130048
  %v513 = vsel %vm512, %v496, 0.0
  %514 = vadd.xlane.f32.xlu0 %v513
  %v515 = vpop.xlane.xlu0 %514
  %v516 = vsel %vm512, %v497, 0.0
  %517 = vadd.xlane.f32.xlu0 %v516
  %v518 = vpop.xlane.xlu0 %517
  %v519 = vsel %vm512, %v498, 0.0
  %520 = vadd.xlane.f32.xlu0 %v519
  %v521 = vpop.xlane.xlu0 %520
  %v522 = vsel %vm512, %v499, 0.0
  %523 = vadd.xlane.f32.xlu0 %v522
  %v524 = vpop.xlane.xlu0 %523
  %v525 = vsel %vm512, %v500, 0.0
  %526 = vadd.xlane.f32.xlu0 %v525
  %v527 = vpop.xlane.xlu0 %526
  %v528 = vsel %vm512, %v501, 0.0
  %529 = vadd.xlane.f32.xlu0 %v528
  %v530 = vpop.xlane.xlu0 %529
  %v531 = vsel %vm512, %v502, 0.0
  %532 = vadd.xlane.f32.xlu0 %v531
  %v533 = vpop.xlane.xlu0 %532
  %v534 = vsel %vm512, %v503, 0.0
  %535 = vadd.xlane.f32.xlu0 %v534
  %v536 = vpop.xlane.xlu0 %535
  %v537 = vsel %vm512, %v504, 0.0
  %538 = vadd.xlane.f32.xlu0 %v537
  %v539 = vpop.xlane.xlu0 %538
  %v540 = vsel %vm512, %v505, 0.0
  %541 = vadd.xlane.f32.xlu0 %v540
  %v542 = vpop.xlane.xlu0 %541
  %v543 = vsel %vm512, %v506, 0.0
  %544 = vadd.xlane.f32.xlu0 %v543
  %v545 = vpop.xlane.xlu0 %544
  %v546 = vsel %vm512, %v507, 0.0
  %547 = vadd.xlane.f32.xlu0 %v546
  %v548 = vpop.xlane.xlu0 %547
  %v549 = vsel %vm512, %v508, 0.0
  %550 = vadd.xlane.f32.xlu0 %v549
  %v551 = vpop.xlane.xlu0 %550
  %v552 = vsel %vm512, %v509, 0.0
  %553 = vadd.xlane.f32.xlu0 %v552
  %v554 = vpop.xlane.xlu0 %553
  %v555 = vsel %vm512, %v510, 0.0
  %556 = vadd.xlane.f32.xlu0 %v555
  %v557 = vpop.xlane.xlu0 %556
  %v558 = vsel %vm512, %v511, 0.0
  %559 = vadd.xlane.f32.xlu0 %v558
  %v560 = vpop.xlane.xlu0 %559
  %v577 = vlaneseq
  %v578 = vand.u32 %v577, 127
  %v579 = vperm.slane %v515, %v578
  %v580 = vadd.s32 %v578, 4294967288
  %v581 = vperm.slane %v518, %v580
  %vm582 = vcmask 130112
  %v583 = vsel %vm582, %v581, %v579
  %v584 = vadd.s32 %v578, 4294967280
  %v585 = vperm.slane %v521, %v584
  %vm586 = vcmask 195712
  %v587 = vsel %vm586, %v585, %v583
  %v588 = vadd.s32 %v578, 4294967272
  %v589 = vperm.slane %v524, %v588
  %vm590 = vcmask 261312
  %v591 = vsel %vm590, %v589, %v587
  %v592 = vadd.s32 %v578, 4294967264
  %v593 = vperm.slane %v527, %v592
  %vm594 = vcmask 326912
  %v595 = vsel %vm594, %v593, %v591
  %v596 = vadd.s32 %v578, 4294967256
  %v597 = vperm.slane %v530, %v596
  %vm598 = vcmask 392512
  %v599 = vsel %vm598, %v597, %v595
  %v600 = vadd.s32 %v578, 4294967248
  %v601 = vperm.slane %v533, %v600
  %vm602 = vcmask 458112
  %v603 = vsel %vm602, %v601, %v599
  %v604 = vadd.s32 %v578, 4294967240
  %v605 = vperm.slane %v536, %v604
  %vm606 = vcmask 523712
  %v607 = vsel %vm606, %v605, %v603
  %v608 = vperm.slane %v539, %v578
  %v609 = vperm.slane %v542, %v580
  %v610 = vsel %vm582, %v609, %v608
  %v611 = vperm.slane %v545, %v584
  %v612 = vsel %vm586, %v611, %v610
  %v613 = vperm.slane %v548, %v588
  %v614 = vsel %vm590, %v613, %v612
  %v615 = vperm.slane %v551, %v592
  %v616 = vsel %vm594, %v615, %v614
  %v617 = vperm.slane %v554, %v596
  %v618 = vsel %vm598, %v617, %v616
  %v619 = vperm.slane %v557, %v600
  %v620 = vsel %vm602, %v619, %v618
  %v621 = vperm.slane %v560, %v604
  %v622 = vsel %vm606, %v621, %v620
  %v623 = vsel %vm424, %v622, %v607
  %vm625 = vcmask 517120
  %v626 = vsel %vm625, %v623, -inf
  %627 = vmax.xlane.f32.xlu0 %v626
  %v628 = vpop.xlane.xlu0 %627
  %v630 = vperm.slane %v628, 0
  %v631 = vperm.slane %v628, 1
  %v634 = vsub.f32 %v515, %v630
  %v635 = vsub.f32 %v518, %v630
  %v636 = vsub.f32 %v521, %v630
  %v637 = vsub.f32 %v524, %v630
  %v638 = vsub.f32 %v527, %v630
  %v639 = vsub.f32 %v530, %v630
  %v640 = vsub.f32 %v533, %v630
  %v641 = vsub.f32 %v536, %v630
  %v642 = vsub.f32 %v539, %v631
  %v643 = vsub.f32 %v542, %v631
  %v644 = vsub.f32 %v545, %v631
  %v645 = vsub.f32 %v548, %v631
  %v646 = vsub.f32 %v551, %v631
  %v647 = vsub.f32 %v554, %v631
  %v648 = vsub.f32 %v557, %v631
  %v649 = vsub.f32 %v560, %v631
  %v650 = vmul.f32 %v634, 1.442695
  %v651 = vpow.pop %v650
  %v652 = vmul.f32 %v635, 1.442695
  %v653 = vpow.pop %v652
  %v654 = vmul.f32 %v636, 1.442695
  %v655 = vpow.pop %v654
  %v656 = vmul.f32 %v637, 1.442695
  %v657 = vpow.pop %v656
  %v658 = vmul.f32 %v638, 1.442695
  %v659 = vpow.pop %v658
  %v660 = vmul.f32 %v639, 1.442695
  %v661 = vpow.pop %v660
  %v662 = vmul.f32 %v640, 1.442695
  %v663 = vpow.pop %v662
  %v664 = vmul.f32 %v641, 1.442695
  %v665 = vpow.pop %v664
  %v666 = vmul.f32 %v642, 1.442695
  %v667 = vpow.pop %v666
  %v668 = vmul.f32 %v643, 1.442695
  %v669 = vpow.pop %v668
  %v670 = vmul.f32 %v644, 1.442695
  %v671 = vpow.pop %v670
  %v672 = vmul.f32 %v645, 1.442695
  %v673 = vpow.pop %v672
  %v674 = vmul.f32 %v646, 1.442695
  %v675 = vpow.pop %v674
  %v676 = vmul.f32 %v647, 1.442695
  %v677 = vpow.pop %v676
  %v678 = vmul.f32 %v648, 1.442695
  %v679 = vpow.pop %v678
  %v680 = vmul.f32 %v649, 1.442695
  %v681 = vpow.pop %v680
  %698 = vset.pattern.permute.xlu0 0
  %699 = vperm.xlu0 %698, %v651
  %v700 = vpop.permute.xlu0 %699
  %701 = vset.pattern.permute.xlu0 0
  %702 = vperm.xlu0 %701, %v653
  %v703 = vpop.permute.xlu0 %702
  %704 = vset.pattern.permute.xlu0 0
  %705 = vperm.xlu0 %704, %v655
  %v706 = vpop.permute.xlu0 %705
  %707 = vset.pattern.permute.xlu0 0
  %708 = vperm.xlu0 %707, %v657
  %v709 = vpop.permute.xlu0 %708
  %710 = vset.pattern.permute.xlu0 0
  %711 = vperm.xlu0 %710, %v659
  %v712 = vpop.permute.xlu0 %711
  %713 = vset.pattern.permute.xlu0 0
  %714 = vperm.xlu0 %713, %v661
  %v715 = vpop.permute.xlu0 %714
  %716 = vset.pattern.permute.xlu0 0
  %717 = vperm.xlu0 %716, %v663
  %v718 = vpop.permute.xlu0 %717
  %719 = vset.pattern.permute.xlu0 0
  %720 = vperm.xlu0 %719, %v665
  %v721 = vpop.permute.xlu0 %720
  %722 = vset.pattern.permute.xlu0 0
  %723 = vperm.xlu0 %722, %v667
  %v724 = vpop.permute.xlu0 %723
  %725 = vset.pattern.permute.xlu0 0
  %726 = vperm.xlu0 %725, %v669
  %v727 = vpop.permute.xlu0 %726
  %728 = vset.pattern.permute.xlu0 0
  %729 = vperm.xlu0 %728, %v671
  %v730 = vpop.permute.xlu0 %729
  %731 = vset.pattern.permute.xlu0 0
  %732 = vperm.xlu0 %731, %v673
  %v733 = vpop.permute.xlu0 %732
  %734 = vset.pattern.permute.xlu0 0
  %735 = vperm.xlu0 %734, %v675
  %v736 = vpop.permute.xlu0 %735
  %737 = vset.pattern.permute.xlu0 0
  %738 = vperm.xlu0 %737, %v677
  %v739 = vpop.permute.xlu0 %738
  %740 = vset.pattern.permute.xlu0 0
  %741 = vperm.xlu0 %740, %v679
  %v742 = vpop.permute.xlu0 %741
  %743 = vset.pattern.permute.xlu0 0
  %744 = vperm.xlu0 %743, %v681
  %v745 = vpop.permute.xlu0 %744
  %v746 = vperm.slane %v700, %v578
  %v747 = vperm.slane %v703, %v580
  %v748 = vsel %vm582, %v747, %v746
  %v749 = vperm.slane %v706, %v584
  %v750 = vsel %vm586, %v749, %v748
  %v751 = vperm.slane %v709, %v588
  %v752 = vsel %vm590, %v751, %v750
  %v753 = vperm.slane %v712, %v592
  %v754 = vsel %vm594, %v753, %v752
  %v755 = vperm.slane %v715, %v596
  %v756 = vsel %vm598, %v755, %v754
  %v757 = vperm.slane %v718, %v600
  %v758 = vsel %vm602, %v757, %v756
  %v759 = vperm.slane %v721, %v604
  %v760 = vsel %vm606, %v759, %v758
  %v761 = vperm.slane %v724, %v578
  %v762 = vperm.slane %v727, %v580
  %v763 = vsel %vm582, %v762, %v761
  %v764 = vperm.slane %v730, %v584
  %v765 = vsel %vm586, %v764, %v763
  %v766 = vperm.slane %v733, %v588
  %v767 = vsel %vm590, %v766, %v765
  %v768 = vperm.slane %v736, %v592
  %v769 = vsel %vm594, %v768, %v767
  %v770 = vperm.slane %v739, %v596
  %v771 = vsel %vm598, %v770, %v769
  %v772 = vperm.slane %v742, %v600
  %v773 = vsel %vm602, %v772, %v771
  %v774 = vperm.slane %v745, %v604
  %v775 = vsel %vm606, %v774, %v773
  %v776 = vsel %vm424, %v775, %v760
  %v778 = vsel %vm625, %v776, 0.0
  %779 = vadd.xlane.f32.xlu0 %v778
  %v780 = vpop.xlane.xlu0 %779
  %v781 = vrcp.pop %v780
  %v783 = vperm.slane %v781, 0
  %v784 = vperm.slane %v781, 1
  %v787 = vmul.f32 %v651, %v783
  %v788 = vmul.f32 %v653, %v783
  %v789 = vmul.f32 %v655, %v783
  %v790 = vmul.f32 %v657, %v783
  %v791 = vmul.f32 %v659, %v783
  %v792 = vmul.f32 %v661, %v783
  %v793 = vmul.f32 %v663, %v783
  %v794 = vmul.f32 %v665, %v783
  %v795 = vmul.f32 %v667, %v784
  %v796 = vmul.f32 %v669, %v784
  %v797 = vmul.f32 %v671, %v784
  %v798 = vmul.f32 %v673, %v784
  %v799 = vmul.f32 %v675, %v784
  %v800 = vmul.f32 %v677, %v784
  %v801 = vmul.f32 %v679, %v784
  %v802 = vmul.f32 %v681, %v784
  %804 = vset.pattern.permute.xlu0 0
  %805 = vperm.xlu0 %804, %v787
  %v806 = vpop.permute.xlu0 %805
  %809 = vset.pattern.permute.xlu0 0
  %810 = vperm.xlu0 %809, %v788
  %v811 = vpop.permute.xlu0 %810
  %814 = vset.pattern.permute.xlu0 0
  %815 = vperm.xlu0 %814, %v789
  %v816 = vpop.permute.xlu0 %815
  %819 = vset.pattern.permute.xlu0 0
  %820 = vperm.xlu0 %819, %v790
  %v821 = vpop.permute.xlu0 %820
  %824 = vset.pattern.permute.xlu0 0
  %825 = vperm.xlu0 %824, %v791
  %v826 = vpop.permute.xlu0 %825
  %829 = vset.pattern.permute.xlu0 0
  %830 = vperm.xlu0 %829, %v792
  %v831 = vpop.permute.xlu0 %830
  %834 = vset.pattern.permute.xlu0 0
  %835 = vperm.xlu0 %834, %v793
  %v836 = vpop.permute.xlu0 %835
  %839 = vset.pattern.permute.xlu0 0
  %840 = vperm.xlu0 %839, %v794
  %v841 = vpop.permute.xlu0 %840
  %844 = vset.pattern.permute.xlu0 0
  %845 = vperm.xlu0 %844, %v795
  %v846 = vpop.permute.xlu0 %845
  %849 = vset.pattern.permute.xlu0 0
  %850 = vperm.xlu0 %849, %v796
  %v851 = vpop.permute.xlu0 %850
  %854 = vset.pattern.permute.xlu0 0
  %855 = vperm.xlu0 %854, %v797
  %v856 = vpop.permute.xlu0 %855
  %859 = vset.pattern.permute.xlu0 0
  %860 = vperm.xlu0 %859, %v798
  %v861 = vpop.permute.xlu0 %860
  %864 = vset.pattern.permute.xlu0 0
  %865 = vperm.xlu0 %864, %v799
  %v866 = vpop.permute.xlu0 %865
  %869 = vset.pattern.permute.xlu0 0
  %870 = vperm.xlu0 %869, %v800
  %v871 = vpop.permute.xlu0 %870
  %874 = vset.pattern.permute.xlu0 0
  %875 = vperm.xlu0 %874, %v801
  %v876 = vpop.permute.xlu0 %875
  %879 = vset.pattern.permute.xlu0 0
  %880 = vperm.xlu0 %879, %v802
  %v881 = vpop.permute.xlu0 %880
  %v883 = vmul.f32 %v171, %v806
  %v884 = vmul.f32 %v172, %v811
  %v885 = vmul.f32 %v173, %v816
  %v886 = vmul.f32 %v174, %v821
  %v887 = vmul.f32 %v175, %v826
  %v888 = vmul.f32 %v176, %v831
  %v889 = vmul.f32 %v177, %v836
  %v890 = vmul.f32 %v178, %v841
  %v891 = vmul.f32 %v179, %v846
  %v892 = vmul.f32 %v180, %v851
  %v893 = vmul.f32 %v181, %v856
  %v894 = vmul.f32 %v182, %v861
  %v895 = vmul.f32 %v183, %v866
  %v896 = vmul.f32 %v184, %v871
  %v897 = vmul.f32 %v185, %v876
  %v898 = vmul.f32 %v186, %v881
  %v899 = vsel %vm192, %v883, 0.0
  %v900 = vsel %vm192, %v884, 0.0
  %v901 = vadd.f32 %v899, %v900
  %v902 = vsel %vm192, %v885, 0.0
  %v903 = vadd.f32 %v901, %v902
  %v904 = vsel %vm192, %v886, 0.0
  %v905 = vadd.f32 %v903, %v904
  %v906 = vsel %vm192, %v887, 0.0
  %v907 = vadd.f32 %v905, %v906
  %v908 = vsel %vm192, %v888, 0.0
  %v909 = vadd.f32 %v907, %v908
  %v910 = vsel %vm192, %v889, 0.0
  %v911 = vadd.f32 %v909, %v910
  %v912 = vsel %vm192, %v890, 0.0
  %v913 = vadd.f32 %v911, %v912
  %v914 = vrot.slane %v913, 4
  %v915 = vadd.f32 %v913, %v914
  %v916 = vrot.slane %v915, 2
  %v917 = vadd.f32 %v915, %v916
  %v918 = vrot.slane %v917, 1
  %v919 = vadd.f32 %v917, %v918
  %v920 = vsel %vm192, %v891, 0.0
  %v921 = vsel %vm192, %v892, 0.0
  %v922 = vadd.f32 %v920, %v921
  %v923 = vsel %vm192, %v893, 0.0
  %v924 = vadd.f32 %v922, %v923
  %v925 = vsel %vm192, %v894, 0.0
  %v926 = vadd.f32 %v924, %v925
  %v927 = vsel %vm192, %v895, 0.0
  %v928 = vadd.f32 %v926, %v927
  %v929 = vsel %vm192, %v896, 0.0
  %v930 = vadd.f32 %v928, %v929
  %v931 = vsel %vm192, %v897, 0.0
  %v932 = vadd.f32 %v930, %v931
  %v933 = vsel %vm192, %v898, 0.0
  %v934 = vadd.f32 %v932, %v933
  %v935 = vrot.slane %v934, 4
  %v936 = vadd.f32 %v934, %v935
  %v937 = vrot.slane %v936, 2
  %v938 = vadd.f32 %v936, %v937
  %v939 = vrot.slane %v938, 1
  %v940 = vadd.f32 %v938, %v939
  %v943 = vsel %vm424, %v940, %v919
  %945 = vrot.lane.b32.xlu0 %v425, 120
  %v946 = vpop.permute.xlu0 %945
  %v948 = vsel %vm192, %v943, %v946
  %vm949 = vcmask 326656
  %v951 = vsel %vm949, %v948, 0
  %953 = vmatpush.msra.mxu0 0.0
  %954 = vmatpush.msra.mxu0 0.0
  %955 = vmatpush.msra.mxu0 0.0
  %956 = vmatpush.msra.mxu0 0.0
  %957 = vmatpush.msra.mxu0 0.0
  %958 = vmatpush.msra.mxu0 0.0
  %959 = vmatpush.msra.mxu0 0.0
  %960 = vmatpush.msra.mxu0 0.0
  %961 = vmatpush.msra.mxu0 0.0
  %962 = vmatpush.msra.mxu0 0.0
  %963 = vmatpush.msra.mxu0 0.0
  %964 = vmatpush.msra.mxu0 %v416
  %965 = vmatpush.msra.mxu0 %v415
  %966 = vmatpush.msra.mxu0 %v414
  %967 = vmatpush.msra.mxu0 %v413
  %968 = vmatpush.msra.mxu0 %v412
  %969 = vmatmul.f32.gmra.mxu0 %v951
  %v970 = vpop.f32.mrf.mxu0
  %v971 = vadd.f32 0.0, %v970
  %972 = vdwg.mxu0
  %v973 = vadd.f32 %v392, %v971
  %v974 = vxor.u32 %v973, 2147483648
  %v975 = vmul.f32 %v974, 1.442695
  %v976 = vpow.pop %v975
  %v977 = vadd.f32 %v976, 1.0
  %v978 = vrcp.pop %v977
  %v979 = vmul.f32 %v977, %v978
  %v980 = vsub.f32 1.0, %v979
  %v981 = vmul.f32 %v978, %v980
  %v982 = vadd.f32 %v978, %v981
  %vm983 = vweird.f32 %v977
  %vm984 = vweird.f32 %v978
  %vm985 = vmor %vm983, %vm984
  %v986 = vsel %vm985, %v978, %v982
  %v987 = vand.u32 2147483647, %v977
  %vm988 = vcmp.eq.f32.partialorder %v987, 8.507059e+37
  %v989 = vand.u32 %v977, 2147483648
  %v990 = vor.u32 1.1754944e-38, %v989
  %v991 = vsel %vm988, %v990, %v986
  %v992 = vmul.f32 1.0, %v991
  %v993 = vtanh.pop %v973
  %vm994 = vcmask 1044484
  %v995 = vsel %vm994, %v356, %v356
  %vm996 = vcmask 1046534
  %v997 = vsel %vm996, %v356, %v995
  %v998 = vrot.slane %v357, 7
  %v999 = vsel %vm424, %v998, %v997
  %vm1000 = vcmask 1043459
  %v1001 = vsel %vm1000, %v998, %v999
  %vm1002 = vcmask 1045509
  %v1003 = vsel %vm1002, %v998, %v1001
  %vm1004 = vcmask 1047559
  %v1005 = vsel %vm1004, %v998, %v1003
  %1006 = vrot.lane.b32.xlu0 %v1005, 112
  %v1007 = vpop.permute.xlu0 %1006
  %v1009 = vmul.f32 %v992, %v1007
  %1011 = vrot.lane.b32.xlu0 %v993, 64
  %v1012 = vpop.permute.xlu0 %1011
  %v1014 = vmul.f32 %v992, %v1012
  %1016 = vrot.lane.b32.xlu0 %v1014, 32
  %v1017 = vpop.permute.xlu0 %1016
  %v1019 = vadd.f32 %v1009, %v1017
  %v1020 = vtanh.pop %v1019
  %1022 = vrot.lane.b32.xlu0 %v1020, 64
  %v1023 = vpop.permute.xlu0 %1022
  %v1025 = vmul.f32 %v992, %v1023
  %1027 = vst [vmem:[#allocation1] ss:$4 sm:$0xff] %v1025
  %v1028 = vld.sshfl [vmem:[#allocation1] sm:$0xff pattern:$0x73625140]
  %1029 = vrot.lane.b32.xlu0 %v1028, 32
  %v1030 = vpop.permute.xlu0 %1029
  %v1031 = vsel %vm428, %v1030, 0
  %1033 = vmatpush.msra.mxu0 0.0
  %1034 = vmatpush.msra.mxu0 0.0
  %1035 = vmatpush.msra.mxu0 0.0
  %1036 = vmatpush.msra.mxu0 0.0
  %1037 = vmatpush.msra.mxu0 0.0
  %1038 = vmatpush.msra.mxu0 0.0
  %1039 = vmatpush.msra.mxu0 0.0
  %1040 = vmatpush.msra.mxu0 0.0
  %1041 = vmatpush.msra.mxu0 0.0
  %1042 = vmatpush.msra.mxu0 0.0
  %1043 = vmatpush.msra.mxu0 0.0
  %1044 = vmatpush.msra.mxu0 0.0
  %1045 = vmatpush.msra.mxu0 %v420
  %1046 = vmatpush.msra.mxu0 %v419
  %1047 = vmatpush.msra.mxu0 %v418
  %1048 = vmatpush.msra.mxu0 %v417
  %1049 = vmatmul.f32.gmra.mxu0 %v1031
  %v1050 = vpop.f32.mrf.mxu0
  %v1051 = vadd.f32 0.0, %v1050
  %1052 = vdwg.mxu0
  %v1054 = vperm.slane %v421, 0
  %v1056 = vadd.f32 %v1051, %v1054
  %v1057 = vperm.slane %v806, %v592
  %v1058 = vperm.slane %v811, %v596
  %v1059 = vsel %vm598, %v1058, %v1057
  %v1060 = vperm.slane %v816, %v600
  %v1061 = vsel %vm602, %v1060, %v1059
  %v1062 = vperm.slane %v821, %v604
  %v1063 = vsel %vm606, %v1062, %v1061
  %v1064 = vadd.s32 %v578, 4294967232
  %v1065 = vperm.slane %v826, %v1064
  %vm1066 = vcmask 589312
  %v1067 = vsel %vm1066, %v1065, %v1063
  %v1068 = vadd.s32 %v578, 4294967224
  %v1069 = vperm.slane %v831, %v1068
  %vm1070 = vcmask 654912
  %v1071 = vsel %vm1070, %v1069, %v1067
  %v1072 = vadd.s32 %v578, 4294967216
  %v1073 = vperm.slane %v836, %v1072
  %vm1074 = vcmask 720512
  %v1075 = vsel %vm1074, %v1073, %v1071
  %v1076 = vadd.s32 %v578, 4294967208
  %v1077 = vperm.slane %v841, %v1076
  %vm1078 = vcmask 786112
  %v1079 = vsel %vm1078, %v1077, %v1075
  %v1080 = vperm.slane %v846, %v592
  %v1081 = vperm.slane %v851, %v596
  %v1082 = vsel %vm598, %v1081, %v1080
  %v1083 = vperm.slane %v856, %v600
  %v1084 = vsel %vm602, %v1083, %v1082
  %v1085 = vperm.slane %v861, %v604
  %v1086 = vsel %vm606, %v1085, %v1084
  %v1087 = vperm.slane %v866, %v1064
  %v1088 = vsel %vm1066, %v1087, %v1086
  %v1089 = vperm.slane %v871, %v1068
  %v1090 = vsel %vm1070, %v1089, %v1088
  %v1091 = vperm.slane %v876, %v1072
  %v1092 = vsel %vm1074, %v1091, %v1090
  %v1093 = vperm.slane %v881, %v1076
  %v1094 = vsel %vm1078, %v1093, %v1092
  %v1095 = vsel %vm424, %v1094, %v1079
  %v1097 = vsel %vm428, %v1056, %v1095
  %vm1098 = vcmask 785408
  %v1099 = vsel %vm1098, %v1097, 0.0
  %1100 = vst [vmem:[%s10] sm:$0x3] %v1099
  %v1102 = vrot.slane %v1051, 1
  %v1103 = vperm.slane %v1051, 0
  %v1104 = vperm.slane %v1102, 0
  %1105 = vrot.lane.b32.xlu0 %v1103, 96
  %v1106 = vpop.permute.xlu0 %1105
  %1107 = vrot.lane.b32.xlu0 %v1104, 96
  %v1108 = vpop.permute.xlu0 %1107
  %v1111 = vadd.f32 %v259, %v1106
  %v1112 = vadd.f32 %v262, %v1106
  %v1113 = vadd.f32 %v265, %v1106
  %v1114 = vadd.f32 %v268, %v1106
  %v1115 = vadd.f32 %v271, %v1106
  %v1116 = vadd.f32 %v274, %v1106
  %v1117 = vadd.f32 %v277, %v1106
  %v1118 = vadd.f32 %v280, %v1106
  %v1119 = vadd.f32 %v283, %v1108
  %v1120 = vadd.f32 %v286, %v1108
  %v1121 = vadd.f32 %v289, %v1108
  %v1122 = vadd.f32 %v292, %v1108
  %v1123 = vadd.f32 %v295, %v1108
  %v1124 = vadd.f32 %v298, %v1108
  %v1125 = vadd.f32 %v301, %v1108
  %v1126 = vadd.f32 %v304, %v1108
  %v1127 = vtanh.pop %v1111
  %v1128 = vtanh.pop %v1112
  %v1129 = vtanh.pop %v1113
  %v1130 = vtanh.pop %v1114
  %v1131 = vtanh.pop %v1115
  %v1132 = vtanh.pop %v1116
  %v1133 = vtanh.pop %v1117
  %v1134 = vtanh.pop %v1118
  %v1135 = vtanh.pop %v1119
  %v1136 = vtanh.pop %v1120
  %v1137 = vtanh.pop %v1121
  %v1138 = vtanh.pop %v1122
  %v1139 = vtanh.pop %v1123
  %v1140 = vtanh.pop %v1124
  %v1141 = vtanh.pop %v1125
  %v1142 = vtanh.pop %v1126
  %v1143 = vmul.f32 %v1127, %v494
  %v1144 = vmul.f32 %v1128, %v494
  %v1145 = vmul.f32 %v1129, %v494
  %v1146 = vmul.f32 %v1130, %v494
  %v1147 = vmul.f32 %v1131, %v494
  %v1148 = vmul.f32 %v1132, %v494
  %v1149 = vmul.f32 %v1133, %v494
  %v1150 = vmul.f32 %v1134, %v494
  %v1151 = vmul.f32 %v1135, %v494
  %v1152 = vmul.f32 %v1136, %v494
  %v1153 = vmul.f32 %v1137, %v494
  %v1154 = vmul.f32 %v1138, %v494
  %v1155 = vmul.f32 %v1139, %v494
  %v1156 = vmul.f32 %v1140, %v494
  %v1157 = vmul.f32 %v1141, %v494
  %v1158 = vmul.f32 %v1142, %v494
  %v1159 = vsel %vm512, %v1143, 0.0
  %1160 = vadd.xlane.f32.xlu0 %v1159
  %v1161 = vpop.xlane.xlu0 %1160
  %v1162 = vsel %vm512, %v1144, 0.0
  %1163 = vadd.xlane.f32.xlu0 %v1162
  %v1164 = vpop.xlane.xlu0 %1163
  %v1165 = vsel %vm512, %v1145, 0.0
  %1166 = vadd.xlane.f32.xlu0 %v1165
  %v1167 = vpop.xlane.xlu0 %1166
  %v1168 = vsel %vm512, %v1146, 0.0
  %1169 = vadd.xlane.f32.xlu0 %v1168
  %v1170 = vpop.xlane.xlu0 %1169
  %v1171 = vsel %vm512, %v1147, 0.0
  %1172 = vadd.xlane.f32.xlu0 %v1171
  %v1173 = vpop.xlane.xlu0 %1172
  %v1174 = vsel %vm512, %v1148, 0.0
  %1175 = vadd.xlane.f32.xlu0 %v1174
  %v1176 = vpop.xlane.xlu0 %1175
  %v1177 = vsel %vm512, %v1149, 0.0
  %1178 = vadd.xlane.f32.xlu0 %v1177
  %v1179 = vpop.xlane.xlu0 %1178
  %v1180 = vsel %vm512, %v1150, 0.0
  %1181 = vadd.xlane.f32.xlu0 %v1180
  %v1182 = vpop.xlane.xlu0 %1181
  %v1183 = vsel %vm512, %v1151, 0.0
  %1184 = vadd.xlane.f32.xlu0 %v1183
  %v1185 = vpop.xlane.xlu0 %1184
  %v1186 = vsel %vm512, %v1152, 0.0
  %1187 = vadd.xlane.f32.xlu0 %v1186
  %v1188 = vpop.xlane.xlu0 %1187
  %v1189 = vsel %vm512, %v1153, 0.0
  %1190 = vadd.xlane.f32.xlu0 %v1189
  %v1191 = vpop.xlane.xlu0 %1190
  %v1192 = vsel %vm512, %v1154, 0.0
  %1193 = vadd.xlane.f32.xlu0 %v1192
  %v1194 = vpop.xlane.xlu0 %1193
  %v1195 = vsel %vm512, %v1155, 0.0
  %1196 = vadd.xlane.f32.xlu0 %v1195
  %v1197 = vpop.xlane.xlu0 %1196
  %v1198 = vsel %vm512, %v1156, 0.0
  %1199 = vadd.xlane.f32.xlu0 %v1198
  %v1200 = vpop.xlane.xlu0 %1199
  %v1201 = vsel %vm512, %v1157, 0.0
  %1202 = vadd.xlane.f32.xlu0 %v1201
  %v1203 = vpop.xlane.xlu0 %1202
  %v1204 = vsel %vm512, %v1158, 0.0
  %1205 = vadd.xlane.f32.xlu0 %v1204
  %v1206 = vpop.xlane.xlu0 %1205
  %v1223 = vperm.slane %v1161, %v578
  %v1224 = vperm.slane %v1164, %v580
  %v1225 = vsel %vm582, %v1224, %v1223
  %v1226 = vperm.slane %v1167, %v584
  %v1227 = vsel %vm586, %v1226, %v1225
  %v1228 = vperm.slane %v1170, %v588
  %v1229 = vsel %vm590, %v1228, %v1227
  %v1230 = vperm.slane %v1173, %v592
  %v1231 = vsel %vm594, %v1230, %v1229
  %v1232 = vperm.slane %v1176, %v596
  %v1233 = vsel %vm598, %v1232, %v1231
  %v1234 = vperm.slane %v1179, %v600
  %v1235 = vsel %vm602, %v1234, %v1233
  %v1236 = vperm.slane %v1182, %v604
  %v1237 = vsel %vm606, %v1236, %v1235
  %v1238 = vperm.slane %v1185, %v578
  %v1239 = vperm.slane %v1188, %v580
  %v1240 = vsel %vm582, %v1239, %v1238
  %v1241 = vperm.slane %v1191, %v584
  %v1242 = vsel %vm586, %v1241, %v1240
  %v1243 = vperm.slane %v1194, %v588
  %v1244 = vsel %vm590, %v1243, %v1242
  %v1245 = vperm.slane %v1197, %v592
  %v1246 = vsel %vm594, %v1245, %v1244
  %v1247 = vperm.slane %v1200, %v596
  %v1248 = vsel %vm598, %v1247, %v1246
  %v1249 = vperm.slane %v1203, %v600
  %v1250 = vsel %vm602, %v1249, %v1248
  %v1251 = vperm.slane %v1206, %v604
  %v1252 = vsel %vm606, %v1251, %v1250
  %v1253 = vsel %vm424, %v1252, %v1237
  %v1255 = vsel %vm625, %v1253, -inf
  %1256 = vmax.xlane.f32.xlu0 %v1255
  %v1257 = vpop.xlane.xlu0 %1256
  %v1259 = vperm.slane %v1257, 0
  %v1260 = vperm.slane %v1257, 1
  %v1263 = vsub.f32 %v1161, %v1259
  %v1264 = vsub.f32 %v1164, %v1259
  %v1265 = vsub.f32 %v1167, %v1259
  %v1266 = vsub.f32 %v1170, %v1259
  %v1267 = vsub.f32 %v1173, %v1259
  %v1268 = vsub.f32 %v1176, %v1259
  %v1269 = vsub.f32 %v1179, %v1259
  %v1270 = vsub.f32 %v1182, %v1259
  %v1271 = vsub.f32 %v1185, %v1260
  %v1272 = vsub.f32 %v1188, %v1260
  %v1273 = vsub.f32 %v1191, %v1260
  %v1274 = vsub.f32 %v1194, %v1260
  %v1275 = vsub.f32 %v1197, %v1260
  %v1276 = vsub.f32 %v1200, %v1260
  %v1277 = vsub.f32 %v1203, %v1260
  %v1278 = vsub.f32 %v1206, %v1260
  %v1279 = vmul.f32 %v1263, 1.442695
  %v1280 = vpow.pop %v1279
  %v1281 = vmul.f32 %v1264, 1.442695
  %v1282 = vpow.pop %v1281
  %v1283 = vmul.f32 %v1265, 1.442695
  %v1284 = vpow.pop %v1283
  %v1285 = vmul.f32 %v1266, 1.442695
  %v1286 = vpow.pop %v1285
  %v1287 = vmul.f32 %v1267, 1.442695
  %v1288 = vpow.pop %v1287
  %v1289 = vmul.f32 %v1268, 1.442695
  %v1290 = vpow.pop %v1289
  %v1291 = vmul.f32 %v1269, 1.442695
  %v1292 = vpow.pop %v1291
  %v1293 = vmul.f32 %v1270, 1.442695
  %v1294 = vpow.pop %v1293
  %v1295 = vmul.f32 %v1271, 1.442695
  %v1296 = vpow.pop %v1295
  %v1297 = vmul.f32 %v1272, 1.442695
  %v1298 = vpow.pop %v1297
  %v1299 = vmul.f32 %v1273, 1.442695
  %v1300 = vpow.pop %v1299
  %v1301 = vmul.f32 %v1274, 1.442695
  %v1302 = vpow.pop %v1301
  %v1303 = vmul.f32 %v1275, 1.442695
  %v1304 = vpow.pop %v1303
  %v1305 = vmul.f32 %v1276, 1.442695
  %v1306 = vpow.pop %v1305
  %v1307 = vmul.f32 %v1277, 1.442695
  %v1308 = vpow.pop %v1307
  %v1309 = vmul.f32 %v1278, 1.442695
  %v1310 = vpow.pop %v1309
  %1327 = vset.pattern.permute.xlu0 0
  %1328 = vperm.xlu0 %1327, %v1280
  %v1329 = vpop.permute.xlu0 %1328
  %1330 = vset.pattern.permute.xlu0 0
  %1331 = vperm.xlu0 %1330, %v1282
  %v1332 = vpop.permute.xlu0 %1331
  %1333 = vset.pattern.permute.xlu0 0
  %1334 = vperm.xlu0 %1333, %v1284
  %v1335 = vpop.permute.xlu0 %1334
  %1336 = vset.pattern.permute.xlu0 0
  %1337 = vperm.xlu0 %1336, %v1286
  %v1338 = vpop.permute.xlu0 %1337
  %1339 = vset.pattern.permute.xlu0 0
  %1340 = vperm.xlu0 %1339, %v1288
  %v1341 = vpop.permute.xlu0 %1340
  %1342 = vset.pattern.permute.xlu0 0
  %1343 = vperm.xlu0 %1342, %v1290
  %v1344 = vpop.permute.xlu0 %1343
  %1345 = vset.pattern.permute.xlu0 0
  %1346 = vperm.xlu0 %1345, %v1292
  %v1347 = vpop.permute.xlu0 %1346
  %1348 = vset.pattern.permute.xlu0 0
  %1349 = vperm.xlu0 %1348, %v1294
  %v1350 = vpop.permute.xlu0 %1349
  %1351 = vset.pattern.permute.xlu0 0
  %1352 = vperm.xlu0 %1351, %v1296
  %v1353 = vpop.permute.xlu0 %1352
  %1354 = vset.pattern.permute.xlu0 0
  %1355 = vperm.xlu0 %1354, %v1298
  %v1356 = vpop.permute.xlu0 %1355
  %1357 = vset.pattern.permute.xlu0 0
  %1358 = vperm.xlu0 %1357, %v1300
  %v1359 = vpop.permute.xlu0 %1358
  %1360 = vset.pattern.permute.xlu0 0
  %1361 = vperm.xlu0 %1360, %v1302
  %v1362 = vpop.permute.xlu0 %1361
  %1363 = vset.pattern.permute.xlu0 0
  %1364 = vperm.xlu0 %1363, %v1304
  %v1365 = vpop.permute.xlu0 %1364
  %1366 = vset.pattern.permute.xlu0 0
  %1367 = vperm.xlu0 %1366, %v1306
  %v1368 = vpop.permute.xlu0 %1367
  %1369 = vset.pattern.permute.xlu0 0
  %1370 = vperm.xlu0 %1369, %v1308
  %v1371 = vpop.permute.xlu0 %1370
  %1372 = vset.pattern.permute.xlu0 0
  %1373 = vperm.xlu0 %1372, %v1310
  %v1374 = vpop.permute.xlu0 %1373
  %v1375 = vperm.slane %v1329, %v578
  %v1376 = vperm.slane %v1332, %v580
  %v1377 = vsel %vm582, %v1376, %v1375
  %v1378 = vperm.slane %v1335, %v584
  %v1379 = vsel %vm586, %v1378, %v1377
  %v1380 = vperm.slane %v1338, %v588
  %v1381 = vsel %vm590, %v1380, %v1379
  %v1382 = vperm.slane %v1341, %v592
  %v1383 = vsel %vm594, %v1382, %v1381
  %v1384 = vperm.slane %v1344, %v596
  %v1385 = vsel %vm598, %v1384, %v1383
  %v1386 = vperm.slane %v1347, %v600
  %v1387 = vsel %vm602, %v1386, %v1385
  %v1388 = vperm.slane %v1350, %v604
  %v1389 = vsel %vm606, %v1388, %v1387
  %v1390 = vperm.slane %v1353, %v578
  %v1391 = vperm.slane %v1356, %v580
  %v1392 = vsel %vm582, %v1391, %v1390
  %v1393 = vperm.slane %v1359, %v584
  %v1394 = vsel %vm586, %v1393, %v1392
  %v1395 = vperm.slane %v1362, %v588
  %v1396 = vsel %vm590, %v1395, %v1394
  %v1397 = vperm.slane %v1365, %v592
  %v1398 = vsel %vm594, %v1397, %v1396
  %v1399 = vperm.slane %v1368, %v596
  %v1400 = vsel %vm598, %v1399, %v1398
  %v1401 = vperm.slane %v1371, %v600
  %v1402 = vsel %vm602, %v1401, %v1400
  %v1403 = vperm.slane %v1374, %v604
  %v1404 = vsel %vm606, %v1403, %v1402
  %v1405 = vsel %vm424, %v1404, %v1389
  %v1407 = vsel %vm625, %v1405, 0.0
  %1408 = vadd.xlane.f32.xlu0 %v1407
  %v1409 = vpop.xlane.xlu0 %1408
  %v1410 = vrcp.pop %v1409
  %v1412 = vperm.slane %v1410, 0
  %v1413 = vperm.slane %v1410, 1
  %v1416 = vmul.f32 %v1280, %v1412
  %v1417 = vmul.f32 %v1282, %v1412
  %v1418 = vmul.f32 %v1284, %v1412
  %v1419 = vmul.f32 %v1286, %v1412
  %v1420 = vmul.f32 %v1288, %v1412
  %v1421 = vmul.f32 %v1290, %v1412
  %v1422 = vmul.f32 %v1292, %v1412
  %v1423 = vmul.f32 %v1294, %v1412
  %v1424 = vmul.f32 %v1296, %v1413
  %v1425 = vmul.f32 %v1298, %v1413
  %v1426 = vmul.f32 %v1300, %v1413
  %v1427 = vmul.f32 %v1302, %v1413
  %v1428 = vmul.f32 %v1304, %v1413
  %v1429 = vmul.f32 %v1306, %v1413
  %v1430 = vmul.f32 %v1308, %v1413
  %v1431 = vmul.f32 %v1310, %v1413
  %1433 = vset.pattern.permute.xlu0 0
  %1434 = vperm.xlu0 %1433, %v1416
  %v1435 = vpop.permute.xlu0 %1434
  %1438 = vset.pattern.permute.xlu0 0
  %1439 = vperm.xlu0 %1438, %v1417
  %v1440 = vpop.permute.xlu0 %1439
  %1443 = vset.pattern.permute.xlu0 0
  %1444 = vperm.xlu0 %1443, %v1418
  %v1445 = vpop.permute.xlu0 %1444
  %1448 = vset.pattern.permute.xlu0 0
  %1449 = vperm.xlu0 %1448, %v1419
  %v1450 = vpop.permute.xlu0 %1449
  %1453 = vset.pattern.permute.xlu0 0
  %1454 = vperm.xlu0 %1453, %v1420
  %v1455 = vpop.permute.xlu0 %1454
  %1458 = vset.pattern.permute.xlu0 0
  %1459 = vperm.xlu0 %1458, %v1421
  %v1460 = vpop.permute.xlu0 %1459
  %1463 = vset.pattern.permute.xlu0 0
  %1464 = vperm.xlu0 %1463, %v1422
  %v1465 = vpop.permute.xlu0 %1464
  %1468 = vset.pattern.permute.xlu0 0
  %1469 = vperm.xlu0 %1468, %v1423
  %v1470 = vpop.permute.xlu0 %1469
  %1473 = vset.pattern.permute.xlu0 0
  %1474 = vperm.xlu0 %1473, %v1424
  %v1475 = vpop.permute.xlu0 %1474
  %1478 = vset.pattern.permute.xlu0 0
  %1479 = vperm.xlu0 %1478, %v1425
  %v1480 = vpop.permute.xlu0 %1479
  %1483 = vset.pattern.permute.xlu0 0
  %1484 = vperm.xlu0 %1483, %v1426
  %v1485 = vpop.permute.xlu0 %1484
  %1488 = vset.pattern.permute.xlu0 0
  %1489 = vperm.xlu0 %1488, %v1427
  %v1490 = vpop.permute.xlu0 %1489
  %1493 = vset.pattern.permute.xlu0 0
  %1494 = vperm.xlu0 %1493, %v1428
  %v1495 = vpop.permute.xlu0 %1494
  %1498 = vset.pattern.permute.xlu0 0
  %1499 = vperm.xlu0 %1498, %v1429
  %v1500 = vpop.permute.xlu0 %1499
  %1503 = vset.pattern.permute.xlu0 0
  %1504 = vperm.xlu0 %1503, %v1430
  %v1505 = vpop.permute.xlu0 %1504
  %1508 = vset.pattern.permute.xlu0 0
  %1509 = vperm.xlu0 %1508, %v1431
  %v1510 = vpop.permute.xlu0 %1509
  %v1512 = vmul.f32 %v171, %v1435
  %v1513 = vmul.f32 %v172, %v1440
  %v1514 = vmul.f32 %v173, %v1445
  %v1515 = vmul.f32 %v174, %v1450
  %v1516 = vmul.f32 %v175, %v1455
  %v1517 = vmul.f32 %v176, %v1460
  %v1518 = vmul.f32 %v177, %v1465
  %v1519 = vmul.f32 %v178, %v1470
  %v1520 = vmul.f32 %v179, %v1475
  %v1521 = vmul.f32 %v180, %v1480
  %v1522 = vmul.f32 %v181, %v1485
  %v1523 = vmul.f32 %v182, %v1490
  %v1524 = vmul.f32 %v183, %v1495
  %v1525 = vmul.f32 %v184, %v1500
  %v1526 = vmul.f32 %v185, %v1505
  %v1527 = vmul.f32 %v186, %v1510
  %v1528 = vsel %vm192, %v1512, 0.0
  %v1529 = vsel %vm192, %v1513, 0.0
  %v1530 = vadd.f32 %v1528, %v1529
  %v1531 = vsel %vm192, %v1514, 0.0
  %v1532 = vadd.f32 %v1530, %v1531
  %v1533 = vsel %vm192, %v1515, 0.0
  %v1534 = vadd.f32 %v1532, %v1533
  %v1535 = vsel %vm192, %v1516, 0.0
  %v1536 = vadd.f32 %v1534, %v1535
  %v1537 = vsel %vm192, %v1517, 0.0
  %v1538 = vadd.f32 %v1536, %v1537
  %v1539 = vsel %vm192, %v1518, 0.0
  %v1540 = vadd.f32 %v1538, %v1539
  %v1541 = vsel %vm192, %v1519, 0.0
  %v1542 = vadd.f32 %v1540, %v1541
  %v1543 = vrot.slane %v1542, 4
  %v1544 = vadd.f32 %v1542, %v1543
  %v1545 = vrot.slane %v1544, 2
  %v1546 = vadd.f32 %v1544, %v1545
  %v1547 = vrot.slane %v1546, 1
  %v1548 = vadd.f32 %v1546, %v1547
  %v1549 = vsel %vm192, %v1520, 0.0
  %v1550 = vsel %vm192, %v1521, 0.0
  %v1551 = vadd.f32 %v1549, %v1550
  %v1552 = vsel %vm192, %v1522, 0.0
  %v1553 = vadd.f32 %v1551, %v1552
  %v1554 = vsel %vm192, %v1523, 0.0
  %v1555 = vadd.f32 %v1553, %v1554
  %v1556 = vsel %vm192, %v1524, 0.0
  %v1557 = vadd.f32 %v1555, %v1556
  %v1558 = vsel %vm192, %v1525, 0.0
  %v1559 = vadd.f32 %v1557, %v1558
  %v1560 = vsel %vm192, %v1526, 0.0
  %v1561 = vadd.f32 %v1559, %v1560
  %v1562 = vsel %vm192, %v1527, 0.0
  %v1563 = vadd.f32 %v1561, %v1562
  %v1564 = vrot.slane %v1563, 4
  %v1565 = vadd.f32 %v1563, %v1564
  %v1566 = vrot.slane %v1565, 2
  %v1567 = vadd.f32 %v1565, %v1566
  %v1568 = vrot.slane %v1567, 1
  %v1569 = vadd.f32 %v1567, %v1568
  %v1572 = vsel %vm424, %v1569, %v1548
  %1574 = vst [vmem:[#allocation1] ss:$4 sm:$0xff] %v1025
  %v1575 = vld.sshfl [vmem:[#allocation1] sm:$0xff pattern:$0x73625140]
  %1576 = vrot.lane.b32.xlu0 %v1575, 40
  %v1577 = vpop.permute.xlu0 %1576
  %v1579 = vsel %vm192, %v1572, %v1577
  %v1581 = vsel %vm949, %v1579, 0
  %1583 = vmatpush.msra.mxu0 0.0
  %1584 = vmatpush.msra.mxu0 0.0
  %1585 = vmatpush.msra.mxu0 0.0
  %1586 = vmatpush.msra.mxu0 0.0
  %1587 = vmatpush.msra.mxu0 0.0
  %1588 = vmatpush.msra.mxu0 0.0
  %1589 = vmatpush.msra.mxu0 0.0
  %1590 = vmatpush.msra.mxu0 0.0
  %1591 = vmatpush.msra.mxu0 0.0
  %1592 = vmatpush.msra.mxu0 0.0
  %1593 = vmatpush.msra.mxu0 0.0
  %1594 = vmatpush.msra.mxu0 %v416
  %1595 = vmatpush.msra.mxu0 %v415
  %1596 = vmatpush.msra.mxu0 %v414
  %1597 = vmatpush.msra.mxu0 %v413
  %1598 = vmatpush.msra.mxu0 %v412
  %1599 = vmatmul.f32.gmra.mxu0 %v1581
  %v1600 = vpop.f32.mrf.mxu0
  %v1601 = vadd.f32 0.0, %v1600
  %1602 = vdwg.mxu0
  %v1603 = vadd.f32 %v399, %v1601
  %v1604 = vxor.u32 %v1603, 2147483648
  %v1605 = vmul.f32 %v1604, 1.442695
  %v1606 = vpow.pop %v1605
  %v1607 = vadd.f32 %v1606, 1.0
  %v1608 = vrcp.pop %v1607
  %v1609 = vmul.f32 %v1607, %v1608
  %v1610 = vsub.f32 1.0, %v1609
  %v1611 = vmul.f32 %v1608, %v1610
  %v1612 = vadd.f32 %v1608, %v1611
  %vm1613 = vweird.f32 %v1607
  %vm1614 = vweird.f32 %v1608
  %vm1615 = vmor %vm1613, %vm1614
  %v1616 = vsel %vm1615, %v1608, %v1612
  %v1617 = vand.u32 2147483647, %v1607
  %vm1618 = vcmp.eq.f32.partialorder %v1617, 8.507059e+37
  %v1619 = vand.u32 %v1607, 2147483648
  %v1620 = vor.u32 1.1754944e-38, %v1619
  %v1621 = vsel %vm1618, %v1620, %v1616
  %v1622 = vmul.f32 1.0, %v1621
  %v1623 = vtanh.pop %v1603
  %v1624 = vmul.f32 %v1622, %v1019
  %1626 = vrot.lane.b32.xlu0 %v1623, 64
  %v1627 = vpop.permute.xlu0 %1626
  %v1629 = vmul.f32 %v1622, %v1627
  %1631 = vrot.lane.b32.xlu0 %v1629, 32
  %v1632 = vpop.permute.xlu0 %1631
  %v1634 = vadd.f32 %v1624, %v1632
  %v1635 = vtanh.pop %v1634
  %1637 = vrot.lane.b32.xlu0 %v1635, 64
  %v1638 = vpop.permute.xlu0 %1637
  %v1640 = vmul.f32 %v1622, %v1638
  %1642 = vst [vmem:[#allocation1] ss:$4 sm:$0xff] %v1640
  %v1643 = vld.sshfl [vmem:[#allocation1] sm:$0xff pattern:$0x73625140]
  %1644 = vrot.lane.b32.xlu0 %v1643, 32
  %v1645 = vpop.permute.xlu0 %1644
  %v1646 = vsel %vm428, %v1645, 0
  %1648 = vmatpush.msra.mxu0 0.0
  %1649 = vmatpush.msra.mxu0 0.0
  %1650 = vmatpush.msra.mxu0 0.0
  %1651 = vmatpush.msra.mxu0 0.0
  %1652 = vmatpush.msra.mxu0 0.0
  %1653 = vmatpush.msra.mxu0 0.0
  %1654 = vmatpush.msra.mxu0 0.0
  %1655 = vmatpush.msra.mxu0 0.0
  %1656 = vmatpush.msra.mxu0 0.0
  %1657 = vmatpush.msra.mxu0 0.0
  %1658 = vmatpush.msra.mxu0 0.0
  %1659 = vmatpush.msra.mxu0 0.0
  %1660 = vmatpush.msra.mxu0 %v420
  %1661 = vmatpush.msra.mxu0 %v419
  %1662 = vmatpush.msra.mxu0 %v418
  %1663 = vmatpush.msra.mxu0 %v417
  %1664 = vmatmul.f32.gmra.mxu0 %v1646
  %v1665 = vpop.f32.mrf.mxu0
  %v1666 = vadd.f32 0.0, %v1665
  %1667 = vdwg.mxu0
  %v1668 = vadd.f32 %v1666, %v1054
  %v1669 = vperm.slane %v1435, %v592
  %v1670 = vperm.slane %v1440, %v596
  %v1671 = vsel %vm598, %v1670, %v1669
  %v1672 = vperm.slane %v1445, %v600
  %v1673 = vsel %vm602, %v1672, %v1671
  %v1674 = vperm.slane %v1450, %v604
  %v1675 = vsel %vm606, %v1674, %v1673
  %v1676 = vperm.slane %v1455, %v1064
  %v1677 = vsel %vm1066, %v1676, %v1675
  %v1678 = vperm.slane %v1460, %v1068
  %v1679 = vsel %vm1070, %v1678, %v1677
  %v1680 = vperm.slane %v1465, %v1072
  %v1681 = vsel %vm1074, %v1680, %v1679
  %v1682 = vperm.slane %v1470, %v1076
  %v1683 = vsel %vm1078, %v1682, %v1681
  %v1684 = vperm.slane %v1475, %v592
  %v1685 = vperm.slane %v1480, %v596
  %v1686 = vsel %vm598, %v1685, %v1684
  %v1687 = vperm.slane %v1485, %v600
  %v1688 = vsel %vm602, %v1687, %v1686
  %v1689 = vperm.slane %v1490, %v604
  %v1690 = vsel %vm606, %v1689, %v1688
  %v1691 = vperm.slane %v1495, %v1064
  %v1692 = vsel %vm1066, %v1691, %v1690
  %v1693 = vperm.slane %v1500, %v1068
  %v1694 = vsel %vm1070, %v1693, %v1692
  %v1695 = vperm.slane %v1505, %v1072
  %v1696 = vsel %vm1074, %v1695, %v1694
  %v1697 = vperm.slane %v1510, %v1076
  %v1698 = vsel %vm1078, %v1697, %v1696
  %v1699 = vsel %vm424, %v1698, %v1683
  %v1701 = vsel %vm428, %v1668, %v1699
  %v1702 = vsel %vm1098, %v1701, 0.0
  %s1703 = scalar_lea.vmem %s10, 2
  %1704 = vst [vmem:[%s1703] sm:$0x3] %v1702
  %v1706 = vrot.slane %v1666, 1
  %v1707 = vperm.slane %v1666, 0
  %v1708 = vperm.slane %v1706, 0
  %1709 = vrot.lane.b32.xlu0 %v1707, 96
  %v1710 = vpop.permute.xlu0 %1709
  %1711 = vrot.lane.b32.xlu0 %v1708, 96
  %v1712 = vpop.permute.xlu0 %1711
  %v1715 = vadd.f32 %v259, %v1710
  %v1716 = vadd.f32 %v262, %v1710
  %v1717 = vadd.f32 %v265, %v1710
  %v1718 = vadd.f32 %v268, %v1710
  %v1719 = vadd.f32 %v271, %v1710
  %v1720 = vadd.f32 %v274, %v1710
  %v1721 = vadd.f32 %v277, %v1710
  %v1722 = vadd.f32 %v280, %v1710
  %v1723 = vadd.f32 %v283, %v1712
  %v1724 = vadd.f32 %v286, %v1712
  %v1725 = vadd.f32 %v289, %v1712
  %v1726 = vadd.f32 %v292, %v1712
  %v1727 = vadd.f32 %v295, %v1712
  %v1728 = vadd.f32 %v298, %v1712
  %v1729 = vadd.f32 %v301, %v1712
  %v1730 = vadd.f32 %v304, %v1712
  %v1731 = vtanh.pop %v1715
  %v1732 = vtanh.pop %v1716
  %v1733 = vtanh.pop %v1717
  %v1734 = vtanh.pop %v1718
  %v1735 = vtanh.pop %v1719
  %v1736 = vtanh.pop %v1720
  %v1737 = vtanh.pop %v1721
  %v1738 = vtanh.pop %v1722
  %v1739 = vtanh.pop %v1723
  %v1740 = vtanh.pop %v1724
  %v1741 = vtanh.pop %v1725
  %v1742 = vtanh.pop %v1726
  %v1743 = vtanh.pop %v1727
  %v1744 = vtanh.pop %v1728
  %v1745 = vtanh.pop %v1729
  %v1746 = vtanh.pop %v1730
  %v1747 = vmul.f32 %v1731, %v494
  %v1748 = vmul.f32 %v1732, %v494
  %v1749 = vmul.f32 %v1733, %v494
  %v1750 = vmul.f32 %v1734, %v494
  %v1751 = vmul.f32 %v1735, %v494
  %v1752 = vmul.f32 %v1736, %v494
  %v1753 = vmul.f32 %v1737, %v494
  %v1754 = vmul.f32 %v1738, %v494
  %v1755 = vmul.f32 %v1739, %v494
  %v1756 = vmul.f32 %v1740, %v494
  %v1757 = vmul.f32 %v1741, %v494
  %v1758 = vmul.f32 %v1742, %v494
  %v1759 = vmul.f32 %v1743, %v494
  %v1760 = vmul.f32 %v1744, %v494
  %v1761 = vmul.f32 %v1745, %v494
  %v1762 = vmul.f32 %v1746, %v494
  %v1763 = vsel %vm512, %v1747, 0.0
  %1764 = vadd.xlane.f32.xlu0 %v1763
  %v1765 = vpop.xlane.xlu0 %1764
  %v1766 = vsel %vm512, %v1748, 0.0
  %1767 = vadd.xlane.f32.xlu0 %v1766
  %v1768 = vpop.xlane.xlu0 %1767
  %v1769 = vsel %vm512, %v1749, 0.0
  %1770 = vadd.xlane.f32.xlu0 %v1769
  %v1771 = vpop.xlane.xlu0 %1770
  %v1772 = vsel %vm512, %v1750, 0.0
  %1773 = vadd.xlane.f32.xlu0 %v1772
  %v1774 = vpop.xlane.xlu0 %1773
  %v1775 = vsel %vm512, %v1751, 0.0
  %1776 = vadd.xlane.f32.xlu0 %v1775
  %v1777 = vpop.xlane.xlu0 %1776
  %v1778 = vsel %vm512, %v1752, 0.0
  %1779 = vadd.xlane.f32.xlu0 %v1778
  %v1780 = vpop.xlane.xlu0 %1779
  %v1781 = vsel %vm512, %v1753, 0.0
  %1782 = vadd.xlane.f32.xlu0 %v1781
  %v1783 = vpop.xlane.xlu0 %1782
  %v1784 = vsel %vm512, %v1754, 0.0
  %1785 = vadd.xlane.f32.xlu0 %v1784
  %v1786 = vpop.xlane.xlu0 %1785
  %v1787 = vsel %vm512, %v1755, 0.0
  %1788 = vadd.xlane.f32.xlu0 %v1787
  %v1789 = vpop.xlane.xlu0 %1788
  %v1790 = vsel %vm512, %v1756, 0.0
  %1791 = vadd.xlane.f32.xlu0 %v1790
  %v1792 = vpop.xlane.xlu0 %1791
  %v1793 = vsel %vm512, %v1757, 0.0
  %1794 = vadd.xlane.f32.xlu0 %v1793
  %v1795 = vpop.xlane.xlu0 %1794
  %v1796 = vsel %vm512, %v1758, 0.0
  %1797 = vadd.xlane.f32.xlu0 %v1796
  %v1798 = vpop.xlane.xlu0 %1797
  %v1799 = vsel %vm512, %v1759, 0.0
  %1800 = vadd.xlane.f32.xlu0 %v1799
  %v1801 = vpop.xlane.xlu0 %1800
  %v1802 = vsel %vm512, %v1760, 0.0
  %1803 = vadd.xlane.f32.xlu0 %v1802
  %v1804 = vpop.xlane.xlu0 %1803
  %v1805 = vsel %vm512, %v1761, 0.0
  %1806 = vadd.xlane.f32.xlu0 %v1805
  %v1807 = vpop.xlane.xlu0 %1806
  %v1808 = vsel %vm512, %v1762, 0.0
  %1809 = vadd.xlane.f32.xlu0 %v1808
  %v1810 = vpop.xlane.xlu0 %1809
  %v1827 = vperm.slane %v1765, %v578
  %v1828 = vperm.slane %v1768, %v580
  %v1829 = vsel %vm582, %v1828, %v1827
  %v1830 = vperm.slane %v1771, %v584
  %v1831 = vsel %vm586, %v1830, %v1829
  %v1832 = vperm.slane %v1774, %v588
  %v1833 = vsel %vm590, %v1832, %v1831
  %v1834 = vperm.slane %v1777, %v592
  %v1835 = vsel %vm594, %v1834, %v1833
  %v1836 = vperm.slane %v1780, %v596
  %v1837 = vsel %vm598, %v1836, %v1835
  %v1838 = vperm.slane %v1783, %v600
  %v1839 = vsel %vm602, %v1838, %v1837
  %v1840 = vperm.slane %v1786, %v604
  %v1841 = vsel %vm606, %v1840, %v1839
  %v1842 = vperm.slane %v1789, %v578
  %v1843 = vperm.slane %v1792, %v580
  %v1844 = vsel %vm582, %v1843, %v1842
  %v1845 = vperm.slane %v1795, %v584
  %v1846 = vsel %vm586, %v1845, %v1844
  %v1847 = vperm.slane %v1798, %v588
  %v1848 = vsel %vm590, %v1847, %v1846
  %v1849 = vperm.slane %v1801, %v592
  %v1850 = vsel %vm594, %v1849, %v1848
  %v1851 = vperm.slane %v1804, %v596
  %v1852 = vsel %vm598, %v1851, %v1850
  %v1853 = vperm.slane %v1807, %v600
  %v1854 = vsel %vm602, %v1853, %v1852
  %v1855 = vperm.slane %v1810, %v604
  %v1856 = vsel %vm606, %v1855, %v1854
  %v1857 = vsel %vm424, %v1856, %v1841
  %v1859 = vsel %vm625, %v1857, -inf
  %1860 = vmax.xlane.f32.xlu0 %v1859
  %v1861 = vpop.xlane.xlu0 %1860
  %v1863 = vperm.slane %v1861, 0
  %v1864 = vperm.slane %v1861, 1
  %v1867 = vsub.f32 %v1765, %v1863
  %v1868 = vsub.f32 %v1768, %v1863
  %v1869 = vsub.f32 %v1771, %v1863
  %v1870 = vsub.f32 %v1774, %v1863
  %v1871 = vsub.f32 %v1777, %v1863
  %v1872 = vsub.f32 %v1780, %v1863
  %v1873 = vsub.f32 %v1783, %v1863
  %v1874 = vsub.f32 %v1786, %v1863
  %v1875 = vsub.f32 %v1789, %v1864
  %v1876 = vsub.f32 %v1792, %v1864
  %v1877 = vsub.f32 %v1795, %v1864
  %v1878 = vsub.f32 %v1798, %v1864
  %v1879 = vsub.f32 %v1801, %v1864
  %v1880 = vsub.f32 %v1804, %v1864
  %v1881 = vsub.f32 %v1807, %v1864
  %v1882 = vsub.f32 %v1810, %v1864
  %v1883 = vmul.f32 %v1867, 1.442695
  %v1884 = vpow.pop %v1883
  %v1885 = vmul.f32 %v1868, 1.442695
  %v1886 = vpow.pop %v1885
  %v1887 = vmul.f32 %v1869, 1.442695
  %v1888 = vpow.pop %v1887
  %v1889 = vmul.f32 %v1870, 1.442695
  %v1890 = vpow.pop %v1889
  %v1891 = vmul.f32 %v1871, 1.442695
  %v1892 = vpow.pop %v1891
  %v1893 = vmul.f32 %v1872, 1.442695
  %v1894 = vpow.pop %v1893
  %v1895 = vmul.f32 %v1873, 1.442695
  %v1896 = vpow.pop %v1895
  %v1897 = vmul.f32 %v1874, 1.442695
  %v1898 = vpow.pop %v1897
  %v1899 = vmul.f32 %v1875, 1.442695
  %v1900 = vpow.pop %v1899
  %v1901 = vmul.f32 %v1876, 1.442695
  %v1902 = vpow.pop %v1901
  %v1903 = vmul.f32 %v1877, 1.442695
  %v1904 = vpow.pop %v1903
  %v1905 = vmul.f32 %v1878, 1.442695
  %v1906 = vpow.pop %v1905
  %v1907 = vmul.f32 %v1879, 1.442695
  %v1908 = vpow.pop %v1907
  %v1909 = vmul.f32 %v1880, 1.442695
  %v1910 = vpow.pop %v1909
  %v1911 = vmul.f32 %v1881, 1.442695
  %v1912 = vpow.pop %v1911
  %v1913 = vmul.f32 %v1882, 1.442695
  %v1914 = vpow.pop %v1913
  %1931 = vset.pattern.permute.xlu0 0
  %1932 = vperm.xlu0 %1931, %v1884
  %v1933 = vpop.permute.xlu0 %1932
  %1934 = vset.pattern.permute.xlu0 0
  %1935 = vperm.xlu0 %1934, %v1886
  %v1936 = vpop.permute.xlu0 %1935
  %1937 = vset.pattern.permute.xlu0 0
  %1938 = vperm.xlu0 %1937, %v1888
  %v1939 = vpop.permute.xlu0 %1938
  %1940 = vset.pattern.permute.xlu0 0
  %1941 = vperm.xlu0 %1940, %v1890
  %v1942 = vpop.permute.xlu0 %1941
  %1943 = vset.pattern.permute.xlu0 0
  %1944 = vperm.xlu0 %1943, %v1892
  %v1945 = vpop.permute.xlu0 %1944
  %1946 = vset.pattern.permute.xlu0 0
  %1947 = vperm.xlu0 %1946, %v1894
  %v1948 = vpop.permute.xlu0 %1947
  %1949 = vset.pattern.permute.xlu0 0
  %1950 = vperm.xlu0 %1949, %v1896
  %v1951 = vpop.permute.xlu0 %1950
  %1952 = vset.pattern.permute.xlu0 0
  %1953 = vperm.xlu0 %1952, %v1898
  %v1954 = vpop.permute.xlu0 %1953
  %1955 = vset.pattern.permute.xlu0 0
  %1956 = vperm.xlu0 %1955, %v1900
  %v1957 = vpop.permute.xlu0 %1956
  %1958 = vset.pattern.permute.xlu0 0
  %1959 = vperm.xlu0 %1958, %v1902
  %v1960 = vpop.permute.xlu0 %1959
  %1961 = vset.pattern.permute.xlu0 0
  %1962 = vperm.xlu0 %1961, %v1904
  %v1963 = vpop.permute.xlu0 %1962
  %1964 = vset.pattern.permute.xlu0 0
  %1965 = vperm.xlu0 %1964, %v1906
  %v1966 = vpop.permute.xlu0 %1965
  %1967 = vset.pattern.permute.xlu0 0
  %1968 = vperm.xlu0 %1967, %v1908
  %v1969 = vpop.permute.xlu0 %1968
  %1970 = vset.pattern.permute.xlu0 0
  %1971 = vperm.xlu0 %1970, %v1910
  %v1972 = vpop.permute.xlu0 %1971
  %1973 = vset.pattern.permute.xlu0 0
  %1974 = vperm.xlu0 %1973, %v1912
  %v1975 = vpop.permute.xlu0 %1974
  %1976 = vset.pattern.permute.xlu0 0
  %1977 = vperm.xlu0 %1976, %v1914
  %v1978 = vpop.permute.xlu0 %1977
  %v1979 = vperm.slane %v1933, %v578
  %v1980 = vperm.slane %v1936, %v580
  %v1981 = vsel %vm582, %v1980, %v1979
  %v1982 = vperm.slane %v1939, %v584
  %v1983 = vsel %vm586, %v1982, %v1981
  %v1984 = vperm.slane %v1942, %v588
  %v1985 = vsel %vm590, %v1984, %v1983
  %v1986 = vperm.slane %v1945, %v592
  %v1987 = vsel %vm594, %v1986, %v1985
  %v1988 = vperm.slane %v1948, %v596
  %v1989 = vsel %vm598, %v1988, %v1987
  %v1990 = vperm.slane %v1951, %v600
  %v1991 = vsel %vm602, %v1990, %v1989
  %v1992 = vperm.slane %v1954, %v604
  %v1993 = vsel %vm606, %v1992, %v1991
  %v1994 = vperm.slane %v1957, %v578
  %v1995 = vperm.slane %v1960, %v580
  %v1996 = vsel %vm582, %v1995, %v1994
  %v1997 = vperm.slane %v1963, %v584
  %v1998 = vsel %vm586, %v1997, %v1996
  %v1999 = vperm.slane %v1966, %v588
  %v2000 = vsel %vm590, %v1999, %v1998
  %v2001 = vperm.slane %v1969, %v592
  %v2002 = vsel %vm594, %v2001, %v2000
  %v2003 = vperm.slane %v1972, %v596
  %v2004 = vsel %vm598, %v2003, %v2002
  %v2005 = vperm.slane %v1975, %v600
  %v2006 = vsel %vm602, %v2005, %v2004
  %v2007 = vperm.slane %v1978, %v604
  %v2008 = vsel %vm606, %v2007, %v2006
  %v2009 = vsel %vm424, %v2008, %v1993
  %v2011 = vsel %vm625, %v2009, 0.0
  %2012 = vadd.xlane.f32.xlu0 %v2011
  %v2013 = vpop.xlane.xlu0 %2012
  %v2014 = vrcp.pop %v2013
  %v2016 = vperm.slane %v2014, 0
  %v2017 = vperm.slane %v2014, 1
  %v2020 = vmul.f32 %v1884, %v2016
  %v2021 = vmul.f32 %v1886, %v2016
  %v2022 = vmul.f32 %v1888, %v2016
  %v2023 = vmul.f32 %v1890, %v2016
  %v2024 = vmul.f32 %v1892, %v2016
  %v2025 = vmul.f32 %v1894, %v2016
  %v2026 = vmul.f32 %v1896, %v2016
  %v2027 = vmul.f32 %v1898, %v2016
  %v2028 = vmul.f32 %v1900, %v2017
  %v2029 = vmul.f32 %v1902, %v2017
  %v2030 = vmul.f32 %v1904, %v2017
  %v2031 = vmul.f32 %v1906, %v2017
  %v2032 = vmul.f32 %v1908, %v2017
  %v2033 = vmul.f32 %v1910, %v2017
  %v2034 = vmul.f32 %v1912, %v2017
  %v2035 = vmul.f32 %v1914, %v2017
  %2037 = vset.pattern.permute.xlu0 0
  %2038 = vperm.xlu0 %2037, %v2020
  %v2039 = vpop.permute.xlu0 %2038
  %2042 = vset.pattern.permute.xlu0 0
  %2043 = vperm.xlu0 %2042, %v2021
  %v2044 = vpop.permute.xlu0 %2043
  %2047 = vset.pattern.permute.xlu0 0
  %2048 = vperm.xlu0 %2047, %v2022
  %v2049 = vpop.permute.xlu0 %2048
  %2052 = vset.pattern.permute.xlu0 0
  %2053 = vperm.xlu0 %2052, %v2023
  %v2054 = vpop.permute.xlu0 %2053
  %2057 = vset.pattern.permute.xlu0 0
  %2058 = vperm.xlu0 %2057, %v2024
  %v2059 = vpop.permute.xlu0 %2058
  %2062 = vset.pattern.permute.xlu0 0
  %2063 = vperm.xlu0 %2062, %v2025
  %v2064 = vpop.permute.xlu0 %2063
  %2067 = vset.pattern.permute.xlu0 0
  %2068 = vperm.xlu0 %2067, %v2026
  %v2069 = vpop.permute.xlu0 %2068
  %2072 = vset.pattern.permute.xlu0 0
  %2073 = vperm.xlu0 %2072, %v2027
  %v2074 = vpop.permute.xlu0 %2073
  %2077 = vset.pattern.permute.xlu0 0
  %2078 = vperm.xlu0 %2077, %v2028
  %v2079 = vpop.permute.xlu0 %2078
  %2082 = vset.pattern.permute.xlu0 0
  %2083 = vperm.xlu0 %2082, %v2029
  %v2084 = vpop.permute.xlu0 %2083
  %2087 = vset.pattern.permute.xlu0 0
  %2088 = vperm.xlu0 %2087, %v2030
  %v2089 = vpop.permute.xlu0 %2088
  %2092 = vset.pattern.permute.xlu0 0
  %2093 = vperm.xlu0 %2092, %v2031
  %v2094 = vpop.permute.xlu0 %2093
  %2097 = vset.pattern.permute.xlu0 0
  %2098 = vperm.xlu0 %2097, %v2032
  %v2099 = vpop.permute.xlu0 %2098
  %2102 = vset.pattern.permute.xlu0 0
  %2103 = vperm.xlu0 %2102, %v2033
  %v2104 = vpop.permute.xlu0 %2103
  %2107 = vset.pattern.permute.xlu0 0
  %2108 = vperm.xlu0 %2107, %v2034
  %v2109 = vpop.permute.xlu0 %2108
  %2112 = vset.pattern.permute.xlu0 0
  %2113 = vperm.xlu0 %2112, %v2035
  %v2114 = vpop.permute.xlu0 %2113
  %v2116 = vmul.f32 %v171, %v2039
  %v2117 = vmul.f32 %v172, %v2044
  %v2118 = vmul.f32 %v173, %v2049
  %v2119 = vmul.f32 %v174, %v2054
  %v2120 = vmul.f32 %v175, %v2059
  %v2121 = vmul.f32 %v176, %v2064
  %v2122 = vmul.f32 %v177, %v2069
  %v2123 = vmul.f32 %v178, %v2074
  %v2124 = vmul.f32 %v179, %v2079
  %v2125 = vmul.f32 %v180, %v2084
  %v2126 = vmul.f32 %v181, %v2089
  %v2127 = vmul.f32 %v182, %v2094
  %v2128 = vmul.f32 %v183, %v2099
  %v2129 = vmul.f32 %v184, %v2104
  %v2130 = vmul.f32 %v185, %v2109
  %v2131 = vmul.f32 %v186, %v2114
  %v2132 = vsel %vm192, %v2116, 0.0
  %v2133 = vsel %vm192, %v2117, 0.0
  %v2134 = vadd.f32 %v2132, %v2133
  %v2135 = vsel %vm192, %v2118, 0.0
  %v2136 = vadd.f32 %v2134, %v2135
  %v2137 = vsel %vm192, %v2119, 0.0
  %v2138 = vadd.f32 %v2136, %v2137
  %v2139 = vsel %vm192, %v2120, 0.0
  %v2140 = vadd.f32 %v2138, %v2139
  %v2141 = vsel %vm192, %v2121, 0.0
  %v2142 = vadd.f32 %v2140, %v2141
  %v2143 = vsel %vm192, %v2122, 0.0
  %v2144 = vadd.f32 %v2142, %v2143
  %v2145 = vsel %vm192, %v2123, 0.0
  %v2146 = vadd.f32 %v2144, %v2145
  %v2147 = vrot.slane %v2146, 4
  %v2148 = vadd.f32 %v2146, %v2147
  %v2149 = vrot.slane %v2148, 2
  %v2150 = vadd.f32 %v2148, %v2149
  %v2151 = vrot.slane %v2150, 1
  %v2152 = vadd.f32 %v2150, %v2151
  %v2153 = vsel %vm192, %v2124, 0.0
  %v2154 = vsel %vm192, %v2125, 0.0
  %v2155 = vadd.f32 %v2153, %v2154
  %v2156 = vsel %vm192, %v2126, 0.0
  %v2157 = vadd.f32 %v2155, %v2156
  %v2158 = vsel %vm192, %v2127, 0.0
  %v2159 = vadd.f32 %v2157, %v2158
  %v2160 = vsel %vm192, %v2128, 0.0
  %v2161 = vadd.f32 %v2159, %v2160
  %v2162 = vsel %vm192, %v2129, 0.0
  %v2163 = vadd.f32 %v2161, %v2162
  %v2164 = vsel %vm192, %v2130, 0.0
  %v2165 = vadd.f32 %v2163, %v2164
  %v2166 = vsel %vm192, %v2131, 0.0
  %v2167 = vadd.f32 %v2165, %v2166
  %v2168 = vrot.slane %v2167, 4
  %v2169 = vadd.f32 %v2167, %v2168
  %v2170 = vrot.slane %v2169, 2
  %v2171 = vadd.f32 %v2169, %v2170
  %v2172 = vrot.slane %v2171, 1
  %v2173 = vadd.f32 %v2171, %v2172
  %v2176 = vsel %vm424, %v2173, %v2152
  %2178 = vst [vmem:[#allocation1] ss:$4 sm:$0xff] %v1640
  %v2179 = vld.sshfl [vmem:[#allocation1] sm:$0xff pattern:$0x73625140]
  %2180 = vrot.lane.b32.xlu0 %v2179, 40
  %v2181 = vpop.permute.xlu0 %2180
  %v2183 = vsel %vm192, %v2176, %v2181
  %v2185 = vsel %vm949, %v2183, 0
  %2187 = vmatpush.msra.mxu0 0.0
  %2188 = vmatpush.msra.mxu0 0.0
  %2189 = vmatpush.msra.mxu0 0.0
  %2190 = vmatpush.msra.mxu0 0.0
  %2191 = vmatpush.msra.mxu0 0.0
  %2192 = vmatpush.msra.mxu0 0.0
  %2193 = vmatpush.msra.mxu0 0.0
  %2194 = vmatpush.msra.mxu0 0.0
  %2195 = vmatpush.msra.mxu0 0.0
  %2196 = vmatpush.msra.mxu0 0.0
  %2197 = vmatpush.msra.mxu0 0.0
  %2198 = vmatpush.msra.mxu0 %v416
  %2199 = vmatpush.msra.mxu0 %v415
  %2200 = vmatpush.msra.mxu0 %v414
  %2201 = vmatpush.msra.mxu0 %v413
  %2202 = vmatpush.msra.mxu0 %v412
  %2203 = vmatmul.f32.gmra.mxu0 %v2185
  %v2204 = vpop.f32.mrf.mxu0
  %v2205 = vadd.f32 0.0, %v2204
  %2206 = vdwg.mxu0
  %v2207 = vadd.f32 %v400, %v2205
  %v2208 = vxor.u32 %v2207, 2147483648
  %v2209 = vmul.f32 %v2208, 1.442695
  %v2210 = vpow.pop %v2209
  %v2211 = vadd.f32 %v2210, 1.0
  %v2212 = vrcp.pop %v2211
  %v2213 = vmul.f32 %v2211, %v2212
  %v2214 = vsub.f32 1.0, %v2213
  %v2215 = vmul.f32 %v2212, %v2214
  %v2216 = vadd.f32 %v2212, %v2215
  %vm2217 = vweird.f32 %v2211
  %vm2218 = vweird.f32 %v2212
  %vm2219 = vmor %vm2217, %vm2218
  %v2220 = vsel %vm2219, %v2212, %v2216
  %v2221 = vand.u32 2147483647, %v2211
  %vm2222 = vcmp.eq.f32.partialorder %v2221, 8.507059e+37
  %v2223 = vand.u32 %v2211, 2147483648
  %v2224 = vor.u32 1.1754944e-38, %v2223
  %v2225 = vsel %vm2222, %v2224, %v2220
  %v2226 = vmul.f32 1.0, %v2225
  %v2227 = vtanh.pop %v2207
  %v2228 = vmul.f32 %v2226, %v1634
  %2230 = vrot.lane.b32.xlu0 %v2227, 64
  %v2231 = vpop.permute.xlu0 %2230
  %v2233 = vmul.f32 %v2226, %v2231
  %2235 = vrot.lane.b32.xlu0 %v2233, 32
  %v2236 = vpop.permute.xlu0 %2235
  %v2238 = vadd.f32 %v2228, %v2236
  %v2239 = vtanh.pop %v2238
  %2241 = vrot.lane.b32.xlu0 %v2239, 64
  %v2242 = vpop.permute.xlu0 %2241
  %v2244 = vmul.f32 %v2226, %v2242
  %2246 = vst [vmem:[#allocation1] ss:$4 sm:$0xff] %v2244
  %v2247 = vld.sshfl [vmem:[#allocation1] sm:$0xff pattern:$0x73625140]
  %2248 = vrot.lane.b32.xlu0 %v2247, 32
  %v2249 = vpop.permute.xlu0 %2248
  %v2250 = vsel %vm428, %v2249, 0
  %2252 = vmatpush.msra.mxu0 0.0
  %2253 = vmatpush.msra.mxu0 0.0
  %2254 = vmatpush.msra.mxu0 0.0
  %2255 = vmatpush.msra.mxu0 0.0
  %2256 = vmatpush.msra.mxu0 0.0
  %2257 = vmatpush.msra.mxu0 0.0
  %2258 = vmatpush.msra.mxu0 0.0
  %2259 = vmatpush.msra.mxu0 0.0
  %2260 = vmatpush.msra.mxu0 0.0
  %2261 = vmatpush.msra.mxu0 0.0
  %2262 = vmatpush.msra.mxu0 0.0
  %2263 = vmatpush.msra.mxu0 0.0
  %2264 = vmatpush.msra.mxu0 %v420
  %2265 = vmatpush.msra.mxu0 %v419
  %2266 = vmatpush.msra.mxu0 %v418
  %2267 = vmatpush.msra.mxu0 %v417
  %2268 = vmatmul.f32.gmra.mxu0 %v2250
  %v2269 = vpop.f32.mrf.mxu0
  %v2270 = vadd.f32 0.0, %v2269
  %2271 = vdwg.mxu0
  %v2272 = vadd.f32 %v2270, %v1054
  %v2273 = vperm.slane %v2039, %v592
  %v2274 = vperm.slane %v2044, %v596
  %v2275 = vsel %vm598, %v2274, %v2273
  %v2276 = vperm.slane %v2049, %v600
  %v2277 = vsel %vm602, %v2276, %v2275
  %v2278 = vperm.slane %v2054, %v604
  %v2279 = vsel %vm606, %v2278, %v2277
  %v2280 = vperm.slane %v2059, %v1064
  %v2281 = vsel %vm1066, %v2280, %v2279
  %v2282 = vperm.slane %v2064, %v1068
  %v2283 = vsel %vm1070, %v2282, %v2281
  %v2284 = vperm.slane %v2069, %v1072
  %v2285 = vsel %vm1074, %v2284, %v2283
  %v2286 = vperm.slane %v2074, %v1076
  %v2287 = vsel %vm1078, %v2286, %v2285
  %v2288 = vperm.slane %v2079, %v592
  %v2289 = vperm.slane %v2084, %v596
  %v2290 = vsel %vm598, %v2289, %v2288
  %v2291 = vperm.slane %v2089, %v600
  %v2292 = vsel %vm602, %v2291, %v2290
  %v2293 = vperm.slane %v2094, %v604
  %v2294 = vsel %vm606, %v2293, %v2292
  %v2295 = vperm.slane %v2099, %v1064
  %v2296 = vsel %vm1066, %v2295, %v2294
  %v2297 = vperm.slane %v2104, %v1068
  %v2298 = vsel %vm1070, %v2297, %v2296
  %v2299 = vperm.slane %v2109, %v1072
  %v2300 = vsel %vm1074, %v2299, %v2298
  %v2301 = vperm.slane %v2114, %v1076
  %v2302 = vsel %vm1078, %v2301, %v2300
  %v2303 = vsel %vm424, %v2302, %v2287
  %v2305 = vsel %vm428, %v2272, %v2303
  %v2306 = vsel %vm1098, %v2305, 0.0
  %s2307 = scalar_lea.vmem %s10, 4
  %2308 = vst [vmem:[%s2307] sm:$0x3] %v2306
  %v2310 = vrot.slane %v2270, 1
  %v2311 = vperm.slane %v2270, 0
  %v2312 = vperm.slane %v2310, 0
  %2313 = vrot.lane.b32.xlu0 %v2311, 96
  %v2314 = vpop.permute.xlu0 %2313
  %2315 = vrot.lane.b32.xlu0 %v2312, 96
  %v2316 = vpop.permute.xlu0 %2315
  %v2319 = vadd.f32 %v259, %v2314
  %v2320 = vadd.f32 %v262, %v2314
  %v2321 = vadd.f32 %v265, %v2314
  %v2322 = vadd.f32 %v268, %v2314
  %v2323 = vadd.f32 %v271, %v2314
  %v2324 = vadd.f32 %v274, %v2314
  %v2325 = vadd.f32 %v277, %v2314
  %v2326 = vadd.f32 %v280, %v2314
  %v2327 = vadd.f32 %v283, %v2316
  %v2328 = vadd.f32 %v286, %v2316
  %v2329 = vadd.f32 %v289, %v2316
  %v2330 = vadd.f32 %v292, %v2316
  %v2331 = vadd.f32 %v295, %v2316
  %v2332 = vadd.f32 %v298, %v2316
  %v2333 = vadd.f32 %v301, %v2316
  %v2334 = vadd.f32 %v304, %v2316
  %v2335 = vtanh.pop %v2319
  %v2336 = vtanh.pop %v2320
  %v2337 = vtanh.pop %v2321
  %v2338 = vtanh.pop %v2322
  %v2339 = vtanh.pop %v2323
  %v2340 = vtanh.pop %v2324
  %v2341 = vtanh.pop %v2325
  %v2342 = vtanh.pop %v2326
  %v2343 = vtanh.pop %v2327
  %v2344 = vtanh.pop %v2328
  %v2345 = vtanh.pop %v2329
  %v2346 = vtanh.pop %v2330
  %v2347 = vtanh.pop %v2331
  %v2348 = vtanh.pop %v2332
  %v2349 = vtanh.pop %v2333
  %v2350 = vtanh.pop %v2334
  %v2351 = vmul.f32 %v2335, %v494
  %v2352 = vmul.f32 %v2336, %v494
  %v2353 = vmul.f32 %v2337, %v494
  %v2354 = vmul.f32 %v2338, %v494
  %v2355 = vmul.f32 %v2339, %v494
  %v2356 = vmul.f32 %v2340, %v494
  %v2357 = vmul.f32 %v2341, %v494
  %v2358 = vmul.f32 %v2342, %v494
  %v2359 = vmul.f32 %v2343, %v494
  %v2360 = vmul.f32 %v2344, %v494
  %v2361 = vmul.f32 %v2345, %v494
  %v2362 = vmul.f32 %v2346, %v494
  %v2363 = vmul.f32 %v2347, %v494
  %v2364 = vmul.f32 %v2348, %v494
  %v2365 = vmul.f32 %v2349, %v494
  %v2366 = vmul.f32 %v2350, %v494
  %v2367 = vsel %vm512, %v2351, 0.0
  %2368 = vadd.xlane.f32.xlu0 %v2367
  %v2369 = vpop.xlane.xlu0 %2368
  %v2370 = vsel %vm512, %v2352, 0.0
  %2371 = vadd.xlane.f32.xlu0 %v2370
  %v2372 = vpop.xlane.xlu0 %2371
  %v2373 = vsel %vm512, %v2353, 0.0
  %2374 = vadd.xlane.f32.xlu0 %v2373
  %v2375 = vpop.xlane.xlu0 %2374
  %v2376 = vsel %vm512, %v2354, 0.0
  %2377 = vadd.xlane.f32.xlu0 %v2376
  %v2378 = vpop.xlane.xlu0 %2377
  %v2379 = vsel %vm512, %v2355, 0.0
  %2380 = vadd.xlane.f32.xlu0 %v2379
  %v2381 = vpop.xlane.xlu0 %2380
  %v2382 = vsel %vm512, %v2356, 0.0
  %2383 = vadd.xlane.f32.xlu0 %v2382
  %v2384 = vpop.xlane.xlu0 %2383
  %v2385 = vsel %vm512, %v2357, 0.0
  %2386 = vadd.xlane.f32.xlu0 %v2385
  %v2387 = vpop.xlane.xlu0 %2386
  %v2388 = vsel %vm512, %v2358, 0.0
  %2389 = vadd.xlane.f32.xlu0 %v2388
  %v2390 = vpop.xlane.xlu0 %2389
  %v2391 = vsel %vm512, %v2359, 0.0
  %2392 = vadd.xlane.f32.xlu0 %v2391
  %v2393 = vpop.xlane.xlu0 %2392
  %v2394 = vsel %vm512, %v2360, 0.0
  %2395 = vadd.xlane.f32.xlu0 %v2394
  %v2396 = vpop.xlane.xlu0 %2395
  %v2397 = vsel %vm512, %v2361, 0.0
  %2398 = vadd.xlane.f32.xlu0 %v2397
  %v2399 = vpop.xlane.xlu0 %2398
  %v2400 = vsel %vm512, %v2362, 0.0
  %2401 = vadd.xlane.f32.xlu0 %v2400
  %v2402 = vpop.xlane.xlu0 %2401
  %v2403 = vsel %vm512, %v2363, 0.0
  %2404 = vadd.xlane.f32.xlu0 %v2403
  %v2405 = vpop.xlane.xlu0 %2404
  %v2406 = vsel %vm512, %v2364, 0.0
  %2407 = vadd.xlane.f32.xlu0 %v2406
  %v2408 = vpop.xlane.xlu0 %2407
  %v2409 = vsel %vm512, %v2365, 0.0
  %2410 = vadd.xlane.f32.xlu0 %v2409
  %v2411 = vpop.xlane.xlu0 %2410
  %v2412 = vsel %vm512, %v2366, 0.0
  %2413 = vadd.xlane.f32.xlu0 %v2412
  %v2414 = vpop.xlane.xlu0 %2413
  %v2431 = vperm.slane %v2369, %v578
  %v2432 = vperm.slane %v2372, %v580
  %v2433 = vsel %vm582, %v2432, %v2431
  %v2434 = vperm.slane %v2375, %v584
  %v2435 = vsel %vm586, %v2434, %v2433
  %v2436 = vperm.slane %v2378, %v588
  %v2437 = vsel %vm590, %v2436, %v2435
  %v2438 = vperm.slane %v2381, %v592
  %v2439 = vsel %vm594, %v2438, %v2437
  %v2440 = vperm.slane %v2384, %v596
  %v2441 = vsel %vm598, %v2440, %v2439
  %v2442 = vperm.slane %v2387, %v600
  %v2443 = vsel %vm602, %v2442, %v2441
  %v2444 = vperm.slane %v2390, %v604
  %v2445 = vsel %vm606, %v2444, %v2443
  %v2446 = vperm.slane %v2393, %v578
  %v2447 = vperm.slane %v2396, %v580
  %v2448 = vsel %vm582, %v2447, %v2446
  %v2449 = vperm.slane %v2399, %v584
  %v2450 = vsel %vm586, %v2449, %v2448
  %v2451 = vperm.slane %v2402, %v588
  %v2452 = vsel %vm590, %v2451, %v2450
  %v2453 = vperm.slane %v2405, %v592
  %v2454 = vsel %vm594, %v2453, %v2452
  %v2455 = vperm.slane %v2408, %v596
  %v2456 = vsel %vm598, %v2455, %v2454
  %v2457 = vperm.slane %v2411, %v600
  %v2458 = vsel %vm602, %v2457, %v2456
  %v2459 = vperm.slane %v2414, %v604
  %v2460 = vsel %vm606, %v2459, %v2458
  %v2461 = vsel %vm424, %v2460, %v2445
  %v2463 = vsel %vm625, %v2461, -inf
  %2464 = vmax.xlane.f32.xlu0 %v2463
  %v2465 = vpop.xlane.xlu0 %2464
  %v2467 = vperm.slane %v2465, 0
  %v2468 = vperm.slane %v2465, 1
  %v2471 = vsub.f32 %v2369, %v2467
  %v2472 = vsub.f32 %v2372, %v2467
  %v2473 = vsub.f32 %v2375, %v2467
  %v2474 = vsub.f32 %v2378, %v2467
  %v2475 = vsub.f32 %v2381, %v2467
  %v2476 = vsub.f32 %v2384, %v2467
  %v2477 = vsub.f32 %v2387, %v2467
  %v2478 = vsub.f32 %v2390, %v2467
  %v2479 = vsub.f32 %v2393, %v2468
  %v2480 = vsub.f32 %v2396, %v2468
  %v2481 = vsub.f32 %v2399, %v2468
  %v2482 = vsub.f32 %v2402, %v2468
  %v2483 = vsub.f32 %v2405, %v2468
  %v2484 = vsub.f32 %v2408, %v2468
  %v2485 = vsub.f32 %v2411, %v2468
  %v2486 = vsub.f32 %v2414, %v2468
  %v2487 = vmul.f32 %v2471, 1.442695
  %v2488 = vpow.pop %v2487
  %v2489 = vmul.f32 %v2472, 1.442695
  %v2490 = vpow.pop %v2489
  %v2491 = vmul.f32 %v2473, 1.442695
  %v2492 = vpow.pop %v2491
  %v2493 = vmul.f32 %v2474, 1.442695
  %v2494 = vpow.pop %v2493
  %v2495 = vmul.f32 %v2475, 1.442695
  %v2496 = vpow.pop %v2495
  %v2497 = vmul.f32 %v2476, 1.442695
  %v2498 = vpow.pop %v2497
  %v2499 = vmul.f32 %v2477, 1.442695
  %v2500 = vpow.pop %v2499
  %v2501 = vmul.f32 %v2478, 1.442695
  %v2502 = vpow.pop %v2501
  %v2503 = vmul.f32 %v2479, 1.442695
  %v2504 = vpow.pop %v2503
  %v2505 = vmul.f32 %v2480, 1.442695
  %v2506 = vpow.pop %v2505
  %v2507 = vmul.f32 %v2481, 1.442695
  %v2508 = vpow.pop %v2507
  %v2509 = vmul.f32 %v2482, 1.442695
  %v2510 = vpow.pop %v2509
  %v2511 = vmul.f32 %v2483, 1.442695
  %v2512 = vpow.pop %v2511
  %v2513 = vmul.f32 %v2484, 1.442695
  %v2514 = vpow.pop %v2513
  %v2515 = vmul.f32 %v2485, 1.442695
  %v2516 = vpow.pop %v2515
  %v2517 = vmul.f32 %v2486, 1.442695
  %v2518 = vpow.pop %v2517
  %2535 = vset.pattern.permute.xlu0 0
  %2536 = vperm.xlu0 %2535, %v2488
  %v2537 = vpop.permute.xlu0 %2536
  %2538 = vset.pattern.permute.xlu0 0
  %2539 = vperm.xlu0 %2538, %v2490
  %v2540 = vpop.permute.xlu0 %2539
  %2541 = vset.pattern.permute.xlu0 0
  %2542 = vperm.xlu0 %2541, %v2492
  %v2543 = vpop.permute.xlu0 %2542
  %2544 = vset.pattern.permute.xlu0 0
  %2545 = vperm.xlu0 %2544, %v2494
  %v2546 = vpop.permute.xlu0 %2545
  %2547 = vset.pattern.permute.xlu0 0
  %2548 = vperm.xlu0 %2547, %v2496
  %v2549 = vpop.permute.xlu0 %2548
  %2550 = vset.pattern.permute.xlu0 0
  %2551 = vperm.xlu0 %2550, %v2498
  %v2552 = vpop.permute.xlu0 %2551
  %2553 = vset.pattern.permute.xlu0 0
  %2554 = vperm.xlu0 %2553, %v2500
  %v2555 = vpop.permute.xlu0 %2554
  %2556 = vset.pattern.permute.xlu0 0
  %2557 = vperm.xlu0 %2556, %v2502
  %v2558 = vpop.permute.xlu0 %2557
  %2559 = vset.pattern.permute.xlu0 0
  %2560 = vperm.xlu0 %2559, %v2504
  %v2561 = vpop.permute.xlu0 %2560
  %2562 = vset.pattern.permute.xlu0 0
  %2563 = vperm.xlu0 %2562, %v2506
  %v2564 = vpop.permute.xlu0 %2563
  %2565 = vset.pattern.permute.xlu0 0
  %2566 = vperm.xlu0 %2565, %v2508
  %v2567 = vpop.permute.xlu0 %2566
  %2568 = vset.pattern.permute.xlu0 0
  %2569 = vperm.xlu0 %2568, %v2510
  %v2570 = vpop.permute.xlu0 %2569
  %2571 = vset.pattern.permute.xlu0 0
  %2572 = vperm.xlu0 %2571, %v2512
  %v2573 = vpop.permute.xlu0 %2572
  %2574 = vset.pattern.permute.xlu0 0
  %2575 = vperm.xlu0 %2574, %v2514
  %v2576 = vpop.permute.xlu0 %2575
  %2577 = vset.pattern.permute.xlu0 0
  %2578 = vperm.xlu0 %2577, %v2516
  %v2579 = vpop.permute.xlu0 %2578
  %2580 = vset.pattern.permute.xlu0 0
  %2581 = vperm.xlu0 %2580, %v2518
  %v2582 = vpop.permute.xlu0 %2581
  %v2583 = vperm.slane %v2537, %v578
  %v2584 = vperm.slane %v2540, %v580
  %v2585 = vsel %vm582, %v2584, %v2583
  %v2586 = vperm.slane %v2543, %v584
  %v2587 = vsel %vm586, %v2586, %v2585
  %v2588 = vperm.slane %v2546, %v588
  %v2589 = vsel %vm590, %v2588, %v2587
  %v2590 = vperm.slane %v2549, %v592
  %v2591 = vsel %vm594, %v2590, %v2589
  %v2592 = vperm.slane %v2552, %v596
  %v2593 = vsel %vm598, %v2592, %v2591
  %v2594 = vperm.slane %v2555, %v600
  %v2595 = vsel %vm602, %v2594, %v2593
  %v2596 = vperm.slane %v2558, %v604
  %v2597 = vsel %vm606, %v2596, %v2595
  %v2598 = vperm.slane %v2561, %v578
  %v2599 = vperm.slane %v2564, %v580
  %v2600 = vsel %vm582, %v2599, %v2598
  %v2601 = vperm.slane %v2567, %v584
  %v2602 = vsel %vm586, %v2601, %v2600
  %v2603 = vperm.slane %v2570, %v588
  %v2604 = vsel %vm590, %v2603, %v2602
  %v2605 = vperm.slane %v2573, %v592
  %v2606 = vsel %vm594, %v2605, %v2604
  %v2607 = vperm.slane %v2576, %v596
  %v2608 = vsel %vm598, %v2607, %v2606
  %v2609 = vperm.slane %v2579, %v600
  %v2610 = vsel %vm602, %v2609, %v2608
  %v2611 = vperm.slane %v2582, %v604
  %v2612 = vsel %vm606, %v2611, %v2610
  %v2613 = vsel %vm424, %v2612, %v2597
  %v2615 = vsel %vm625, %v2613, 0.0
  %2616 = vadd.xlane.f32.xlu0 %v2615
  %v2617 = vpop.xlane.xlu0 %2616
  %v2618 = vrcp.pop %v2617
  %v2620 = vperm.slane %v2618, 0
  %v2621 = vperm.slane %v2618, 1
  %v2624 = vmul.f32 %v2488, %v2620
  %v2625 = vmul.f32 %v2490, %v2620
  %v2626 = vmul.f32 %v2492, %v2620
  %v2627 = vmul.f32 %v2494, %v2620
  %v2628 = vmul.f32 %v2496, %v2620
  %v2629 = vmul.f32 %v2498, %v2620
  %v2630 = vmul.f32 %v2500, %v2620
  %v2631 = vmul.f32 %v2502, %v2620
  %v2632 = vmul.f32 %v2504, %v2621
  %v2633 = vmul.f32 %v2506, %v2621
  %v2634 = vmul.f32 %v2508, %v2621
  %v2635 = vmul.f32 %v2510, %v2621
  %v2636 = vmul.f32 %v2512, %v2621
  %v2637 = vmul.f32 %v2514, %v2621
  %v2638 = vmul.f32 %v2516, %v2621
  %v2639 = vmul.f32 %v2518, %v2621
  %2641 = vset.pattern.permute.xlu0 0
  %2642 = vperm.xlu0 %2641, %v2624
  %v2643 = vpop.permute.xlu0 %2642
  %2646 = vset.pattern.permute.xlu0 0
  %2647 = vperm.xlu0 %2646, %v2625
  %v2648 = vpop.permute.xlu0 %2647
  %2651 = vset.pattern.permute.xlu0 0
  %2652 = vperm.xlu0 %2651, %v2626
  %v2653 = vpop.permute.xlu0 %2652
  %2656 = vset.pattern.permute.xlu0 0
  %2657 = vperm.xlu0 %2656, %v2627
  %v2658 = vpop.permute.xlu0 %2657
  %2661 = vset.pattern.permute.xlu0 0
  %2662 = vperm.xlu0 %2661, %v2628
  %v2663 = vpop.permute.xlu0 %2662
  %2666 = vset.pattern.permute.xlu0 0
  %2667 = vperm.xlu0 %2666, %v2629
  %v2668 = vpop.permute.xlu0 %2667
  %2671 = vset.pattern.permute.xlu0 0
  %2672 = vperm.xlu0 %2671, %v2630
  %v2673 = vpop.permute.xlu0 %2672
  %2676 = vset.pattern.permute.xlu0 0
  %2677 = vperm.xlu0 %2676, %v2631
  %v2678 = vpop.permute.xlu0 %2677
  %2681 = vset.pattern.permute.xlu0 0
  %2682 = vperm.xlu0 %2681, %v2632
  %v2683 = vpop.permute.xlu0 %2682
  %2686 = vset.pattern.permute.xlu0 0
  %2687 = vperm.xlu0 %2686, %v2633
  %v2688 = vpop.permute.xlu0 %2687
  %2691 = vset.pattern.permute.xlu0 0
  %2692 = vperm.xlu0 %2691, %v2634
  %v2693 = vpop.permute.xlu0 %2692
  %2696 = vset.pattern.permute.xlu0 0
  %2697 = vperm.xlu0 %2696, %v2635
  %v2698 = vpop.permute.xlu0 %2697
  %2701 = vset.pattern.permute.xlu0 0
  %2702 = vperm.xlu0 %2701, %v2636
  %v2703 = vpop.permute.xlu0 %2702
  %2706 = vset.pattern.permute.xlu0 0
  %2707 = vperm.xlu0 %2706, %v2637
  %v2708 = vpop.permute.xlu0 %2707
  %2711 = vset.pattern.permute.xlu0 0
  %2712 = vperm.xlu0 %2711, %v2638
  %v2713 = vpop.permute.xlu0 %2712
  %2716 = vset.pattern.permute.xlu0 0
  %2717 = vperm.xlu0 %2716, %v2639
  %v2718 = vpop.permute.xlu0 %2717
  %v2720 = vmul.f32 %v171, %v2643
  %v2721 = vmul.f32 %v172, %v2648
  %v2722 = vmul.f32 %v173, %v2653
  %v2723 = vmul.f32 %v174, %v2658
  %v2724 = vmul.f32 %v175, %v2663
  %v2725 = vmul.f32 %v176, %v2668
  %v2726 = vmul.f32 %v177, %v2673
  %v2727 = vmul.f32 %v178, %v2678
  %v2728 = vmul.f32 %v179, %v2683
  %v2729 = vmul.f32 %v180, %v2688
  %v2730 = vmul.f32 %v181, %v2693
  %v2731 = vmul.f32 %v182, %v2698
  %v2732 = vmul.f32 %v183, %v2703
  %v2733 = vmul.f32 %v184, %v2708
  %v2734 = vmul.f32 %v185, %v2713
  %v2735 = vmul.f32 %v186, %v2718
  %v2736 = vsel %vm192, %v2720, 0.0
  %v2737 = vsel %vm192, %v2721, 0.0
  %v2738 = vadd.f32 %v2736, %v2737
  %v2739 = vsel %vm192, %v2722, 0.0
  %v2740 = vadd.f32 %v2738, %v2739
  %v2741 = vsel %vm192, %v2723, 0.0
  %v2742 = vadd.f32 %v2740, %v2741
  %v2743 = vsel %vm192, %v2724, 0.0
  %v2744 = vadd.f32 %v2742, %v2743
  %v2745 = vsel %vm192, %v2725, 0.0
  %v2746 = vadd.f32 %v2744, %v2745
  %v2747 = vsel %vm192, %v2726, 0.0
  %v2748 = vadd.f32 %v2746, %v2747
  %v2749 = vsel %vm192, %v2727, 0.0
  %v2750 = vadd.f32 %v2748, %v2749
  %v2751 = vrot.slane %v2750, 4
  %v2752 = vadd.f32 %v2750, %v2751
  %v2753 = vrot.slane %v2752, 2
  %v2754 = vadd.f32 %v2752, %v2753
  %v2755 = vrot.slane %v2754, 1
  %v2756 = vadd.f32 %v2754, %v2755
  %v2757 = vsel %vm192, %v2728, 0.0
  %v2758 = vsel %vm192, %v2729, 0.0
  %v2759 = vadd.f32 %v2757, %v2758
  %v2760 = vsel %vm192, %v2730, 0.0
  %v2761 = vadd.f32 %v2759, %v2760
  %v2762 = vsel %vm192, %v2731, 0.0
  %v2763 = vadd.f32 %v2761, %v2762
  %v2764 = vsel %vm192, %v2732, 0.0
  %v2765 = vadd.f32 %v2763, %v2764
  %v2766 = vsel %vm192, %v2733, 0.0
  %v2767 = vadd.f32 %v2765, %v2766
  %v2768 = vsel %vm192, %v2734, 0.0
  %v2769 = vadd.f32 %v2767, %v2768
  %v2770 = vsel %vm192, %v2735, 0.0
  %v2771 = vadd.f32 %v2769, %v2770
  %v2772 = vrot.slane %v2771, 4
  %v2773 = vadd.f32 %v2771, %v2772
  %v2774 = vrot.slane %v2773, 2
  %v2775 = vadd.f32 %v2773, %v2774
  %v2776 = vrot.slane %v2775, 1
  %v2777 = vadd.f32 %v2775, %v2776
  %v2780 = vsel %vm424, %v2777, %v2756
  %2782 = vst [vmem:[#allocation1] ss:$4 sm:$0xff] %v2244
  %v2783 = vld.sshfl [vmem:[#allocation1] sm:$0xff pattern:$0x73625140]
  %2784 = vrot.lane.b32.xlu0 %v2783, 40
  %v2785 = vpop.permute.xlu0 %2784
  %v2787 = vsel %vm192, %v2780, %v2785
  %v2789 = vsel %vm949, %v2787, 0
  %2791 = vmatpush.msra.mxu0 0.0
  %2792 = vmatpush.msra.mxu0 0.0
  %2793 = vmatpush.msra.mxu0 0.0
  %2794 = vmatpush.msra.mxu0 0.0
  %2795 = vmatpush.msra.mxu0 0.0
  %2796 = vmatpush.msra.mxu0 0.0
  %2797 = vmatpush.msra.mxu0 0.0
  %2798 = vmatpush.msra.mxu0 0.0
  %2799 = vmatpush.msra.mxu0 0.0
  %2800 = vmatpush.msra.mxu0 0.0
  %2801 = vmatpush.msra.mxu0 0.0
  %2802 = vmatpush.msra.mxu0 %v416
  %2803 = vmatpush.msra.mxu0 %v415
  %2804 = vmatpush.msra.mxu0 %v414
  %2805 = vmatpush.msra.mxu0 %v413
  %2806 = vmatpush.msra.mxu0 %v412
  %2807 = vmatmul.f32.gmra.mxu0 %v2789
  %v2808 = vpop.f32.mrf.mxu0
  %v2809 = vadd.f32 0.0, %v2808
  %2810 = vdwg.mxu0
  %v2811 = vadd.f32 %v401, %v2809
  %v2812 = vxor.u32 %v2811, 2147483648
  %v2813 = vmul.f32 %v2812, 1.442695
  %v2814 = vpow.pop %v2813
  %v2815 = vadd.f32 %v2814, 1.0
  %v2816 = vrcp.pop %v2815
  %v2817 = vmul.f32 %v2815, %v2816
  %v2818 = vsub.f32 1.0, %v2817
  %v2819 = vmul.f32 %v2816, %v2818
  %v2820 = vadd.f32 %v2816, %v2819
  %vm2821 = vweird.f32 %v2815
  %vm2822 = vweird.f32 %v2816
  %vm2823 = vmor %vm2821, %vm2822
  %v2824 = vsel %vm2823, %v2816, %v2820
  %v2825 = vand.u32 2147483647, %v2815
  %vm2826 = vcmp.eq.f32.partialorder %v2825, 8.507059e+37
  %v2827 = vand.u32 %v2815, 2147483648
  %v2828 = vor.u32 1.1754944e-38, %v2827
  %v2829 = vsel %vm2826, %v2828, %v2824
  %v2830 = vmul.f32 1.0, %v2829
  %v2831 = vtanh.pop %v2811
  %v2832 = vmul.f32 %v2830, %v2238
  %2834 = vrot.lane.b32.xlu0 %v2831, 64
  %v2835 = vpop.permute.xlu0 %2834
  %v2837 = vmul.f32 %v2830, %v2835
  %2839 = vrot.lane.b32.xlu0 %v2837, 32
  %v2840 = vpop.permute.xlu0 %2839
  %v2842 = vadd.f32 %v2832, %v2840
  %v2843 = vtanh.pop %v2842
  %2845 = vrot.lane.b32.xlu0 %v2843, 64
  %v2846 = vpop.permute.xlu0 %2845
  %v2848 = vmul.f32 %v2830, %v2846
  %2850 = vst [vmem:[#allocation1] ss:$4 sm:$0xff] %v2848
  %v2851 = vld.sshfl [vmem:[#allocation1] sm:$0xff pattern:$0x73625140]
  %2852 = vrot.lane.b32.xlu0 %v2851, 32
  %v2853 = vpop.permute.xlu0 %2852
  %v2854 = vsel %vm428, %v2853, 0
  %2856 = vmatpush.msra.mxu0 0.0
  %2857 = vmatpush.msra.mxu0 0.0
  %2858 = vmatpush.msra.mxu0 0.0
  %2859 = vmatpush.msra.mxu0 0.0
  %2860 = vmatpush.msra.mxu0 0.0
  %2861 = vmatpush.msra.mxu0 0.0
  %2862 = vmatpush.msra.mxu0 0.0
  %2863 = vmatpush.msra.mxu0 0.0
  %2864 = vmatpush.msra.mxu0 0.0
  %2865 = vmatpush.msra.mxu0 0.0
  %2866 = vmatpush.msra.mxu0 0.0
  %2867 = vmatpush.msra.mxu0 0.0
  %2868 = vmatpush.msra.mxu0 %v420
  %2869 = vmatpush.msra.mxu0 %v419
  %2870 = vmatpush.msra.mxu0 %v418
  %2871 = vmatpush.msra.mxu0 %v417
  %2872 = vmatmul.f32.gmra.mxu0 %v2854
  %v2873 = vpop.f32.mrf.mxu0
  %v2874 = vadd.f32 0.0, %v2873
  %2875 = vdwg.mxu0
  %v2876 = vadd.f32 %v2874, %v1054
  %v2877 = vperm.slane %v2643, %v592
  %v2878 = vperm.slane %v2648, %v596
  %v2879 = vsel %vm598, %v2878, %v2877
  %v2880 = vperm.slane %v2653, %v600
  %v2881 = vsel %vm602, %v2880, %v2879
  %v2882 = vperm.slane %v2658, %v604
  %v2883 = vsel %vm606, %v2882, %v2881
  %v2884 = vperm.slane %v2663, %v1064
  %v2885 = vsel %vm1066, %v2884, %v2883
  %v2886 = vperm.slane %v2668, %v1068
  %v2887 = vsel %vm1070, %v2886, %v2885
  %v2888 = vperm.slane %v2673, %v1072
  %v2889 = vsel %vm1074, %v2888, %v2887
  %v2890 = vperm.slane %v2678, %v1076
  %v2891 = vsel %vm1078, %v2890, %v2889
  %v2892 = vperm.slane %v2683, %v592
  %v2893 = vperm.slane %v2688, %v596
  %v2894 = vsel %vm598, %v2893, %v2892
  %v2895 = vperm.slane %v2693, %v600
  %v2896 = vsel %vm602, %v2895, %v2894
  %v2897 = vperm.slane %v2698, %v604
  %v2898 = vsel %vm606, %v2897, %v2896
  %v2899 = vperm.slane %v2703, %v1064
  %v2900 = vsel %vm1066, %v2899, %v2898
  %v2901 = vperm.slane %v2708, %v1068
  %v2902 = vsel %vm1070, %v2901, %v2900
  %v2903 = vperm.slane %v2713, %v1072
  %v2904 = vsel %vm1074, %v2903, %v2902
  %v2905 = vperm.slane %v2718, %v1076
  %v2906 = vsel %vm1078, %v2905, %v2904
  %v2907 = vsel %vm424, %v2906, %v2891
  %v2909 = vsel %vm428, %v2876, %v2907
  %v2910 = vsel %vm1098, %v2909, 0.0
  %s2911 = scalar_lea.vmem %s10, 6
  %2912 = vst [vmem:[%s2911] sm:$0x3] %v2910
  %v2914 = vrot.slane %v2874, 1
  %v2915 = vperm.slane %v2874, 0
  %v2916 = vperm.slane %v2914, 0
  %2917 = vrot.lane.b32.xlu0 %v2915, 96
  %v2918 = vpop.permute.xlu0 %2917
  %2919 = vrot.lane.b32.xlu0 %v2916, 96
  %v2920 = vpop.permute.xlu0 %2919
  %v2923 = vadd.f32 %v259, %v2918
  %v2924 = vadd.f32 %v262, %v2918
  %v2925 = vadd.f32 %v265, %v2918
  %v2926 = vadd.f32 %v268, %v2918
  %v2927 = vadd.f32 %v271, %v2918
  %v2928 = vadd.f32 %v274, %v2918
  %v2929 = vadd.f32 %v277, %v2918
  %v2930 = vadd.f32 %v280, %v2918
  %v2931 = vadd.f32 %v283, %v2920
  %v2932 = vadd.f32 %v286, %v2920
  %v2933 = vadd.f32 %v289, %v2920
  %v2934 = vadd.f32 %v292, %v2920
  %v2935 = vadd.f32 %v295, %v2920
  %v2936 = vadd.f32 %v298, %v2920
  %v2937 = vadd.f32 %v301, %v2920
  %v2938 = vadd.f32 %v304, %v2920
  %v2939 = vtanh.pop %v2923
  %v2940 = vtanh.pop %v2924
  %v2941 = vtanh.pop %v2925
  %v2942 = vtanh.pop %v2926
  %v2943 = vtanh.pop %v2927
  %v2944 = vtanh.pop %v2928
  %v2945 = vtanh.pop %v2929
  %v2946 = vtanh.pop %v2930
  %v2947 = vtanh.pop %v2931
  %v2948 = vtanh.pop %v2932
  %v2949 = vtanh.pop %v2933
  %v2950 = vtanh.pop %v2934
  %v2951 = vtanh.pop %v2935
  %v2952 = vtanh.pop %v2936
  %v2953 = vtanh.pop %v2937
  %v2954 = vtanh.pop %v2938
  %v2955 = vmul.f32 %v2939, %v494
  %v2956 = vmul.f32 %v2940, %v494
  %v2957 = vmul.f32 %v2941, %v494
  %v2958 = vmul.f32 %v2942, %v494
  %v2959 = vmul.f32 %v2943, %v494
  %v2960 = vmul.f32 %v2944, %v494
  %v2961 = vmul.f32 %v2945, %v494
  %v2962 = vmul.f32 %v2946, %v494
  %v2963 = vmul.f32 %v2947, %v494
  %v2964 = vmul.f32 %v2948, %v494
  %v2965 = vmul.f32 %v2949, %v494
  %v2966 = vmul.f32 %v2950, %v494
  %v2967 = vmul.f32 %v2951, %v494
  %v2968 = vmul.f32 %v2952, %v494
  %v2969 = vmul.f32 %v2953, %v494
  %v2970 = vmul.f32 %v2954, %v494
  %v2971 = vsel %vm512, %v2955, 0.0
  %2972 = vadd.xlane.f32.xlu0 %v2971
  %v2973 = vpop.xlane.xlu0 %2972
  %v2974 = vsel %vm512, %v2956, 0.0
  %2975 = vadd.xlane.f32.xlu0 %v2974
  %v2976 = vpop.xlane.xlu0 %2975
  %v2977 = vsel %vm512, %v2957, 0.0
  %2978 = vadd.xlane.f32.xlu0 %v2977
  %v2979 = vpop.xlane.xlu0 %2978
  %v2980 = vsel %vm512, %v2958, 0.0
  %2981 = vadd.xlane.f32.xlu0 %v2980
  %v2982 = vpop.xlane.xlu0 %2981
  %v2983 = vsel %vm512, %v2959, 0.0
  %2984 = vadd.xlane.f32.xlu0 %v2983
  %v2985 = vpop.xlane.xlu0 %2984
  %v2986 = vsel %vm512, %v2960, 0.0
  %2987 = vadd.xlane.f32.xlu0 %v2986
  %v2988 = vpop.xlane.xlu0 %2987
  %v2989 = vsel %vm512, %v2961, 0.0
  %2990 = vadd.xlane.f32.xlu0 %v2989
  %v2991 = vpop.xlane.xlu0 %2990
  %v2992 = vsel %vm512, %v2962, 0.0
  %2993 = vadd.xlane.f32.xlu0 %v2992
  %v2994 = vpop.xlane.xlu0 %2993
  %v2995 = vsel %vm512, %v2963, 0.0
  %2996 = vadd.xlane.f32.xlu0 %v2995
  %v2997 = vpop.xlane.xlu0 %2996
  %v2998 = vsel %vm512, %v2964, 0.0
  %2999 = vadd.xlane.f32.xlu0 %v2998
  %v3000 = vpop.xlane.xlu0 %2999
  %v3001 = vsel %vm512, %v2965, 0.0
  %3002 = vadd.xlane.f32.xlu0 %v3001
  %v3003 = vpop.xlane.xlu0 %3002
  %v3004 = vsel %vm512, %v2966, 0.0
  %3005 = vadd.xlane.f32.xlu0 %v3004
  %v3006 = vpop.xlane.xlu0 %3005
  %v3007 = vsel %vm512, %v2967, 0.0
  %3008 = vadd.xlane.f32.xlu0 %v3007
  %v3009 = vpop.xlane.xlu0 %3008
  %v3010 = vsel %vm512, %v2968, 0.0
  %3011 = vadd.xlane.f32.xlu0 %v3010
  %v3012 = vpop.xlane.xlu0 %3011
  %v3013 = vsel %vm512, %v2969, 0.0
  %3014 = vadd.xlane.f32.xlu0 %v3013
  %v3015 = vpop.xlane.xlu0 %3014
  %v3016 = vsel %vm512, %v2970, 0.0
  %3017 = vadd.xlane.f32.xlu0 %v3016
  %v3018 = vpop.xlane.xlu0 %3017
  %v3035 = vperm.slane %v2973, %v578
  %v3036 = vperm.slane %v2976, %v580
  %v3037 = vsel %vm582, %v3036, %v3035
  %v3038 = vperm.slane %v2979, %v584
  %v3039 = vsel %vm586, %v3038, %v3037
  %v3040 = vperm.slane %v2982, %v588
  %v3041 = vsel %vm590, %v3040, %v3039
  %v3042 = vperm.slane %v2985, %v592
  %v3043 = vsel %vm594, %v3042, %v3041
  %v3044 = vperm.slane %v2988, %v596
  %v3045 = vsel %vm598, %v3044, %v3043
  %v3046 = vperm.slane %v2991, %v600
  %v3047 = vsel %vm602, %v3046, %v3045
  %v3048 = vperm.slane %v2994, %v604
  %v3049 = vsel %vm606, %v3048, %v3047
  %v3050 = vperm.slane %v2997, %v578
  %v3051 = vperm.slane %v3000, %v580
  %v3052 = vsel %vm582, %v3051, %v3050
  %v3053 = vperm.slane %v3003, %v584
  %v3054 = vsel %vm586, %v3053, %v3052
  %v3055 = vperm.slane %v3006, %v588
  %v3056 = vsel %vm590, %v3055, %v3054
  %v3057 = vperm.slane %v3009, %v592
  %v3058 = vsel %vm594, %v3057, %v3056
  %v3059 = vperm.slane %v3012, %v596
  %v3060 = vsel %vm598, %v3059, %v3058
  %v3061 = vperm.slane %v3015, %v600
  %v3062 = vsel %vm602, %v3061, %v3060
  %v3063 = vperm.slane %v3018, %v604
  %v3064 = vsel %vm606, %v3063, %v3062
  %v3065 = vsel %vm424, %v3064, %v3049
  %v3067 = vsel %vm625, %v3065, -inf
  %3068 = vmax.xlane.f32.xlu0 %v3067
  %v3069 = vpop.xlane.xlu0 %3068
  %v3071 = vperm.slane %v3069, 0
  %v3072 = vperm.slane %v3069, 1
  %v3075 = vsub.f32 %v2973, %v3071
  %v3076 = vsub.f32 %v2976, %v3071
  %v3077 = vsub.f32 %v2979, %v3071
  %v3078 = vsub.f32 %v2982, %v3071
  %v3079 = vsub.f32 %v2985, %v3071
  %v3080 = vsub.f32 %v2988, %v3071
  %v3081 = vsub.f32 %v2991, %v3071
  %v3082 = vsub.f32 %v2994, %v3071
  %v3083 = vsub.f32 %v2997, %v3072
  %v3084 = vsub.f32 %v3000, %v3072
  %v3085 = vsub.f32 %v3003, %v3072
  %v3086 = vsub.f32 %v3006, %v3072
  %v3087 = vsub.f32 %v3009, %v3072
  %v3088 = vsub.f32 %v3012, %v3072
  %v3089 = vsub.f32 %v3015, %v3072
  %v3090 = vsub.f32 %v3018, %v3072
  %v3091 = vmul.f32 %v3075, 1.442695
  %v3092 = vpow.pop %v3091
  %v3093 = vmul.f32 %v3076, 1.442695
  %v3094 = vpow.pop %v3093
  %v3095 = vmul.f32 %v3077, 1.442695
  %v3096 = vpow.pop %v3095
  %v3097 = vmul.f32 %v3078, 1.442695
  %v3098 = vpow.pop %v3097
  %v3099 = vmul.f32 %v3079, 1.442695
  %v3100 = vpow.pop %v3099
  %v3101 = vmul.f32 %v3080, 1.442695
  %v3102 = vpow.pop %v3101
  %v3103 = vmul.f32 %v3081, 1.442695
  %v3104 = vpow.pop %v3103
  %v3105 = vmul.f32 %v3082, 1.442695
  %v3106 = vpow.pop %v3105
  %v3107 = vmul.f32 %v3083, 1.442695
  %v3108 = vpow.pop %v3107
  %v3109 = vmul.f32 %v3084, 1.442695
  %v3110 = vpow.pop %v3109
  %v3111 = vmul.f32 %v3085, 1.442695
  %v3112 = vpow.pop %v3111
  %v3113 = vmul.f32 %v3086, 1.442695
  %v3114 = vpow.pop %v3113
  %v3115 = vmul.f32 %v3087, 1.442695
  %v3116 = vpow.pop %v3115
  %v3117 = vmul.f32 %v3088, 1.442695
  %v3118 = vpow.pop %v3117
  %v3119 = vmul.f32 %v3089, 1.442695
  %v3120 = vpow.pop %v3119
  %v3121 = vmul.f32 %v3090, 1.442695
  %v3122 = vpow.pop %v3121
  %3139 = vset.pattern.permute.xlu0 0
  %3140 = vperm.xlu0 %3139, %v3092
  %v3141 = vpop.permute.xlu0 %3140
  %3142 = vset.pattern.permute.xlu0 0
  %3143 = vperm.xlu0 %3142, %v3094
  %v3144 = vpop.permute.xlu0 %3143
  %3145 = vset.pattern.permute.xlu0 0
  %3146 = vperm.xlu0 %3145, %v3096
  %v3147 = vpop.permute.xlu0 %3146
  %3148 = vset.pattern.permute.xlu0 0
  %3149 = vperm.xlu0 %3148, %v3098
  %v3150 = vpop.permute.xlu0 %3149
  %3151 = vset.pattern.permute.xlu0 0
  %3152 = vperm.xlu0 %3151, %v3100
  %v3153 = vpop.permute.xlu0 %3152
  %3154 = vset.pattern.permute.xlu0 0
  %3155 = vperm.xlu0 %3154, %v3102
  %v3156 = vpop.permute.xlu0 %3155
  %3157 = vset.pattern.permute.xlu0 0
  %3158 = vperm.xlu0 %3157, %v3104
  %v3159 = vpop.permute.xlu0 %3158
  %3160 = vset.pattern.permute.xlu0 0
  %3161 = vperm.xlu0 %3160, %v3106
  %v3162 = vpop.permute.xlu0 %3161
  %3163 = vset.pattern.permute.xlu0 0
  %3164 = vperm.xlu0 %3163, %v3108
  %v3165 = vpop.permute.xlu0 %3164
  %3166 = vset.pattern.permute.xlu0 0
  %3167 = vperm.xlu0 %3166, %v3110
  %v3168 = vpop.permute.xlu0 %3167
  %3169 = vset.pattern.permute.xlu0 0
  %3170 = vperm.xlu0 %3169, %v3112
  %v3171 = vpop.permute.xlu0 %3170
  %3172 = vset.pattern.permute.xlu0 0
  %3173 = vperm.xlu0 %3172, %v3114
  %v3174 = vpop.permute.xlu0 %3173
  %3175 = vset.pattern.permute.xlu0 0
  %3176 = vperm.xlu0 %3175, %v3116
  %v3177 = vpop.permute.xlu0 %3176
  %3178 = vset.pattern.permute.xlu0 0
  %3179 = vperm.xlu0 %3178, %v3118
  %v3180 = vpop.permute.xlu0 %3179
  %3181 = vset.pattern.permute.xlu0 0
  %3182 = vperm.xlu0 %3181, %v3120
  %v3183 = vpop.permute.xlu0 %3182
  %3184 = vset.pattern.permute.xlu0 0
  %3185 = vperm.xlu0 %3184, %v3122
  %v3186 = vpop.permute.xlu0 %3185
  %v3187 = vperm.slane %v3141, %v578
  %v3188 = vperm.slane %v3144, %v580
  %v3189 = vsel %vm582, %v3188, %v3187
  %v3190 = vperm.slane %v3147, %v584
  %v3191 = vsel %vm586, %v3190, %v3189
  %v3192 = vperm.slane %v3150, %v588
  %v3193 = vsel %vm590, %v3192, %v3191
  %v3194 = vperm.slane %v3153, %v592
  %v3195 = vsel %vm594, %v3194, %v3193
  %v3196 = vperm.slane %v3156, %v596
  %v3197 = vsel %vm598, %v3196, %v3195
  %v3198 = vperm.slane %v3159, %v600
  %v3199 = vsel %vm602, %v3198, %v3197
  %v3200 = vperm.slane %v3162, %v604
  %v3201 = vsel %vm606, %v3200, %v3199
  %v3202 = vperm.slane %v3165, %v578
  %v3203 = vperm.slane %v3168, %v580
  %v3204 = vsel %vm582, %v3203, %v3202
  %v3205 = vperm.slane %v3171, %v584
  %v3206 = vsel %vm586, %v3205, %v3204
  %v3207 = vperm.slane %v3174, %v588
  %v3208 = vsel %vm590, %v3207, %v3206
  %v3209 = vperm.slane %v3177, %v592
  %v3210 = vsel %vm594, %v3209, %v3208
  %v3211 = vperm.slane %v3180, %v596
  %v3212 = vsel %vm598, %v3211, %v3210
  %v3213 = vperm.slane %v3183, %v600
  %v3214 = vsel %vm602, %v3213, %v3212
  %v3215 = vperm.slane %v3186, %v604
  %v3216 = vsel %vm606, %v3215, %v3214
  %v3217 = vsel %vm424, %v3216, %v3201
  %v3219 = vsel %vm625, %v3217, 0.0
  %3220 = vadd.xlane.f32.xlu0 %v3219
  %v3221 = vpop.xlane.xlu0 %3220
  %v3222 = vrcp.pop %v3221
  %v3224 = vperm.slane %v3222, 0
  %v3225 = vperm.slane %v3222, 1
  %v3228 = vmul.f32 %v3092, %v3224
  %v3229 = vmul.f32 %v3094, %v3224
  %v3230 = vmul.f32 %v3096, %v3224
  %v3231 = vmul.f32 %v3098, %v3224
  %v3232 = vmul.f32 %v3100, %v3224
  %v3233 = vmul.f32 %v3102, %v3224
  %v3234 = vmul.f32 %v3104, %v3224
  %v3235 = vmul.f32 %v3106, %v3224
  %v3236 = vmul.f32 %v3108, %v3225
  %v3237 = vmul.f32 %v3110, %v3225
  %v3238 = vmul.f32 %v3112, %v3225
  %v3239 = vmul.f32 %v3114, %v3225
  %v3240 = vmul.f32 %v3116, %v3225
  %v3241 = vmul.f32 %v3118, %v3225
  %v3242 = vmul.f32 %v3120, %v3225
  %v3243 = vmul.f32 %v3122, %v3225
  %3245 = vset.pattern.permute.xlu0 0
  %3246 = vperm.xlu0 %3245, %v3228
  %v3247 = vpop.permute.xlu0 %3246
  %3250 = vset.pattern.permute.xlu0 0
  %3251 = vperm.xlu0 %3250, %v3229
  %v3252 = vpop.permute.xlu0 %3251
  %3255 = vset.pattern.permute.xlu0 0
  %3256 = vperm.xlu0 %3255, %v3230
  %v3257 = vpop.permute.xlu0 %3256
  %3260 = vset.pattern.permute.xlu0 0
  %3261 = vperm.xlu0 %3260, %v3231
  %v3262 = vpop.permute.xlu0 %3261
  %3265 = vset.pattern.permute.xlu0 0
  %3266 = vperm.xlu0 %3265, %v3232
  %v3267 = vpop.permute.xlu0 %3266
  %3270 = vset.pattern.permute.xlu0 0
  %3271 = vperm.xlu0 %3270, %v3233
  %v3272 = vpop.permute.xlu0 %3271
  %3275 = vset.pattern.permute.xlu0 0
  %3276 = vperm.xlu0 %3275, %v3234
  %v3277 = vpop.permute.xlu0 %3276
  %3280 = vset.pattern.permute.xlu0 0
  %3281 = vperm.xlu0 %3280, %v3235
  %v3282 = vpop.permute.xlu0 %3281
  %3285 = vset.pattern.permute.xlu0 0
  %3286 = vperm.xlu0 %3285, %v3236
  %v3287 = vpop.permute.xlu0 %3286
  %3290 = vset.pattern.permute.xlu0 0
  %3291 = vperm.xlu0 %3290, %v3237
  %v3292 = vpop.permute.xlu0 %3291
  %3295 = vset.pattern.permute.xlu0 0
  %3296 = vperm.xlu0 %3295, %v3238
  %v3297 = vpop.permute.xlu0 %3296
  %3300 = vset.pattern.permute.xlu0 0
  %3301 = vperm.xlu0 %3300, %v3239
  %v3302 = vpop.permute.xlu0 %3301
  %3305 = vset.pattern.permute.xlu0 0
  %3306 = vperm.xlu0 %3305, %v3240
  %v3307 = vpop.permute.xlu0 %3306
  %3310 = vset.pattern.permute.xlu0 0
  %3311 = vperm.xlu0 %3310, %v3241
  %v3312 = vpop.permute.xlu0 %3311
  %3315 = vset.pattern.permute.xlu0 0
  %3316 = vperm.xlu0 %3315, %v3242
  %v3317 = vpop.permute.xlu0 %3316
  %3320 = vset.pattern.permute.xlu0 0
  %3321 = vperm.xlu0 %3320, %v3243
  %v3322 = vpop.permute.xlu0 %3321
  %v3324 = vmul.f32 %v171, %v3247
  %v3325 = vmul.f32 %v172, %v3252
  %v3326 = vmul.f32 %v173, %v3257
  %v3327 = vmul.f32 %v174, %v3262
  %v3328 = vmul.f32 %v175, %v3267
  %v3329 = vmul.f32 %v176, %v3272
  %v3330 = vmul.f32 %v177, %v3277
  %v3331 = vmul.f32 %v178, %v3282
  %v3332 = vmul.f32 %v179, %v3287
  %v3333 = vmul.f32 %v180, %v3292
  %v3334 = vmul.f32 %v181, %v3297
  %v3335 = vmul.f32 %v182, %v3302
  %v3336 = vmul.f32 %v183, %v3307
  %v3337 = vmul.f32 %v184, %v3312
  %v3338 = vmul.f32 %v185, %v3317
  %v3339 = vmul.f32 %v186, %v3322
  %v3340 = vsel %vm192, %v3324, 0.0
  %v3341 = vsel %vm192, %v3325, 0.0
  %v3342 = vadd.f32 %v3340, %v3341
  %v3343 = vsel %vm192, %v3326, 0.0
  %v3344 = vadd.f32 %v3342, %v3343
  %v3345 = vsel %vm192, %v3327, 0.0
  %v3346 = vadd.f32 %v3344, %v3345
  %v3347 = vsel %vm192, %v3328, 0.0
  %v3348 = vadd.f32 %v3346, %v3347
  %v3349 = vsel %vm192, %v3329, 0.0
  %v3350 = vadd.f32 %v3348, %v3349
  %v3351 = vsel %vm192, %v3330, 0.0
  %v3352 = vadd.f32 %v3350, %v3351
  %v3353 = vsel %vm192, %v3331, 0.0
  %v3354 = vadd.f32 %v3352, %v3353
  %v3355 = vrot.slane %v3354, 4
  %v3356 = vadd.f32 %v3354, %v3355
  %v3357 = vrot.slane %v3356, 2
  %v3358 = vadd.f32 %v3356, %v3357
  %v3359 = vrot.slane %v3358, 1
  %v3360 = vadd.f32 %v3358, %v3359
  %v3361 = vsel %vm192, %v3332, 0.0
  %v3362 = vsel %vm192, %v3333, 0.0
  %v3363 = vadd.f32 %v3361, %v3362
  %v3364 = vsel %vm192, %v3334, 0.0
  %v3365 = vadd.f32 %v3363, %v3364
  %v3366 = vsel %vm192, %v3335, 0.0
  %v3367 = vadd.f32 %v3365, %v3366
  %v3368 = vsel %vm192, %v3336, 0.0
  %v3369 = vadd.f32 %v3367, %v3368
  %v3370 = vsel %vm192, %v3337, 0.0
  %v3371 = vadd.f32 %v3369, %v3370
  %v3372 = vsel %vm192, %v3338, 0.0
  %v3373 = vadd.f32 %v3371, %v3372
  %v3374 = vsel %vm192, %v3339, 0.0
  %v3375 = vadd.f32 %v3373, %v3374
  %v3376 = vrot.slane %v3375, 4
  %v3377 = vadd.f32 %v3375, %v3376
  %v3378 = vrot.slane %v3377, 2
  %v3379 = vadd.f32 %v3377, %v3378
  %v3380 = vrot.slane %v3379, 1
  %v3381 = vadd.f32 %v3379, %v3380
  %v3384 = vsel %vm424, %v3381, %v3360
  %3386 = vst [vmem:[#allocation1] ss:$4 sm:$0xff] %v2848
  %v3387 = vld.sshfl [vmem:[#allocation1] sm:$0xff pattern:$0x73625140]
  %3388 = vrot.lane.b32.xlu0 %v3387, 40
  %v3389 = vpop.permute.xlu0 %3388
  %v3391 = vsel %vm192, %v3384, %v3389
  %v3393 = vsel %vm949, %v3391, 0
  %3395 = vmatpush.msra.mxu0 0.0
  %3396 = vmatpush.msra.mxu0 0.0
  %3397 = vmatpush.msra.mxu0 0.0
  %3398 = vmatpush.msra.mxu0 0.0
  %3399 = vmatpush.msra.mxu0 0.0
  %3400 = vmatpush.msra.mxu0 0.0
  %3401 = vmatpush.msra.mxu0 0.0
  %3402 = vmatpush.msra.mxu0 0.0
  %3403 = vmatpush.msra.mxu0 0.0
  %3404 = vmatpush.msra.mxu0 0.0
  %3405 = vmatpush.msra.mxu0 0.0
  %3406 = vmatpush.msra.mxu0 %v416
  %3407 = vmatpush.msra.mxu0 %v415
  %3408 = vmatpush.msra.mxu0 %v414
  %3409 = vmatpush.msra.mxu0 %v413
  %3410 = vmatpush.msra.mxu0 %v412
  %3411 = vmatmul.f32.gmra.mxu0 %v3393
  %v3412 = vpop.f32.mrf.mxu0
  %v3413 = vadd.f32 0.0, %v3412
  %3414 = vdwg.mxu0
  %v3415 = vadd.f32 %v395, %v3413
  %v3416 = vxor.u32 %v3415, 2147483648
  %v3417 = vmul.f32 %v3416, 1.442695
  %v3418 = vpow.pop %v3417
  %v3419 = vadd.f32 %v3418, 1.0
  %v3420 = vrcp.pop %v3419
  %v3421 = vmul.f32 %v3419, %v3420
  %v3422 = vsub.f32 1.0, %v3421
  %v3423 = vmul.f32 %v3420, %v3422
  %v3424 = vadd.f32 %v3420, %v3423
  %vm3425 = vweird.f32 %v3419
  %vm3426 = vweird.f32 %v3420
  %vm3427 = vmor %vm3425, %vm3426
  %v3428 = vsel %vm3427, %v3420, %v3424
  %v3429 = vand.u32 2147483647, %v3419
  %vm3430 = vcmp.eq.f32.partialorder %v3429, 8.507059e+37
  %v3431 = vand.u32 %v3419, 2147483648
  %v3432 = vor.u32 1.1754944e-38, %v3431
  %v3433 = vsel %vm3430, %v3432, %v3428
  %v3434 = vmul.f32 1.0, %v3433
  %v3435 = vtanh.pop %v3415
  %v3436 = vmul.f32 %v3434, %v2842
  %3438 = vrot.lane.b32.xlu0 %v3435, 64
  %v3439 = vpop.permute.xlu0 %3438
  %v3441 = vmul.f32 %v3434, %v3439
  %3443 = vrot.lane.b32.xlu0 %v3441, 32
  %v3444 = vpop.permute.xlu0 %3443
  %v3446 = vadd.f32 %v3436, %v3444
  %v3447 = vtanh.pop %v3446
  %3449 = vrot.lane.b32.xlu0 %v3447, 64
  %v3450 = vpop.permute.xlu0 %3449
  %v3452 = vmul.f32 %v3434, %v3450
  %3454 = vst [vmem:[#allocation1] ss:$4 sm:$0xff] %v3452
  %v3455 = vld.sshfl [vmem:[#allocation1] sm:$0xff pattern:$0x73625140]
  %3456 = vrot.lane.b32.xlu0 %v3455, 32
  %v3457 = vpop.permute.xlu0 %3456
  %v3458 = vsel %vm428, %v3457, 0
  %3460 = vmatpush.msra.mxu0 0.0
  %3461 = vmatpush.msra.mxu0 0.0
  %3462 = vmatpush.msra.mxu0 0.0
  %3463 = vmatpush.msra.mxu0 0.0
  %3464 = vmatpush.msra.mxu0 0.0
  %3465 = vmatpush.msra.mxu0 0.0
  %3466 = vmatpush.msra.mxu0 0.0
  %3467 = vmatpush.msra.mxu0 0.0
  %3468 = vmatpush.msra.mxu0 0.0
  %3469 = vmatpush.msra.mxu0 0.0
  %3470 = vmatpush.msra.mxu0 0.0
  %3471 = vmatpush.msra.mxu0 0.0
  %3472 = vmatpush.msra.mxu0 %v420
  %3473 = vmatpush.msra.mxu0 %v419
  %3474 = vmatpush.msra.mxu0 %v418
  %3475 = vmatpush.msra.mxu0 %v417
  %3476 = vmatmul.f32.gmra.mxu0 %v3458
  %v3477 = vpop.f32.mrf.mxu0
  %v3478 = vadd.f32 0.0, %v3477
  %3479 = vdwg.mxu0
  %v3480 = vadd.f32 %v3478, %v1054
  %v3481 = vperm.slane %v3247, %v592
  %v3482 = vperm.slane %v3252, %v596
  %v3483 = vsel %vm598, %v3482, %v3481
  %v3484 = vperm.slane %v3257, %v600
  %v3485 = vsel %vm602, %v3484, %v3483
  %v3486 = vperm.slane %v3262, %v604
  %v3487 = vsel %vm606, %v3486, %v3485
  %v3488 = vperm.slane %v3267, %v1064
  %v3489 = vsel %vm1066, %v3488, %v3487
  %v3490 = vperm.slane %v3272, %v1068
  %v3491 = vsel %vm1070, %v3490, %v3489
  %v3492 = vperm.slane %v3277, %v1072
  %v3493 = vsel %vm1074, %v3492, %v3491
  %v3494 = vperm.slane %v3282, %v1076
  %v3495 = vsel %vm1078, %v3494, %v3493
  %v3496 = vperm.slane %v3287, %v592
  %v3497 = vperm.slane %v3292, %v596
  %v3498 = vsel %vm598, %v3497, %v3496
  %v3499 = vperm.slane %v3297, %v600
  %v3500 = vsel %vm602, %v3499, %v3498
  %v3501 = vperm.slane %v3302, %v604
  %v3502 = vsel %vm606, %v3501, %v3500
  %v3503 = vperm.slane %v3307, %v1064
  %v3504 = vsel %vm1066, %v3503, %v3502
  %v3505 = vperm.slane %v3312, %v1068
  %v3506 = vsel %vm1070, %v3505, %v3504
  %v3507 = vperm.slane %v3317, %v1072
  %v3508 = vsel %vm1074, %v3507, %v3506
  %v3509 = vperm.slane %v3322, %v1076
  %v3510 = vsel %vm1078, %v3509, %v3508
  %v3511 = vsel %vm424, %v3510, %v3495
  %v3513 = vsel %vm428, %v3480, %v3511
  %v3514 = vsel %vm1098, %v3513, 0.0
  %s3515 = scalar_lea.vmem %s10, 8
  %3516 = vst [vmem:[%s3515] sm:$0x3] %v3514
  %v3518 = vrot.slane %v3478, 1
  %v3519 = vperm.slane %v3478, 0
  %v3520 = vperm.slane %v3518, 0
  %3521 = vrot.lane.b32.xlu0 %v3519, 96
  %v3522 = vpop.permute.xlu0 %3521
  %3523 = vrot.lane.b32.xlu0 %v3520, 96
  %v3524 = vpop.permute.xlu0 %3523
  %v3527 = vadd.f32 %v259, %v3522
  %v3528 = vadd.f32 %v262, %v3522
  %v3529 = vadd.f32 %v265, %v3522
  %v3530 = vadd.f32 %v268, %v3522
  %v3531 = vadd.f32 %v271, %v3522
  %v3532 = vadd.f32 %v274, %v3522
  %v3533 = vadd.f32 %v277, %v3522
  %v3534 = vadd.f32 %v280, %v3522
  %v3535 = vadd.f32 %v283, %v3524
  %v3536 = vadd.f32 %v286, %v3524
  %v3537 = vadd.f32 %v289, %v3524
  %v3538 = vadd.f32 %v292, %v3524
  %v3539 = vadd.f32 %v295, %v3524
  %v3540 = vadd.f32 %v298, %v3524
  %v3541 = vadd.f32 %v301, %v3524
  %v3542 = vadd.f32 %v304, %v3524
  %v3543 = vtanh.pop %v3527
  %v3544 = vtanh.pop %v3528
  %v3545 = vtanh.pop %v3529
  %v3546 = vtanh.pop %v3530
  %v3547 = vtanh.pop %v3531
  %v3548 = vtanh.pop %v3532
  %v3549 = vtanh.pop %v3533
  %v3550 = vtanh.pop %v3534
  %v3551 = vtanh.pop %v3535
  %v3552 = vtanh.pop %v3536
  %v3553 = vtanh.pop %v3537
  %v3554 = vtanh.pop %v3538
  %v3555 = vtanh.pop %v3539
  %v3556 = vtanh.pop %v3540
  %v3557 = vtanh.pop %v3541
  %v3558 = vtanh.pop %v3542
  %v3559 = vmul.f32 %v3543, %v494
  %v3560 = vmul.f32 %v3544, %v494
  %v3561 = vmul.f32 %v3545, %v494
  %v3562 = vmul.f32 %v3546, %v494
  %v3563 = vmul.f32 %v3547, %v494
  %v3564 = vmul.f32 %v3548, %v494
  %v3565 = vmul.f32 %v3549, %v494
  %v3566 = vmul.f32 %v3550, %v494
  %v3567 = vmul.f32 %v3551, %v494
  %v3568 = vmul.f32 %v3552, %v494
  %v3569 = vmul.f32 %v3553, %v494
  %v3570 = vmul.f32 %v3554, %v494
  %v3571 = vmul.f32 %v3555, %v494
  %v3572 = vmul.f32 %v3556, %v494
  %v3573 = vmul.f32 %v3557, %v494
  %v3574 = vmul.f32 %v3558, %v494
  %v3575 = vsel %vm512, %v3559, 0.0
  %3576 = vadd.xlane.f32.xlu0 %v3575
  %v3577 = vpop.xlane.xlu0 %3576
  %v3578 = vsel %vm512, %v3560, 0.0
  %3579 = vadd.xlane.f32.xlu0 %v3578
  %v3580 = vpop.xlane.xlu0 %3579
  %v3581 = vsel %vm512, %v3561, 0.0
  %3582 = vadd.xlane.f32.xlu0 %v3581
  %v3583 = vpop.xlane.xlu0 %3582
  %v3584 = vsel %vm512, %v3562, 0.0
  %3585 = vadd.xlane.f32.xlu0 %v3584
  %v3586 = vpop.xlane.xlu0 %3585
  %v3587 = vsel %vm512, %v3563, 0.0
  %3588 = vadd.xlane.f32.xlu0 %v3587
  %v3589 = vpop.xlane.xlu0 %3588
  %v3590 = vsel %vm512, %v3564, 0.0
  %3591 = vadd.xlane.f32.xlu0 %v3590
  %v3592 = vpop.xlane.xlu0 %3591
  %v3593 = vsel %vm512, %v3565, 0.0
  %3594 = vadd.xlane.f32.xlu0 %v3593
  %v3595 = vpop.xlane.xlu0 %3594
  %v3596 = vsel %vm512, %v3566, 0.0
  %3597 = vadd.xlane.f32.xlu0 %v3596
  %v3598 = vpop.xlane.xlu0 %3597
  %v3599 = vsel %vm512, %v3567, 0.0
  %3600 = vadd.xlane.f32.xlu0 %v3599
  %v3601 = vpop.xlane.xlu0 %3600
  %v3602 = vsel %vm512, %v3568, 0.0
  %3603 = vadd.xlane.f32.xlu0 %v3602
  %v3604 = vpop.xlane.xlu0 %3603
  %v3605 = vsel %vm512, %v3569, 0.0
  %3606 = vadd.xlane.f32.xlu0 %v3605
  %v3607 = vpop.xlane.xlu0 %3606
  %v3608 = vsel %vm512, %v3570, 0.0
  %3609 = vadd.xlane.f32.xlu0 %v3608
  %v3610 = vpop.xlane.xlu0 %3609
  %v3611 = vsel %vm512, %v3571, 0.0
  %3612 = vadd.xlane.f32.xlu0 %v3611
  %v3613 = vpop.xlane.xlu0 %3612
  %v3614 = vsel %vm512, %v3572, 0.0
  %3615 = vadd.xlane.f32.xlu0 %v3614
  %v3616 = vpop.xlane.xlu0 %3615
  %v3617 = vsel %vm512, %v3573, 0.0
  %3618 = vadd.xlane.f32.xlu0 %v3617
  %v3619 = vpop.xlane.xlu0 %3618
  %v3620 = vsel %vm512, %v3574, 0.0
  %3621 = vadd.xlane.f32.xlu0 %v3620
  %v3622 = vpop.xlane.xlu0 %3621
  %v3639 = vperm.slane %v3577, %v578
  %v3640 = vperm.slane %v3580, %v580
  %v3641 = vsel %vm582, %v3640, %v3639
  %v3642 = vperm.slane %v3583, %v584
  %v3643 = vsel %vm586, %v3642, %v3641
  %v3644 = vperm.slane %v3586, %v588
  %v3645 = vsel %vm590, %v3644, %v3643
  %v3646 = vperm.slane %v3589, %v592
  %v3647 = vsel %vm594, %v3646, %v3645
  %v3648 = vperm.slane %v3592, %v596
  %v3649 = vsel %vm598, %v3648, %v3647
  %v3650 = vperm.slane %v3595, %v600
  %v3651 = vsel %vm602, %v3650, %v3649
  %v3652 = vperm.slane %v3598, %v604
  %v3653 = vsel %vm606, %v3652, %v3651
  %v3654 = vperm.slane %v3601, %v578
  %v3655 = vperm.slane %v3604, %v580
  %v3656 = vsel %vm582, %v3655, %v3654
  %v3657 = vperm.slane %v3607, %v584
  %v3658 = vsel %vm586, %v3657, %v3656
  %v3659 = vperm.slane %v3610, %v588
  %v3660 = vsel %vm590, %v3659, %v3658
  %v3661 = vperm.slane %v3613, %v592
  %v3662 = vsel %vm594, %v3661, %v3660
  %v3663 = vperm.slane %v3616, %v596
  %v3664 = vsel %vm598, %v3663, %v3662
  %v3665 = vperm.slane %v3619, %v600
  %v3666 = vsel %vm602, %v3665, %v3664
  %v3667 = vperm.slane %v3622, %v604
  %v3668 = vsel %vm606, %v3667, %v3666
  %v3669 = vsel %vm424, %v3668, %v3653
  %v3671 = vsel %vm625, %v3669, -inf
  %3672 = vmax.xlane.f32.xlu0 %v3671
  %v3673 = vpop.xlane.xlu0 %3672
  %v3675 = vperm.slane %v3673, 0
  %v3676 = vperm.slane %v3673, 1
  %v3679 = vsub.f32 %v3577, %v3675
  %v3680 = vsub.f32 %v3580, %v3675
  %v3681 = vsub.f32 %v3583, %v3675
  %v3682 = vsub.f32 %v3586, %v3675
  %v3683 = vsub.f32 %v3589, %v3675
  %v3684 = vsub.f32 %v3592, %v3675
  %v3685 = vsub.f32 %v3595, %v3675
  %v3686 = vsub.f32 %v3598, %v3675
  %v3687 = vsub.f32 %v3601, %v3676
  %v3688 = vsub.f32 %v3604, %v3676
  %v3689 = vsub.f32 %v3607, %v3676
  %v3690 = vsub.f32 %v3610, %v3676
  %v3691 = vsub.f32 %v3613, %v3676
  %v3692 = vsub.f32 %v3616, %v3676
  %v3693 = vsub.f32 %v3619, %v3676
  %v3694 = vsub.f32 %v3622, %v3676
  %v3695 = vmul.f32 %v3679, 1.442695
  %v3696 = vpow.pop %v3695
  %v3697 = vmul.f32 %v3680, 1.442695
  %v3698 = vpow.pop %v3697
  %v3699 = vmul.f32 %v3681, 1.442695
  %v3700 = vpow.pop %v3699
  %v3701 = vmul.f32 %v3682, 1.442695
  %v3702 = vpow.pop %v3701
  %v3703 = vmul.f32 %v3683, 1.442695
  %v3704 = vpow.pop %v3703
  %v3705 = vmul.f32 %v3684, 1.442695
  %v3706 = vpow.pop %v3705
  %v3707 = vmul.f32 %v3685, 1.442695
  %v3708 = vpow.pop %v3707
  %v3709 = vmul.f32 %v3686, 1.442695
  %v3710 = vpow.pop %v3709
  %v3711 = vmul.f32 %v3687, 1.442695
  %v3712 = vpow.pop %v3711
  %v3713 = vmul.f32 %v3688, 1.442695
  %v3714 = vpow.pop %v3713
  %v3715 = vmul.f32 %v3689, 1.442695
  %v3716 = vpow.pop %v3715
  %v3717 = vmul.f32 %v3690, 1.442695
  %v3718 = vpow.pop %v3717
  %v3719 = vmul.f32 %v3691, 1.442695
  %v3720 = vpow.pop %v3719
  %v3721 = vmul.f32 %v3692, 1.442695
  %v3722 = vpow.pop %v3721
  %v3723 = vmul.f32 %v3693, 1.442695
  %v3724 = vpow.pop %v3723
  %v3725 = vmul.f32 %v3694, 1.442695
  %v3726 = vpow.pop %v3725
  %3743 = vset.pattern.permute.xlu0 0
  %3744 = vperm.xlu0 %3743, %v3696
  %v3745 = vpop.permute.xlu0 %3744
  %3746 = vset.pattern.permute.xlu0 0
  %3747 = vperm.xlu0 %3746, %v3698
  %v3748 = vpop.permute.xlu0 %3747
  %3749 = vset.pattern.permute.xlu0 0
  %3750 = vperm.xlu0 %3749, %v3700
  %v3751 = vpop.permute.xlu0 %3750
  %3752 = vset.pattern.permute.xlu0 0
  %3753 = vperm.xlu0 %3752, %v3702
  %v3754 = vpop.permute.xlu0 %3753
  %3755 = vset.pattern.permute.xlu0 0
  %3756 = vperm.xlu0 %3755, %v3704
  %v3757 = vpop.permute.xlu0 %3756
  %3758 = vset.pattern.permute.xlu0 0
  %3759 = vperm.xlu0 %3758, %v3706
  %v3760 = vpop.permute.xlu0 %3759
  %3761 = vset.pattern.permute.xlu0 0
  %3762 = vperm.xlu0 %3761, %v3708
  %v3763 = vpop.permute.xlu0 %3762
  %3764 = vset.pattern.permute.xlu0 0
  %3765 = vperm.xlu0 %3764, %v3710
  %v3766 = vpop.permute.xlu0 %3765
  %3767 = vset.pattern.permute.xlu0 0
  %3768 = vperm.xlu0 %3767, %v3712
  %v3769 = vpop.permute.xlu0 %3768
  %3770 = vset.pattern.permute.xlu0 0
  %3771 = vperm.xlu0 %3770, %v3714
  %v3772 = vpop.permute.xlu0 %3771
  %3773 = vset.pattern.permute.xlu0 0
  %3774 = vperm.xlu0 %3773, %v3716
  %v3775 = vpop.permute.xlu0 %3774
  %3776 = vset.pattern.permute.xlu0 0
  %3777 = vperm.xlu0 %3776, %v3718
  %v3778 = vpop.permute.xlu0 %3777
  %3779 = vset.pattern.permute.xlu0 0
  %3780 = vperm.xlu0 %3779, %v3720
  %v3781 = vpop.permute.xlu0 %3780
  %3782 = vset.pattern.permute.xlu0 0
  %3783 = vperm.xlu0 %3782, %v3722
  %v3784 = vpop.permute.xlu0 %3783
  %3785 = vset.pattern.permute.xlu0 0
  %3786 = vperm.xlu0 %3785, %v3724
  %v3787 = vpop.permute.xlu0 %3786
  %3788 = vset.pattern.permute.xlu0 0
  %3789 = vperm.xlu0 %3788, %v3726
  %v3790 = vpop.permute.xlu0 %3789
  %v3791 = vperm.slane %v3745, %v578
  %v3792 = vperm.slane %v3748, %v580
  %v3793 = vsel %vm582, %v3792, %v3791
  %v3794 = vperm.slane %v3751, %v584
  %v3795 = vsel %vm586, %v3794, %v3793
  %v3796 = vperm.slane %v3754, %v588
  %v3797 = vsel %vm590, %v3796, %v3795
  %v3798 = vperm.slane %v3757, %v592
  %v3799 = vsel %vm594, %v3798, %v3797
  %v3800 = vperm.slane %v3760, %v596
  %v3801 = vsel %vm598, %v3800, %v3799
  %v3802 = vperm.slane %v3763, %v600
  %v3803 = vsel %vm602, %v3802, %v3801
  %v3804 = vperm.slane %v3766, %v604
  %v3805 = vsel %vm606, %v3804, %v3803
  %v3806 = vperm.slane %v3769, %v578
  %v3807 = vperm.slane %v3772, %v580
  %v3808 = vsel %vm582, %v3807, %v3806
  %v3809 = vperm.slane %v3775, %v584
  %v3810 = vsel %vm586, %v3809, %v3808
  %v3811 = vperm.slane %v3778, %v588
  %v3812 = vsel %vm590, %v3811, %v3810
  %v3813 = vperm.slane %v3781, %v592
  %v3814 = vsel %vm594, %v3813, %v3812
  %v3815 = vperm.slane %v3784, %v596
  %v3816 = vsel %vm598, %v3815, %v3814
  %v3817 = vperm.slane %v3787, %v600
  %v3818 = vsel %vm602, %v3817, %v3816
  %v3819 = vperm.slane %v3790, %v604
  %v3820 = vsel %vm606, %v3819, %v3818
  %v3821 = vsel %vm424, %v3820, %v3805
  %v3823 = vsel %vm625, %v3821, 0.0
  %3824 = vadd.xlane.f32.xlu0 %v3823
  %v3825 = vpop.xlane.xlu0 %3824
  %v3826 = vrcp.pop %v3825
  %v3828 = vperm.slane %v3826, 0
  %v3829 = vperm.slane %v3826, 1
  %v3832 = vmul.f32 %v3696, %v3828
  %v3833 = vmul.f32 %v3698, %v3828
  %v3834 = vmul.f32 %v3700, %v3828
  %v3835 = vmul.f32 %v3702, %v3828
  %v3836 = vmul.f32 %v3704, %v3828
  %v3837 = vmul.f32 %v3706, %v3828
  %v3838 = vmul.f32 %v3708, %v3828
  %v3839 = vmul.f32 %v3710, %v3828
  %v3840 = vmul.f32 %v3712, %v3829
  %v3841 = vmul.f32 %v3714, %v3829
  %v3842 = vmul.f32 %v3716, %v3829
  %v3843 = vmul.f32 %v3718, %v3829
  %v3844 = vmul.f32 %v3720, %v3829
  %v3845 = vmul.f32 %v3722, %v3829
  %v3846 = vmul.f32 %v3724, %v3829
  %v3847 = vmul.f32 %v3726, %v3829
  %3849 = vset.pattern.permute.xlu0 0
  %3850 = vperm.xlu0 %3849, %v3832
  %v3851 = vpop.permute.xlu0 %3850
  %3854 = vset.pattern.permute.xlu0 0
  %3855 = vperm.xlu0 %3854, %v3833
  %v3856 = vpop.permute.xlu0 %3855
  %3859 = vset.pattern.permute.xlu0 0
  %3860 = vperm.xlu0 %3859, %v3834
  %v3861 = vpop.permute.xlu0 %3860
  %3864 = vset.pattern.permute.xlu0 0
  %3865 = vperm.xlu0 %3864, %v3835
  %v3866 = vpop.permute.xlu0 %3865
  %3869 = vset.pattern.permute.xlu0 0
  %3870 = vperm.xlu0 %3869, %v3836
  %v3871 = vpop.permute.xlu0 %3870
  %3874 = vset.pattern.permute.xlu0 0
  %3875 = vperm.xlu0 %3874, %v3837
  %v3876 = vpop.permute.xlu0 %3875
  %3879 = vset.pattern.permute.xlu0 0
  %3880 = vperm.xlu0 %3879, %v3838
  %v3881 = vpop.permute.xlu0 %3880
  %3884 = vset.pattern.permute.xlu0 0
  %3885 = vperm.xlu0 %3884, %v3839
  %v3886 = vpop.permute.xlu0 %3885
  %3889 = vset.pattern.permute.xlu0 0
  %3890 = vperm.xlu0 %3889, %v3840
  %v3891 = vpop.permute.xlu0 %3890
  %3894 = vset.pattern.permute.xlu0 0
  %3895 = vperm.xlu0 %3894, %v3841
  %v3896 = vpop.permute.xlu0 %3895
  %3899 = vset.pattern.permute.xlu0 0
  %3900 = vperm.xlu0 %3899, %v3842
  %v3901 = vpop.permute.xlu0 %3900
  %3904 = vset.pattern.permute.xlu0 0
  %3905 = vperm.xlu0 %3904, %v3843
  %v3906 = vpop.permute.xlu0 %3905
  %3909 = vset.pattern.permute.xlu0 0
  %3910 = vperm.xlu0 %3909, %v3844
  %v3911 = vpop.permute.xlu0 %3910
  %3914 = vset.pattern.permute.xlu0 0
  %3915 = vperm.xlu0 %3914, %v3845
  %v3916 = vpop.permute.xlu0 %3915
  %3919 = vset.pattern.permute.xlu0 0
  %3920 = vperm.xlu0 %3919, %v3846
  %v3921 = vpop.permute.xlu0 %3920
  %3924 = vset.pattern.permute.xlu0 0
  %3925 = vperm.xlu0 %3924, %v3847
  %v3926 = vpop.permute.xlu0 %3925
  %v3928 = vmul.f32 %v171, %v3851
  %v3929 = vmul.f32 %v172, %v3856
  %v3930 = vmul.f32 %v173, %v3861
  %v3931 = vmul.f32 %v174, %v3866
  %v3932 = vmul.f32 %v175, %v3871
  %v3933 = vmul.f32 %v176, %v3876
  %v3934 = vmul.f32 %v177, %v3881
  %v3935 = vmul.f32 %v178, %v3886
  %v3936 = vmul.f32 %v179, %v3891
  %v3937 = vmul.f32 %v180, %v3896
  %v3938 = vmul.f32 %v181, %v3901
  %v3939 = vmul.f32 %v182, %v3906
  %v3940 = vmul.f32 %v183, %v3911
  %v3941 = vmul.f32 %v184, %v3916
  %v3942 = vmul.f32 %v185, %v3921
  %v3943 = vmul.f32 %v186, %v3926
  %v3944 = vsel %vm192, %v3928, 0.0
  %v3945 = vsel %vm192, %v3929, 0.0
  %v3946 = vadd.f32 %v3944, %v3945
  %v3947 = vsel %vm192, %v3930, 0.0
  %v3948 = vadd.f32 %v3946, %v3947
  %v3949 = vsel %vm192, %v3931, 0.0
  %v3950 = vadd.f32 %v3948, %v3949
  %v3951 = vsel %vm192, %v3932, 0.0
  %v3952 = vadd.f32 %v3950, %v3951
  %v3953 = vsel %vm192, %v3933, 0.0
  %v3954 = vadd.f32 %v3952, %v3953
  %v3955 = vsel %vm192, %v3934, 0.0
  %v3956 = vadd.f32 %v3954, %v3955
  %v3957 = vsel %vm192, %v3935, 0.0
  %v3958 = vadd.f32 %v3956, %v3957
  %v3959 = vrot.slane %v3958, 4
  %v3960 = vadd.f32 %v3958, %v3959
  %v3961 = vrot.slane %v3960, 2
  %v3962 = vadd.f32 %v3960, %v3961
  %v3963 = vrot.slane %v3962, 1
  %v3964 = vadd.f32 %v3962, %v3963
  %v3965 = vsel %vm192, %v3936, 0.0
  %v3966 = vsel %vm192, %v3937, 0.0
  %v3967 = vadd.f32 %v3965, %v3966
  %v3968 = vsel %vm192, %v3938, 0.0
  %v3969 = vadd.f32 %v3967, %v3968
  %v3970 = vsel %vm192, %v3939, 0.0
  %v3971 = vadd.f32 %v3969, %v3970
  %v3972 = vsel %vm192, %v3940, 0.0
  %v3973 = vadd.f32 %v3971, %v3972
  %v3974 = vsel %vm192, %v3941, 0.0
  %v3975 = vadd.f32 %v3973, %v3974
  %v3976 = vsel %vm192, %v3942, 0.0
  %v3977 = vadd.f32 %v3975, %v3976
  %v3978 = vsel %vm192, %v3943, 0.0
  %v3979 = vadd.f32 %v3977, %v3978
  %v3980 = vrot.slane %v3979, 4
  %v3981 = vadd.f32 %v3979, %v3980
  %v3982 = vrot.slane %v3981, 2
  %v3983 = vadd.f32 %v3981, %v3982
  %v3984 = vrot.slane %v3983, 1
  %v3985 = vadd.f32 %v3983, %v3984
  %v3988 = vsel %vm424, %v3985, %v3964
  %3990 = vst [vmem:[#allocation1] ss:$4 sm:$0xff] %v3452
  %v3991 = vld.sshfl [vmem:[#allocation1] sm:$0xff pattern:$0x73625140]
  %3992 = vrot.lane.b32.xlu0 %v3991, 40
  %v3993 = vpop.permute.xlu0 %3992
  %v3995 = vsel %vm192, %v3988, %v3993
  %v3997 = vsel %vm949, %v3995, 0
  %3999 = vmatpush.msra.mxu0 0.0
  %4000 = vmatpush.msra.mxu0 0.0
  %4001 = vmatpush.msra.mxu0 0.0
  %4002 = vmatpush.msra.mxu0 0.0
  %4003 = vmatpush.msra.mxu0 0.0
  %4004 = vmatpush.msra.mxu0 0.0
  %4005 = vmatpush.msra.mxu0 0.0
  %4006 = vmatpush.msra.mxu0 0.0
  %4007 = vmatpush.msra.mxu0 0.0
  %4008 = vmatpush.msra.mxu0 0.0
  %4009 = vmatpush.msra.mxu0 0.0
  %4010 = vmatpush.msra.mxu0 %v416
  %4011 = vmatpush.msra.mxu0 %v415
  %4012 = vmatpush.msra.mxu0 %v414
  %4013 = vmatpush.msra.mxu0 %v413
  %4014 = vmatpush.msra.mxu0 %v412
  %4015 = vmatmul.f32.gmra.mxu0 %v3997
  %v4016 = vpop.f32.mrf.mxu0
  %v4017 = vadd.f32 0.0, %v4016
  %4018 = vdwg.mxu0
  %v4019 = vadd.f32 %v402, %v4017
  %v4020 = vxor.u32 %v4019, 2147483648
  %v4021 = vmul.f32 %v4020, 1.442695
  %v4022 = vpow.pop %v4021
  %v4023 = vadd.f32 %v4022, 1.0
  %v4024 = vrcp.pop %v4023
  %v4025 = vmul.f32 %v4023, %v4024
  %v4026 = vsub.f32 1.0, %v4025
  %v4027 = vmul.f32 %v4024, %v4026
  %v4028 = vadd.f32 %v4024, %v4027
  %vm4029 = vweird.f32 %v4023
  %vm4030 = vweird.f32 %v4024
  %vm4031 = vmor %vm4029, %vm4030
  %v4032 = vsel %vm4031, %v4024, %v4028
  %v4033 = vand.u32 2147483647, %v4023
  %vm4034 = vcmp.eq.f32.partialorder %v4033, 8.507059e+37
  %v4035 = vand.u32 %v4023, 2147483648
  %v4036 = vor.u32 1.1754944e-38, %v4035
  %v4037 = vsel %vm4034, %v4036, %v4032
  %v4038 = vmul.f32 1.0, %v4037
  %v4039 = vtanh.pop %v4019
  %v4040 = vmul.f32 %v4038, %v3446
  %4042 = vrot.lane.b32.xlu0 %v4039, 64
  %v4043 = vpop.permute.xlu0 %4042
  %v4045 = vmul.f32 %v4038, %v4043
  %4047 = vrot.lane.b32.xlu0 %v4045, 32
  %v4048 = vpop.permute.xlu0 %4047
  %v4050 = vadd.f32 %v4040, %v4048
  %v4051 = vtanh.pop %v4050
  %4053 = vrot.lane.b32.xlu0 %v4051, 64
  %v4054 = vpop.permute.xlu0 %4053
  %v4056 = vmul.f32 %v4038, %v4054
  %4058 = vst [vmem:[#allocation1] ss:$4 sm:$0xff] %v4056
  %v4059 = vld.sshfl [vmem:[#allocation1] sm:$0xff pattern:$0x73625140]
  %4060 = vrot.lane.b32.xlu0 %v4059, 32
  %v4061 = vpop.permute.xlu0 %4060
  %v4062 = vsel %vm428, %v4061, 0
  %4064 = vmatpush.msra.mxu0 0.0
  %4065 = vmatpush.msra.mxu0 0.0
  %4066 = vmatpush.msra.mxu0 0.0
  %4067 = vmatpush.msra.mxu0 0.0
  %4068 = vmatpush.msra.mxu0 0.0
  %4069 = vmatpush.msra.mxu0 0.0
  %4070 = vmatpush.msra.mxu0 0.0
  %4071 = vmatpush.msra.mxu0 0.0
  %4072 = vmatpush.msra.mxu0 0.0
  %4073 = vmatpush.msra.mxu0 0.0
  %4074 = vmatpush.msra.mxu0 0.0
  %4075 = vmatpush.msra.mxu0 0.0
  %4076 = vmatpush.msra.mxu0 %v420
  %4077 = vmatpush.msra.mxu0 %v419
  %4078 = vmatpush.msra.mxu0 %v418
  %4079 = vmatpush.msra.mxu0 %v417
  %4080 = vmatmul.f32.gmra.mxu0 %v4062
  %v4081 = vpop.f32.mrf.mxu0
  %v4082 = vadd.f32 0.0, %v4081
  %4083 = vdwg.mxu0
  %v4084 = vadd.f32 %v4082, %v1054
  %v4085 = vperm.slane %v3851, %v592
  %v4086 = vperm.slane %v3856, %v596
  %v4087 = vsel %vm598, %v4086, %v4085
  %v4088 = vperm.slane %v3861, %v600
  %v4089 = vsel %vm602, %v4088, %v4087
  %v4090 = vperm.slane %v3866, %v604
  %v4091 = vsel %vm606, %v4090, %v4089
  %v4092 = vperm.slane %v3871, %v1064
  %v4093 = vsel %vm1066, %v4092, %v4091
  %v4094 = vperm.slane %v3876, %v1068
  %v4095 = vsel %vm1070, %v4094, %v4093
  %v4096 = vperm.slane %v3881, %v1072
  %v4097 = vsel %vm1074, %v4096, %v4095
  %v4098 = vperm.slane %v3886, %v1076
  %v4099 = vsel %vm1078, %v4098, %v4097
  %v4100 = vperm.slane %v3891, %v592
  %v4101 = vperm.slane %v3896, %v596
  %v4102 = vsel %vm598, %v4101, %v4100
  %v4103 = vperm.slane %v3901, %v600
  %v4104 = vsel %vm602, %v4103, %v4102
  %v4105 = vperm.slane %v3906, %v604
  %v4106 = vsel %vm606, %v4105, %v4104
  %v4107 = vperm.slane %v3911, %v1064
  %v4108 = vsel %vm1066, %v4107, %v4106
  %v4109 = vperm.slane %v3916, %v1068
  %v4110 = vsel %vm1070, %v4109, %v4108
  %v4111 = vperm.slane %v3921, %v1072
  %v4112 = vsel %vm1074, %v4111, %v4110
  %v4113 = vperm.slane %v3926, %v1076
  %v4114 = vsel %vm1078, %v4113, %v4112
  %v4115 = vsel %vm424, %v4114, %v4099
  %v4117 = vsel %vm428, %v4084, %v4115
  %v4118 = vsel %vm1098, %v4117, 0.0
  %s4119 = scalar_lea.vmem %s10, 10
  %4120 = vst [vmem:[%s4119] sm:$0x3] %v4118
  %v4122 = vrot.slane %v4082, 1
  %v4123 = vperm.slane %v4082, 0
  %v4124 = vperm.slane %v4122, 0
  %4125 = vrot.lane.b32.xlu0 %v4123, 96
  %v4126 = vpop.permute.xlu0 %4125
  %4127 = vrot.lane.b32.xlu0 %v4124, 96
  %v4128 = vpop.permute.xlu0 %4127
  %v4131 = vadd.f32 %v259, %v4126
  %v4132 = vadd.f32 %v262, %v4126
  %v4133 = vadd.f32 %v265, %v4126
  %v4134 = vadd.f32 %v268, %v4126
  %v4135 = vadd.f32 %v271, %v4126
  %v4136 = vadd.f32 %v274, %v4126
  %v4137 = vadd.f32 %v277, %v4126
  %v4138 = vadd.f32 %v280, %v4126
  %v4139 = vadd.f32 %v283, %v4128
  %v4140 = vadd.f32 %v286, %v4128
  %v4141 = vadd.f32 %v289, %v4128
  %v4142 = vadd.f32 %v292, %v4128
  %v4143 = vadd.f32 %v295, %v4128
  %v4144 = vadd.f32 %v298, %v4128
  %v4145 = vadd.f32 %v301, %v4128
  %v4146 = vadd.f32 %v304, %v4128
  %v4147 = vtanh.pop %v4131
  %v4148 = vtanh.pop %v4132
  %v4149 = vtanh.pop %v4133
  %v4150 = vtanh.pop %v4134
  %v4151 = vtanh.pop %v4135
  %v4152 = vtanh.pop %v4136
  %v4153 = vtanh.pop %v4137
  %v4154 = vtanh.pop %v4138
  %v4155 = vtanh.pop %v4139
  %v4156 = vtanh.pop %v4140
  %v4157 = vtanh.pop %v4141
  %v4158 = vtanh.pop %v4142
  %v4159 = vtanh.pop %v4143
  %v4160 = vtanh.pop %v4144
  %v4161 = vtanh.pop %v4145
  %v4162 = vtanh.pop %v4146
  %v4163 = vmul.f32 %v4147, %v494
  %v4164 = vmul.f32 %v4148, %v494
  %v4165 = vmul.f32 %v4149, %v494
  %v4166 = vmul.f32 %v4150, %v494
  %v4167 = vmul.f32 %v4151, %v494
  %v4168 = vmul.f32 %v4152, %v494
  %v4169 = vmul.f32 %v4153, %v494
  %v4170 = vmul.f32 %v4154, %v494
  %v4171 = vmul.f32 %v4155, %v494
  %v4172 = vmul.f32 %v4156, %v494
  %v4173 = vmul.f32 %v4157, %v494
  %v4174 = vmul.f32 %v4158, %v494
  %v4175 = vmul.f32 %v4159, %v494
  %v4176 = vmul.f32 %v4160, %v494
  %v4177 = vmul.f32 %v4161, %v494
  %v4178 = vmul.f32 %v4162, %v494
  %v4179 = vsel %vm512, %v4163, 0.0
  %4180 = vadd.xlane.f32.xlu0 %v4179
  %v4181 = vpop.xlane.xlu0 %4180
  %v4182 = vsel %vm512, %v4164, 0.0
  %4183 = vadd.xlane.f32.xlu0 %v4182
  %v4184 = vpop.xlane.xlu0 %4183
  %v4185 = vsel %vm512, %v4165, 0.0
  %4186 = vadd.xlane.f32.xlu0 %v4185
  %v4187 = vpop.xlane.xlu0 %4186
  %v4188 = vsel %vm512, %v4166, 0.0
  %4189 = vadd.xlane.f32.xlu0 %v4188
  %v4190 = vpop.xlane.xlu0 %4189
  %v4191 = vsel %vm512, %v4167, 0.0
  %4192 = vadd.xlane.f32.xlu0 %v4191
  %v4193 = vpop.xlane.xlu0 %4192
  %v4194 = vsel %vm512, %v4168, 0.0
  %4195 = vadd.xlane.f32.xlu0 %v4194
  %v4196 = vpop.xlane.xlu0 %4195
  %v4197 = vsel %vm512, %v4169, 0.0
  %4198 = vadd.xlane.f32.xlu0 %v4197
  %v4199 = vpop.xlane.xlu0 %4198
  %v4200 = vsel %vm512, %v4170, 0.0
  %4201 = vadd.xlane.f32.xlu0 %v4200
  %v4202 = vpop.xlane.xlu0 %4201
  %v4203 = vsel %vm512, %v4171, 0.0
  %4204 = vadd.xlane.f32.xlu0 %v4203
  %v4205 = vpop.xlane.xlu0 %4204
  %v4206 = vsel %vm512, %v4172, 0.0
  %4207 = vadd.xlane.f32.xlu0 %v4206
  %v4208 = vpop.xlane.xlu0 %4207
  %v4209 = vsel %vm512, %v4173, 0.0
  %4210 = vadd.xlane.f32.xlu0 %v4209
  %v4211 = vpop.xlane.xlu0 %4210
  %v4212 = vsel %vm512, %v4174, 0.0
  %4213 = vadd.xlane.f32.xlu0 %v4212
  %v4214 = vpop.xlane.xlu0 %4213
  %v4215 = vsel %vm512, %v4175, 0.0
  %4216 = vadd.xlane.f32.xlu0 %v4215
  %v4217 = vpop.xlane.xlu0 %4216
  %v4218 = vsel %vm512, %v4176, 0.0
  %4219 = vadd.xlane.f32.xlu0 %v4218
  %v4220 = vpop.xlane.xlu0 %4219
  %v4221 = vsel %vm512, %v4177, 0.0
  %4222 = vadd.xlane.f32.xlu0 %v4221
  %v4223 = vpop.xlane.xlu0 %4222
  %v4224 = vsel %vm512, %v4178, 0.0
  %4225 = vadd.xlane.f32.xlu0 %v4224
  %v4226 = vpop.xlane.xlu0 %4225
  %v4243 = vperm.slane %v4181, %v578
  %v4244 = vperm.slane %v4184, %v580
  %v4245 = vsel %vm582, %v4244, %v4243
  %v4246 = vperm.slane %v4187, %v584
  %v4247 = vsel %vm586, %v4246, %v4245
  %v4248 = vperm.slane %v4190, %v588
  %v4249 = vsel %vm590, %v4248, %v4247
  %v4250 = vperm.slane %v4193, %v592
  %v4251 = vsel %vm594, %v4250, %v4249
  %v4252 = vperm.slane %v4196, %v596
  %v4253 = vsel %vm598, %v4252, %v4251
  %v4254 = vperm.slane %v4199, %v600
  %v4255 = vsel %vm602, %v4254, %v4253
  %v4256 = vperm.slane %v4202, %v604
  %v4257 = vsel %vm606, %v4256, %v4255
  %v4258 = vperm.slane %v4205, %v578
  %v4259 = vperm.slane %v4208, %v580
  %v4260 = vsel %vm582, %v4259, %v4258
  %v4261 = vperm.slane %v4211, %v584
  %v4262 = vsel %vm586, %v4261, %v4260
  %v4263 = vperm.slane %v4214, %v588
  %v4264 = vsel %vm590, %v4263, %v4262
  %v4265 = vperm.slane %v4217, %v592
  %v4266 = vsel %vm594, %v4265, %v4264
  %v4267 = vperm.slane %v4220, %v596
  %v4268 = vsel %vm598, %v4267, %v4266
  %v4269 = vperm.slane %v4223, %v600
  %v4270 = vsel %vm602, %v4269, %v4268
  %v4271 = vperm.slane %v4226, %v604
  %v4272 = vsel %vm606, %v4271, %v4270
  %v4273 = vsel %vm424, %v4272, %v4257
  %v4275 = vsel %vm625, %v4273, -inf
  %4276 = vmax.xlane.f32.xlu0 %v4275
  %v4277 = vpop.xlane.xlu0 %4276
  %v4279 = vperm.slane %v4277, 0
  %v4280 = vperm.slane %v4277, 1
  %v4283 = vsub.f32 %v4181, %v4279
  %v4284 = vsub.f32 %v4184, %v4279
  %v4285 = vsub.f32 %v4187, %v4279
  %v4286 = vsub.f32 %v4190, %v4279
  %v4287 = vsub.f32 %v4193, %v4279
  %v4288 = vsub.f32 %v4196, %v4279
  %v4289 = vsub.f32 %v4199, %v4279
  %v4290 = vsub.f32 %v4202, %v4279
  %v4291 = vsub.f32 %v4205, %v4280
  %v4292 = vsub.f32 %v4208, %v4280
  %v4293 = vsub.f32 %v4211, %v4280
  %v4294 = vsub.f32 %v4214, %v4280
  %v4295 = vsub.f32 %v4217, %v4280
  %v4296 = vsub.f32 %v4220, %v4280
  %v4297 = vsub.f32 %v4223, %v4280
  %v4298 = vsub.f32 %v4226, %v4280
  %v4299 = vmul.f32 %v4283, 1.442695
  %v4300 = vpow.pop %v4299
  %v4301 = vmul.f32 %v4284, 1.442695
  %v4302 = vpow.pop %v4301
  %v4303 = vmul.f32 %v4285, 1.442695
  %v4304 = vpow.pop %v4303
  %v4305 = vmul.f32 %v4286, 1.442695
  %v4306 = vpow.pop %v4305
  %v4307 = vmul.f32 %v4287, 1.442695
  %v4308 = vpow.pop %v4307
  %v4309 = vmul.f32 %v4288, 1.442695
  %v4310 = vpow.pop %v4309
  %v4311 = vmul.f32 %v4289, 1.442695
  %v4312 = vpow.pop %v4311
  %v4313 = vmul.f32 %v4290, 1.442695
  %v4314 = vpow.pop %v4313
  %v4315 = vmul.f32 %v4291, 1.442695
  %v4316 = vpow.pop %v4315
  %v4317 = vmul.f32 %v4292, 1.442695
  %v4318 = vpow.pop %v4317
  %v4319 = vmul.f32 %v4293, 1.442695
  %v4320 = vpow.pop %v4319
  %v4321 = vmul.f32 %v4294, 1.442695
  %v4322 = vpow.pop %v4321
  %v4323 = vmul.f32 %v4295, 1.442695
  %v4324 = vpow.pop %v4323
  %v4325 = vmul.f32 %v4296, 1.442695
  %v4326 = vpow.pop %v4325
  %v4327 = vmul.f32 %v4297, 1.442695
  %v4328 = vpow.pop %v4327
  %v4329 = vmul.f32 %v4298, 1.442695
  %v4330 = vpow.pop %v4329
  %4347 = vset.pattern.permute.xlu0 0
  %4348 = vperm.xlu0 %4347, %v4300
  %v4349 = vpop.permute.xlu0 %4348
  %4350 = vset.pattern.permute.xlu0 0
  %4351 = vperm.xlu0 %4350, %v4302
  %v4352 = vpop.permute.xlu0 %4351
  %4353 = vset.pattern.permute.xlu0 0
  %4354 = vperm.xlu0 %4353, %v4304
  %v4355 = vpop.permute.xlu0 %4354
  %4356 = vset.pattern.permute.xlu0 0
  %4357 = vperm.xlu0 %4356, %v4306
  %v4358 = vpop.permute.xlu0 %4357
  %4359 = vset.pattern.permute.xlu0 0
  %4360 = vperm.xlu0 %4359, %v4308
  %v4361 = vpop.permute.xlu0 %4360
  %4362 = vset.pattern.permute.xlu0 0
  %4363 = vperm.xlu0 %4362, %v4310
  %v4364 = vpop.permute.xlu0 %4363
  %4365 = vset.pattern.permute.xlu0 0
  %4366 = vperm.xlu0 %4365, %v4312
  %v4367 = vpop.permute.xlu0 %4366
  %4368 = vset.pattern.permute.xlu0 0
  %4369 = vperm.xlu0 %4368, %v4314
  %v4370 = vpop.permute.xlu0 %4369
  %4371 = vset.pattern.permute.xlu0 0
  %4372 = vperm.xlu0 %4371, %v4316
  %v4373 = vpop.permute.xlu0 %4372
  %4374 = vset.pattern.permute.xlu0 0
  %4375 = vperm.xlu0 %4374, %v4318
  %v4376 = vpop.permute.xlu0 %4375
  %4377 = vset.pattern.permute.xlu0 0
  %4378 = vperm.xlu0 %4377, %v4320
  %v4379 = vpop.permute.xlu0 %4378
  %4380 = vset.pattern.permute.xlu0 0
  %4381 = vperm.xlu0 %4380, %v4322
  %v4382 = vpop.permute.xlu0 %4381
  %4383 = vset.pattern.permute.xlu0 0
  %4384 = vperm.xlu0 %4383, %v4324
  %v4385 = vpop.permute.xlu0 %4384
  %4386 = vset.pattern.permute.xlu0 0
  %4387 = vperm.xlu0 %4386, %v4326
  %v4388 = vpop.permute.xlu0 %4387
  %4389 = vset.pattern.permute.xlu0 0
  %4390 = vperm.xlu0 %4389, %v4328
  %v4391 = vpop.permute.xlu0 %4390
  %4392 = vset.pattern.permute.xlu0 0
  %4393 = vperm.xlu0 %4392, %v4330
  %v4394 = vpop.permute.xlu0 %4393
  %v4395 = vperm.slane %v4349, %v578
  %v4396 = vperm.slane %v4352, %v580
  %v4397 = vsel %vm582, %v4396, %v4395
  %v4398 = vperm.slane %v4355, %v584
  %v4399 = vsel %vm586, %v4398, %v4397
  %v4400 = vperm.slane %v4358, %v588
  %v4401 = vsel %vm590, %v4400, %v4399
  %v4402 = vperm.slane %v4361, %v592
  %v4403 = vsel %vm594, %v4402, %v4401
  %v4404 = vperm.slane %v4364, %v596
  %v4405 = vsel %vm598, %v4404, %v4403
  %v4406 = vperm.slane %v4367, %v600
  %v4407 = vsel %vm602, %v4406, %v4405
  %v4408 = vperm.slane %v4370, %v604
  %v4409 = vsel %vm606, %v4408, %v4407
  %v4410 = vperm.slane %v4373, %v578
  %v4411 = vperm.slane %v4376, %v580
  %v4412 = vsel %vm582, %v4411, %v4410
  %v4413 = vperm.slane %v4379, %v584
  %v4414 = vsel %vm586, %v4413, %v4412
  %v4415 = vperm.slane %v4382, %v588
  %v4416 = vsel %vm590, %v4415, %v4414
  %v4417 = vperm.slane %v4385, %v592
  %v4418 = vsel %vm594, %v4417, %v4416
  %v4419 = vperm.slane %v4388, %v596
  %v4420 = vsel %vm598, %v4419, %v4418
  %v4421 = vperm.slane %v4391, %v600
  %v4422 = vsel %vm602, %v4421, %v4420
  %v4423 = vperm.slane %v4394, %v604
  %v4424 = vsel %vm606, %v4423, %v4422
  %v4425 = vsel %vm424, %v4424, %v4409
  %v4427 = vsel %vm625, %v4425, 0.0
  %4428 = vadd.xlane.f32.xlu0 %v4427
  %v4429 = vpop.xlane.xlu0 %4428
  %v4430 = vrcp.pop %v4429
  %v4432 = vperm.slane %v4430, 0
  %v4433 = vperm.slane %v4430, 1
  %v4436 = vmul.f32 %v4300, %v4432
  %v4437 = vmul.f32 %v4302, %v4432
  %v4438 = vmul.f32 %v4304, %v4432
  %v4439 = vmul.f32 %v4306, %v4432
  %v4440 = vmul.f32 %v4308, %v4432
  %v4441 = vmul.f32 %v4310, %v4432
  %v4442 = vmul.f32 %v4312, %v4432
  %v4443 = vmul.f32 %v4314, %v4432
  %v4444 = vmul.f32 %v4316, %v4433
  %v4445 = vmul.f32 %v4318, %v4433
  %v4446 = vmul.f32 %v4320, %v4433
  %v4447 = vmul.f32 %v4322, %v4433
  %v4448 = vmul.f32 %v4324, %v4433
  %v4449 = vmul.f32 %v4326, %v4433
  %v4450 = vmul.f32 %v4328, %v4433
  %v4451 = vmul.f32 %v4330, %v4433
  %4453 = vset.pattern.permute.xlu0 0
  %4454 = vperm.xlu0 %4453, %v4436
  %v4455 = vpop.permute.xlu0 %4454
  %4458 = vset.pattern.permute.xlu0 0
  %4459 = vperm.xlu0 %4458, %v4437
  %v4460 = vpop.permute.xlu0 %4459
  %4463 = vset.pattern.permute.xlu0 0
  %4464 = vperm.xlu0 %4463, %v4438
  %v4465 = vpop.permute.xlu0 %4464
  %4468 = vset.pattern.permute.xlu0 0
  %4469 = vperm.xlu0 %4468, %v4439
  %v4470 = vpop.permute.xlu0 %4469
  %4473 = vset.pattern.permute.xlu0 0
  %4474 = vperm.xlu0 %4473, %v4440
  %v4475 = vpop.permute.xlu0 %4474
  %4478 = vset.pattern.permute.xlu0 0
  %4479 = vperm.xlu0 %4478, %v4441
  %v4480 = vpop.permute.xlu0 %4479
  %4483 = vset.pattern.permute.xlu0 0
  %4484 = vperm.xlu0 %4483, %v4442
  %v4485 = vpop.permute.xlu0 %4484
  %4488 = vset.pattern.permute.xlu0 0
  %4489 = vperm.xlu0 %4488, %v4443
  %v4490 = vpop.permute.xlu0 %4489
  %4493 = vset.pattern.permute.xlu0 0
  %4494 = vperm.xlu0 %4493, %v4444
  %v4495 = vpop.permute.xlu0 %4494
  %4498 = vset.pattern.permute.xlu0 0
  %4499 = vperm.xlu0 %4498, %v4445
  %v4500 = vpop.permute.xlu0 %4499
  %4503 = vset.pattern.permute.xlu0 0
  %4504 = vperm.xlu0 %4503, %v4446
  %v4505 = vpop.permute.xlu0 %4504
  %4508 = vset.pattern.permute.xlu0 0
  %4509 = vperm.xlu0 %4508, %v4447
  %v4510 = vpop.permute.xlu0 %4509
  %4513 = vset.pattern.permute.xlu0 0
  %4514 = vperm.xlu0 %4513, %v4448
  %v4515 = vpop.permute.xlu0 %4514
  %4518 = vset.pattern.permute.xlu0 0
  %4519 = vperm.xlu0 %4518, %v4449
  %v4520 = vpop.permute.xlu0 %4519
  %4523 = vset.pattern.permute.xlu0 0
  %4524 = vperm.xlu0 %4523, %v4450
  %v4525 = vpop.permute.xlu0 %4524
  %4528 = vset.pattern.permute.xlu0 0
  %4529 = vperm.xlu0 %4528, %v4451
  %v4530 = vpop.permute.xlu0 %4529
  %v4532 = vmul.f32 %v171, %v4455
  %v4533 = vmul.f32 %v172, %v4460
  %v4534 = vmul.f32 %v173, %v4465
  %v4535 = vmul.f32 %v174, %v4470
  %v4536 = vmul.f32 %v175, %v4475
  %v4537 = vmul.f32 %v176, %v4480
  %v4538 = vmul.f32 %v177, %v4485
  %v4539 = vmul.f32 %v178, %v4490
  %v4540 = vmul.f32 %v179, %v4495
  %v4541 = vmul.f32 %v180, %v4500
  %v4542 = vmul.f32 %v181, %v4505
  %v4543 = vmul.f32 %v182, %v4510
  %v4544 = vmul.f32 %v183, %v4515
  %v4545 = vmul.f32 %v184, %v4520
  %v4546 = vmul.f32 %v185, %v4525
  %v4547 = vmul.f32 %v186, %v4530
  %v4548 = vsel %vm192, %v4532, 0.0
  %v4549 = vsel %vm192, %v4533, 0.0
  %v4550 = vadd.f32 %v4548, %v4549
  %v4551 = vsel %vm192, %v4534, 0.0
  %v4552 = vadd.f32 %v4550, %v4551
  %v4553 = vsel %vm192, %v4535, 0.0
  %v4554 = vadd.f32 %v4552, %v4553
  %v4555 = vsel %vm192, %v4536, 0.0
  %v4556 = vadd.f32 %v4554, %v4555
  %v4557 = vsel %vm192, %v4537, 0.0
  %v4558 = vadd.f32 %v4556, %v4557
  %v4559 = vsel %vm192, %v4538, 0.0
  %v4560 = vadd.f32 %v4558, %v4559
  %v4561 = vsel %vm192, %v4539, 0.0
  %v4562 = vadd.f32 %v4560, %v4561
  %v4563 = vrot.slane %v4562, 4
  %v4564 = vadd.f32 %v4562, %v4563
  %v4565 = vrot.slane %v4564, 2
  %v4566 = vadd.f32 %v4564, %v4565
  %v4567 = vrot.slane %v4566, 1
  %v4568 = vadd.f32 %v4566, %v4567
  %v4569 = vsel %vm192, %v4540, 0.0
  %v4570 = vsel %vm192, %v4541, 0.0
  %v4571 = vadd.f32 %v4569, %v4570
  %v4572 = vsel %vm192, %v4542, 0.0
  %v4573 = vadd.f32 %v4571, %v4572
  %v4574 = vsel %vm192, %v4543, 0.0
  %v4575 = vadd.f32 %v4573, %v4574
  %v4576 = vsel %vm192, %v4544, 0.0
  %v4577 = vadd.f32 %v4575, %v4576
  %v4578 = vsel %vm192, %v4545, 0.0
  %v4579 = vadd.f32 %v4577, %v4578
  %v4580 = vsel %vm192, %v4546, 0.0
  %v4581 = vadd.f32 %v4579, %v4580
  %v4582 = vsel %vm192, %v4547, 0.0
  %v4583 = vadd.f32 %v4581, %v4582
  %v4584 = vrot.slane %v4583, 4
  %v4585 = vadd.f32 %v4583, %v4584
  %v4586 = vrot.slane %v4585, 2
  %v4587 = vadd.f32 %v4585, %v4586
  %v4588 = vrot.slane %v4587, 1
  %v4589 = vadd.f32 %v4587, %v4588
  %v4592 = vsel %vm424, %v4589, %v4568
  %4594 = vst [vmem:[#allocation1] ss:$4 sm:$0xff] %v4056
  %v4595 = vld.sshfl [vmem:[#allocation1] sm:$0xff pattern:$0x73625140]
  %4596 = vrot.lane.b32.xlu0 %v4595, 40
  %v4597 = vpop.permute.xlu0 %4596
  %v4599 = vsel %vm192, %v4592, %v4597
  %v4601 = vsel %vm949, %v4599, 0
  %4603 = vmatpush.msra.mxu0 0.0
  %4604 = vmatpush.msra.mxu0 0.0
  %4605 = vmatpush.msra.mxu0 0.0
  %4606 = vmatpush.msra.mxu0 0.0
  %4607 = vmatpush.msra.mxu0 0.0
  %4608 = vmatpush.msra.mxu0 0.0
  %4609 = vmatpush.msra.mxu0 0.0
  %4610 = vmatpush.msra.mxu0 0.0
  %4611 = vmatpush.msra.mxu0 0.0
  %4612 = vmatpush.msra.mxu0 0.0
  %4613 = vmatpush.msra.mxu0 0.0
  %4614 = vmatpush.msra.mxu0 %v416
  %4615 = vmatpush.msra.mxu0 %v415
  %4616 = vmatpush.msra.mxu0 %v414
  %4617 = vmatpush.msra.mxu0 %v413
  %4618 = vmatpush.msra.mxu0 %v412
  %4619 = vmatmul.f32.gmra.mxu0 %v4601
  %v4620 = vpop.f32.mrf.mxu0
  %v4621 = vadd.f32 0.0, %v4620
  %4622 = vdwg.mxu0
  %v4623 = vadd.f32 %v403, %v4621
  %v4624 = vxor.u32 %v4623, 2147483648
  %v4625 = vmul.f32 %v4624, 1.442695
  %v4626 = vpow.pop %v4625
  %v4627 = vadd.f32 %v4626, 1.0
  %v4628 = vrcp.pop %v4627
  %v4629 = vmul.f32 %v4627, %v4628
  %v4630 = vsub.f32 1.0, %v4629
  %v4631 = vmul.f32 %v4628, %v4630
  %v4632 = vadd.f32 %v4628, %v4631
  %vm4633 = vweird.f32 %v4627
  %vm4634 = vweird.f32 %v4628
  %vm4635 = vmor %vm4633, %vm4634
  %v4636 = vsel %vm4635, %v4628, %v4632
  %v4637 = vand.u32 2147483647, %v4627
  %vm4638 = vcmp.eq.f32.partialorder %v4637, 8.507059e+37
  %v4639 = vand.u32 %v4627, 2147483648
  %v4640 = vor.u32 1.1754944e-38, %v4639
  %v4641 = vsel %vm4638, %v4640, %v4636
  %v4642 = vmul.f32 1.0, %v4641
  %v4643 = vtanh.pop %v4623
  %v4644 = vmul.f32 %v4642, %v4050
  %4646 = vrot.lane.b32.xlu0 %v4643, 64
  %v4647 = vpop.permute.xlu0 %4646
  %v4649 = vmul.f32 %v4642, %v4647
  %4651 = vrot.lane.b32.xlu0 %v4649, 32
  %v4652 = vpop.permute.xlu0 %4651
  %v4654 = vadd.f32 %v4644, %v4652
  %v4655 = vtanh.pop %v4654
  %4657 = vrot.lane.b32.xlu0 %v4655, 64
  %v4658 = vpop.permute.xlu0 %4657
  %v4660 = vmul.f32 %v4642, %v4658
  %4662 = vst [vmem:[#allocation1] ss:$4 sm:$0xff] %v4660
  %v4663 = vld.sshfl [vmem:[#allocation1] sm:$0xff pattern:$0x73625140]
  %4664 = vrot.lane.b32.xlu0 %v4663, 32
  %v4665 = vpop.permute.xlu0 %4664
  %v4666 = vsel %vm428, %v4665, 0
  %4668 = vmatpush.msra.mxu0 0.0
  %4669 = vmatpush.msra.mxu0 0.0
  %4670 = vmatpush.msra.mxu0 0.0
  %4671 = vmatpush.msra.mxu0 0.0
  %4672 = vmatpush.msra.mxu0 0.0
  %4673 = vmatpush.msra.mxu0 0.0
  %4674 = vmatpush.msra.mxu0 0.0
  %4675 = vmatpush.msra.mxu0 0.0
  %4676 = vmatpush.msra.mxu0 0.0
  %4677 = vmatpush.msra.mxu0 0.0
  %4678 = vmatpush.msra.mxu0 0.0
  %4679 = vmatpush.msra.mxu0 0.0
  %4680 = vmatpush.msra.mxu0 %v420
  %4681 = vmatpush.msra.mxu0 %v419
  %4682 = vmatpush.msra.mxu0 %v418
  %4683 = vmatpush.msra.mxu0 %v417
  %4684 = vmatmul.f32.gmra.mxu0 %v4666
  %v4685 = vpop.f32.mrf.mxu0
  %v4686 = vadd.f32 0.0, %v4685
  %4687 = vdwg.mxu0
  %v4688 = vadd.f32 %v4686, %v1054
  %v4689 = vperm.slane %v4455, %v592
  %v4690 = vperm.slane %v4460, %v596
  %v4691 = vsel %vm598, %v4690, %v4689
  %v4692 = vperm.slane %v4465, %v600
  %v4693 = vsel %vm602, %v4692, %v4691
  %v4694 = vperm.slane %v4470, %v604
  %v4695 = vsel %vm606, %v4694, %v4693
  %v4696 = vperm.slane %v4475, %v1064
  %v4697 = vsel %vm1066, %v4696, %v4695
  %v4698 = vperm.slane %v4480, %v1068
  %v4699 = vsel %vm1070, %v4698, %v4697
  %v4700 = vperm.slane %v4485, %v1072
  %v4701 = vsel %vm1074, %v4700, %v4699
  %v4702 = vperm.slane %v4490, %v1076
  %v4703 = vsel %vm1078, %v4702, %v4701
  %v4704 = vperm.slane %v4495, %v592
  %v4705 = vperm.slane %v4500, %v596
  %v4706 = vsel %vm598, %v4705, %v4704
  %v4707 = vperm.slane %v4505, %v600
  %v4708 = vsel %vm602, %v4707, %v4706
  %v4709 = vperm.slane %v4510, %v604
  %v4710 = vsel %vm606, %v4709, %v4708
  %v4711 = vperm.slane %v4515, %v1064
  %v4712 = vsel %vm1066, %v4711, %v4710
  %v4713 = vperm.slane %v4520, %v1068
  %v4714 = vsel %vm1070, %v4713, %v4712
  %v4715 = vperm.slane %v4525, %v1072
  %v4716 = vsel %vm1074, %v4715, %v4714
  %v4717 = vperm.slane %v4530, %v1076
  %v4718 = vsel %vm1078, %v4717, %v4716
  %v4719 = vsel %vm424, %v4718, %v4703
  %v4721 = vsel %vm428, %v4688, %v4719
  %v4722 = vsel %vm1098, %v4721, 0.0
  %s4723 = scalar_lea.vmem %s10, 12
  %4724 = vst [vmem:[%s4723] sm:$0x3] %v4722
  %v4726 = vrot.slane %v4686, 1
  %v4727 = vperm.slane %v4686, 0
  %v4728 = vperm.slane %v4726, 0
  %4729 = vrot.lane.b32.xlu0 %v4727, 96
  %v4730 = vpop.permute.xlu0 %4729
  %4731 = vrot.lane.b32.xlu0 %v4728, 96
  %v4732 = vpop.permute.xlu0 %4731
  %v4735 = vadd.f32 %v259, %v4730
  %v4736 = vadd.f32 %v262, %v4730
  %v4737 = vadd.f32 %v265, %v4730
  %v4738 = vadd.f32 %v268, %v4730
  %v4739 = vadd.f32 %v271, %v4730
  %v4740 = vadd.f32 %v274, %v4730
  %v4741 = vadd.f32 %v277, %v4730
  %v4742 = vadd.f32 %v280, %v4730
  %v4743 = vadd.f32 %v283, %v4732
  %v4744 = vadd.f32 %v286, %v4732
  %v4745 = vadd.f32 %v289, %v4732
  %v4746 = vadd.f32 %v292, %v4732
  %v4747 = vadd.f32 %v295, %v4732
  %v4748 = vadd.f32 %v298, %v4732
  %v4749 = vadd.f32 %v301, %v4732
  %v4750 = vadd.f32 %v304, %v4732
  %v4751 = vtanh.pop %v4735
  %v4752 = vtanh.pop %v4736
  %v4753 = vtanh.pop %v4737
  %v4754 = vtanh.pop %v4738
  %v4755 = vtanh.pop %v4739
  %v4756 = vtanh.pop %v4740
  %v4757 = vtanh.pop %v4741
  %v4758 = vtanh.pop %v4742
  %v4759 = vtanh.pop %v4743
  %v4760 = vtanh.pop %v4744
  %v4761 = vtanh.pop %v4745
  %v4762 = vtanh.pop %v4746
  %v4763 = vtanh.pop %v4747
  %v4764 = vtanh.pop %v4748
  %v4765 = vtanh.pop %v4749
  %v4766 = vtanh.pop %v4750
  %v4767 = vmul.f32 %v4751, %v494
  %v4768 = vmul.f32 %v4752, %v494
  %v4769 = vmul.f32 %v4753, %v494
  %v4770 = vmul.f32 %v4754, %v494
  %v4771 = vmul.f32 %v4755, %v494
  %v4772 = vmul.f32 %v4756, %v494
  %v4773 = vmul.f32 %v4757, %v494
  %v4774 = vmul.f32 %v4758, %v494
  %v4775 = vmul.f32 %v4759, %v494
  %v4776 = vmul.f32 %v4760, %v494
  %v4777 = vmul.f32 %v4761, %v494
  %v4778 = vmul.f32 %v4762, %v494
  %v4779 = vmul.f32 %v4763, %v494
  %v4780 = vmul.f32 %v4764, %v494
  %v4781 = vmul.f32 %v4765, %v494
  %v4782 = vmul.f32 %v4766, %v494
  %v4783 = vsel %vm512, %v4767, 0.0
  %4784 = vadd.xlane.f32.xlu0 %v4783
  %v4785 = vpop.xlane.xlu0 %4784
  %v4786 = vsel %vm512, %v4768, 0.0
  %4787 = vadd.xlane.f32.xlu0 %v4786
  %v4788 = vpop.xlane.xlu0 %4787
  %v4789 = vsel %vm512, %v4769, 0.0
  %4790 = vadd.xlane.f32.xlu0 %v4789
  %v4791 = vpop.xlane.xlu0 %4790
  %v4792 = vsel %vm512, %v4770, 0.0
  %4793 = vadd.xlane.f32.xlu0 %v4792
  %v4794 = vpop.xlane.xlu0 %4793
  %v4795 = vsel %vm512, %v4771, 0.0
  %4796 = vadd.xlane.f32.xlu0 %v4795
  %v4797 = vpop.xlane.xlu0 %4796
  %v4798 = vsel %vm512, %v4772, 0.0
  %4799 = vadd.xlane.f32.xlu0 %v4798
  %v4800 = vpop.xlane.xlu0 %4799
  %v4801 = vsel %vm512, %v4773, 0.0
  %4802 = vadd.xlane.f32.xlu0 %v4801
  %v4803 = vpop.xlane.xlu0 %4802
  %v4804 = vsel %vm512, %v4774, 0.0
  %4805 = vadd.xlane.f32.xlu0 %v4804
  %v4806 = vpop.xlane.xlu0 %4805
  %v4807 = vsel %vm512, %v4775, 0.0
  %4808 = vadd.xlane.f32.xlu0 %v4807
  %v4809 = vpop.xlane.xlu0 %4808
  %v4810 = vsel %vm512, %v4776, 0.0
  %4811 = vadd.xlane.f32.xlu0 %v4810
  %v4812 = vpop.xlane.xlu0 %4811
  %v4813 = vsel %vm512, %v4777, 0.0
  %4814 = vadd.xlane.f32.xlu0 %v4813
  %v4815 = vpop.xlane.xlu0 %4814
  %v4816 = vsel %vm512, %v4778, 0.0
  %4817 = vadd.xlane.f32.xlu0 %v4816
  %v4818 = vpop.xlane.xlu0 %4817
  %v4819 = vsel %vm512, %v4779, 0.0
  %4820 = vadd.xlane.f32.xlu0 %v4819
  %v4821 = vpop.xlane.xlu0 %4820
  %v4822 = vsel %vm512, %v4780, 0.0
  %4823 = vadd.xlane.f32.xlu0 %v4822
  %v4824 = vpop.xlane.xlu0 %4823
  %v4825 = vsel %vm512, %v4781, 0.0
  %4826 = vadd.xlane.f32.xlu0 %v4825
  %v4827 = vpop.xlane.xlu0 %4826
  %v4828 = vsel %vm512, %v4782, 0.0
  %4829 = vadd.xlane.f32.xlu0 %v4828
  %v4830 = vpop.xlane.xlu0 %4829
  %v4847 = vperm.slane %v4785, %v578
  %v4848 = vperm.slane %v4788, %v580
  %v4849 = vsel %vm582, %v4848, %v4847
  %v4850 = vperm.slane %v4791, %v584
  %v4851 = vsel %vm586, %v4850, %v4849
  %v4852 = vperm.slane %v4794, %v588
  %v4853 = vsel %vm590, %v4852, %v4851
  %v4854 = vperm.slane %v4797, %v592
  %v4855 = vsel %vm594, %v4854, %v4853
  %v4856 = vperm.slane %v4800, %v596
  %v4857 = vsel %vm598, %v4856, %v4855
  %v4858 = vperm.slane %v4803, %v600
  %v4859 = vsel %vm602, %v4858, %v4857
  %v4860 = vperm.slane %v4806, %v604
  %v4861 = vsel %vm606, %v4860, %v4859
  %v4862 = vperm.slane %v4809, %v578
  %v4863 = vperm.slane %v4812, %v580
  %v4864 = vsel %vm582, %v4863, %v4862
  %v4865 = vperm.slane %v4815, %v584
  %v4866 = vsel %vm586, %v4865, %v4864
  %v4867 = vperm.slane %v4818, %v588
  %v4868 = vsel %vm590, %v4867, %v4866
  %v4869 = vperm.slane %v4821, %v592
  %v4870 = vsel %vm594, %v4869, %v4868
  %v4871 = vperm.slane %v4824, %v596
  %v4872 = vsel %vm598, %v4871, %v4870
  %v4873 = vperm.slane %v4827, %v600
  %v4874 = vsel %vm602, %v4873, %v4872
  %v4875 = vperm.slane %v4830, %v604
  %v4876 = vsel %vm606, %v4875, %v4874
  %v4877 = vsel %vm424, %v4876, %v4861
  %v4879 = vsel %vm625, %v4877, -inf
  %4880 = vmax.xlane.f32.xlu0 %v4879
  %v4881 = vpop.xlane.xlu0 %4880
  %v4883 = vperm.slane %v4881, 0
  %v4884 = vperm.slane %v4881, 1
  %v4887 = vsub.f32 %v4785, %v4883
  %v4888 = vsub.f32 %v4788, %v4883
  %v4889 = vsub.f32 %v4791, %v4883
  %v4890 = vsub.f32 %v4794, %v4883
  %v4891 = vsub.f32 %v4797, %v4883
  %v4892 = vsub.f32 %v4800, %v4883
  %v4893 = vsub.f32 %v4803, %v4883
  %v4894 = vsub.f32 %v4806, %v4883
  %v4895 = vsub.f32 %v4809, %v4884
  %v4896 = vsub.f32 %v4812, %v4884
  %v4897 = vsub.f32 %v4815, %v4884
  %v4898 = vsub.f32 %v4818, %v4884
  %v4899 = vsub.f32 %v4821, %v4884
  %v4900 = vsub.f32 %v4824, %v4884
  %v4901 = vsub.f32 %v4827, %v4884
  %v4902 = vsub.f32 %v4830, %v4884
  %v4903 = vmul.f32 %v4887, 1.442695
  %v4904 = vpow.pop %v4903
  %v4905 = vmul.f32 %v4888, 1.442695
  %v4906 = vpow.pop %v4905
  %v4907 = vmul.f32 %v4889, 1.442695
  %v4908 = vpow.pop %v4907
  %v4909 = vmul.f32 %v4890, 1.442695
  %v4910 = vpow.pop %v4909
  %v4911 = vmul.f32 %v4891, 1.442695
  %v4912 = vpow.pop %v4911
  %v4913 = vmul.f32 %v4892, 1.442695
  %v4914 = vpow.pop %v4913
  %v4915 = vmul.f32 %v4893, 1.442695
  %v4916 = vpow.pop %v4915
  %v4917 = vmul.f32 %v4894, 1.442695
  %v4918 = vpow.pop %v4917
  %v4919 = vmul.f32 %v4895, 1.442695
  %v4920 = vpow.pop %v4919
  %v4921 = vmul.f32 %v4896, 1.442695
  %v4922 = vpow.pop %v4921
  %v4923 = vmul.f32 %v4897, 1.442695
  %v4924 = vpow.pop %v4923
  %v4925 = vmul.f32 %v4898, 1.442695
  %v4926 = vpow.pop %v4925
  %v4927 = vmul.f32 %v4899, 1.442695
  %v4928 = vpow.pop %v4927
  %v4929 = vmul.f32 %v4900, 1.442695
  %v4930 = vpow.pop %v4929
  %v4931 = vmul.f32 %v4901, 1.442695
  %v4932 = vpow.pop %v4931
  %v4933 = vmul.f32 %v4902, 1.442695
  %v4934 = vpow.pop %v4933
  %4951 = vset.pattern.permute.xlu0 0
  %4952 = vperm.xlu0 %4951, %v4904
  %v4953 = vpop.permute.xlu0 %4952
  %4954 = vset.pattern.permute.xlu0 0
  %4955 = vperm.xlu0 %4954, %v4906
  %v4956 = vpop.permute.xlu0 %4955
  %4957 = vset.pattern.permute.xlu0 0
  %4958 = vperm.xlu0 %4957, %v4908
  %v4959 = vpop.permute.xlu0 %4958
  %4960 = vset.pattern.permute.xlu0 0
  %4961 = vperm.xlu0 %4960, %v4910
  %v4962 = vpop.permute.xlu0 %4961
  %4963 = vset.pattern.permute.xlu0 0
  %4964 = vperm.xlu0 %4963, %v4912
  %v4965 = vpop.permute.xlu0 %4964
  %4966 = vset.pattern.permute.xlu0 0
  %4967 = vperm.xlu0 %4966, %v4914
  %v4968 = vpop.permute.xlu0 %4967
  %4969 = vset.pattern.permute.xlu0 0
  %4970 = vperm.xlu0 %4969, %v4916
  %v4971 = vpop.permute.xlu0 %4970
  %4972 = vset.pattern.permute.xlu0 0
  %4973 = vperm.xlu0 %4972, %v4918
  %v4974 = vpop.permute.xlu0 %4973
  %4975 = vset.pattern.permute.xlu0 0
  %4976 = vperm.xlu0 %4975, %v4920
  %v4977 = vpop.permute.xlu0 %4976
  %4978 = vset.pattern.permute.xlu0 0
  %4979 = vperm.xlu0 %4978, %v4922
  %v4980 = vpop.permute.xlu0 %4979
  %4981 = vset.pattern.permute.xlu0 0
  %4982 = vperm.xlu0 %4981, %v4924
  %v4983 = vpop.permute.xlu0 %4982
  %4984 = vset.pattern.permute.xlu0 0
  %4985 = vperm.xlu0 %4984, %v4926
  %v4986 = vpop.permute.xlu0 %4985
  %4987 = vset.pattern.permute.xlu0 0
  %4988 = vperm.xlu0 %4987, %v4928
  %v4989 = vpop.permute.xlu0 %4988
  %4990 = vset.pattern.permute.xlu0 0
  %4991 = vperm.xlu0 %4990, %v4930
  %v4992 = vpop.permute.xlu0 %4991
  %4993 = vset.pattern.permute.xlu0 0
  %4994 = vperm.xlu0 %4993, %v4932
  %v4995 = vpop.permute.xlu0 %4994
  %4996 = vset.pattern.permute.xlu0 0
  %4997 = vperm.xlu0 %4996, %v4934
  %v4998 = vpop.permute.xlu0 %4997
  %v4999 = vperm.slane %v4953, %v578
  %v5000 = vperm.slane %v4956, %v580
  %v5001 = vsel %vm582, %v5000, %v4999
  %v5002 = vperm.slane %v4959, %v584
  %v5003 = vsel %vm586, %v5002, %v5001
  %v5004 = vperm.slane %v4962, %v588
  %v5005 = vsel %vm590, %v5004, %v5003
  %v5006 = vperm.slane %v4965, %v592
  %v5007 = vsel %vm594, %v5006, %v5005
  %v5008 = vperm.slane %v4968, %v596
  %v5009 = vsel %vm598, %v5008, %v5007
  %v5010 = vperm.slane %v4971, %v600
  %v5011 = vsel %vm602, %v5010, %v5009
  %v5012 = vperm.slane %v4974, %v604
  %v5013 = vsel %vm606, %v5012, %v5011
  %v5014 = vperm.slane %v4977, %v578
  %v5015 = vperm.slane %v4980, %v580
  %v5016 = vsel %vm582, %v5015, %v5014
  %v5017 = vperm.slane %v4983, %v584
  %v5018 = vsel %vm586, %v5017, %v5016
  %v5019 = vperm.slane %v4986, %v588
  %v5020 = vsel %vm590, %v5019, %v5018
  %v5021 = vperm.slane %v4989, %v592
  %v5022 = vsel %vm594, %v5021, %v5020
  %v5023 = vperm.slane %v4992, %v596
  %v5024 = vsel %vm598, %v5023, %v5022
  %v5025 = vperm.slane %v4995, %v600
  %v5026 = vsel %vm602, %v5025, %v5024
  %v5027 = vperm.slane %v4998, %v604
  %v5028 = vsel %vm606, %v5027, %v5026
  %v5029 = vsel %vm424, %v5028, %v5013
  %v5031 = vsel %vm625, %v5029, 0.0
  %5032 = vadd.xlane.f32.xlu0 %v5031
  %v5033 = vpop.xlane.xlu0 %5032
  %v5034 = vrcp.pop %v5033
  %v5036 = vperm.slane %v5034, 0
  %v5037 = vperm.slane %v5034, 1
  %v5040 = vmul.f32 %v4904, %v5036
  %v5041 = vmul.f32 %v4906, %v5036
  %v5042 = vmul.f32 %v4908, %v5036
  %v5043 = vmul.f32 %v4910, %v5036
  %v5044 = vmul.f32 %v4912, %v5036
  %v5045 = vmul.f32 %v4914, %v5036
  %v5046 = vmul.f32 %v4916, %v5036
  %v5047 = vmul.f32 %v4918, %v5036
  %v5048 = vmul.f32 %v4920, %v5037
  %v5049 = vmul.f32 %v4922, %v5037
  %v5050 = vmul.f32 %v4924, %v5037
  %v5051 = vmul.f32 %v4926, %v5037
  %v5052 = vmul.f32 %v4928, %v5037
  %v5053 = vmul.f32 %v4930, %v5037
  %v5054 = vmul.f32 %v4932, %v5037
  %v5055 = vmul.f32 %v4934, %v5037
  %5057 = vset.pattern.permute.xlu0 0
  %5058 = vperm.xlu0 %5057, %v5040
  %v5059 = vpop.permute.xlu0 %5058
  %5062 = vset.pattern.permute.xlu0 0
  %5063 = vperm.xlu0 %5062, %v5041
  %v5064 = vpop.permute.xlu0 %5063
  %5067 = vset.pattern.permute.xlu0 0
  %5068 = vperm.xlu0 %5067, %v5042
  %v5069 = vpop.permute.xlu0 %5068
  %5072 = vset.pattern.permute.xlu0 0
  %5073 = vperm.xlu0 %5072, %v5043
  %v5074 = vpop.permute.xlu0 %5073
  %5077 = vset.pattern.permute.xlu0 0
  %5078 = vperm.xlu0 %5077, %v5044
  %v5079 = vpop.permute.xlu0 %5078
  %5082 = vset.pattern.permute.xlu0 0
  %5083 = vperm.xlu0 %5082, %v5045
  %v5084 = vpop.permute.xlu0 %5083
  %5087 = vset.pattern.permute.xlu0 0
  %5088 = vperm.xlu0 %5087, %v5046
  %v5089 = vpop.permute.xlu0 %5088
  %5092 = vset.pattern.permute.xlu0 0
  %5093 = vperm.xlu0 %5092, %v5047
  %v5094 = vpop.permute.xlu0 %5093
  %5097 = vset.pattern.permute.xlu0 0
  %5098 = vperm.xlu0 %5097, %v5048
  %v5099 = vpop.permute.xlu0 %5098
  %5102 = vset.pattern.permute.xlu0 0
  %5103 = vperm.xlu0 %5102, %v5049
  %v5104 = vpop.permute.xlu0 %5103
  %5107 = vset.pattern.permute.xlu0 0
  %5108 = vperm.xlu0 %5107, %v5050
  %v5109 = vpop.permute.xlu0 %5108
  %5112 = vset.pattern.permute.xlu0 0
  %5113 = vperm.xlu0 %5112, %v5051
  %v5114 = vpop.permute.xlu0 %5113
  %5117 = vset.pattern.permute.xlu0 0
  %5118 = vperm.xlu0 %5117, %v5052
  %v5119 = vpop.permute.xlu0 %5118
  %5122 = vset.pattern.permute.xlu0 0
  %5123 = vperm.xlu0 %5122, %v5053
  %v5124 = vpop.permute.xlu0 %5123
  %5127 = vset.pattern.permute.xlu0 0
  %5128 = vperm.xlu0 %5127, %v5054
  %v5129 = vpop.permute.xlu0 %5128
  %5132 = vset.pattern.permute.xlu0 0
  %5133 = vperm.xlu0 %5132, %v5055
  %v5134 = vpop.permute.xlu0 %5133
  %v5136 = vmul.f32 %v171, %v5059
  %v5137 = vmul.f32 %v172, %v5064
  %v5138 = vmul.f32 %v173, %v5069
  %v5139 = vmul.f32 %v174, %v5074
  %v5140 = vmul.f32 %v175, %v5079
  %v5141 = vmul.f32 %v176, %v5084
  %v5142 = vmul.f32 %v177, %v5089
  %v5143 = vmul.f32 %v178, %v5094
  %v5144 = vmul.f32 %v179, %v5099
  %v5145 = vmul.f32 %v180, %v5104
  %v5146 = vmul.f32 %v181, %v5109
  %v5147 = vmul.f32 %v182, %v5114
  %v5148 = vmul.f32 %v183, %v5119
  %v5149 = vmul.f32 %v184, %v5124
  %v5150 = vmul.f32 %v185, %v5129
  %v5151 = vmul.f32 %v186, %v5134
  %v5152 = vsel %vm192, %v5136, 0.0
  %v5153 = vsel %vm192, %v5137, 0.0
  %v5154 = vadd.f32 %v5152, %v5153
  %v5155 = vsel %vm192, %v5138, 0.0
  %v5156 = vadd.f32 %v5154, %v5155
  %v5157 = vsel %vm192, %v5139, 0.0
  %v5158 = vadd.f32 %v5156, %v5157
  %v5159 = vsel %vm192, %v5140, 0.0
  %v5160 = vadd.f32 %v5158, %v5159
  %v5161 = vsel %vm192, %v5141, 0.0
  %v5162 = vadd.f32 %v5160, %v5161
  %v5163 = vsel %vm192, %v5142, 0.0
  %v5164 = vadd.f32 %v5162, %v5163
  %v5165 = vsel %vm192, %v5143, 0.0
  %v5166 = vadd.f32 %v5164, %v5165
  %v5167 = vrot.slane %v5166, 4
  %v5168 = vadd.f32 %v5166, %v5167
  %v5169 = vrot.slane %v5168, 2
  %v5170 = vadd.f32 %v5168, %v5169
  %v5171 = vrot.slane %v5170, 1
  %v5172 = vadd.f32 %v5170, %v5171
  %v5173 = vsel %vm192, %v5144, 0.0
  %v5174 = vsel %vm192, %v5145, 0.0
  %v5175 = vadd.f32 %v5173, %v5174
  %v5176 = vsel %vm192, %v5146, 0.0
  %v5177 = vadd.f32 %v5175, %v5176
  %v5178 = vsel %vm192, %v5147, 0.0
  %v5179 = vadd.f32 %v5177, %v5178
  %v5180 = vsel %vm192, %v5148, 0.0
  %v5181 = vadd.f32 %v5179, %v5180
  %v5182 = vsel %vm192, %v5149, 0.0
  %v5183 = vadd.f32 %v5181, %v5182
  %v5184 = vsel %vm192, %v5150, 0.0
  %v5185 = vadd.f32 %v5183, %v5184
  %v5186 = vsel %vm192, %v5151, 0.0
  %v5187 = vadd.f32 %v5185, %v5186
  %v5188 = vrot.slane %v5187, 4
  %v5189 = vadd.f32 %v5187, %v5188
  %v5190 = vrot.slane %v5189, 2
  %v5191 = vadd.f32 %v5189, %v5190
  %v5192 = vrot.slane %v5191, 1
  %v5193 = vadd.f32 %v5191, %v5192
  %v5196 = vsel %vm424, %v5193, %v5172
  %5198 = vst [vmem:[#allocation1] ss:$4 sm:$0xff] %v4660
  %v5199 = vld.sshfl [vmem:[#allocation1] sm:$0xff pattern:$0x73625140]
  %5200 = vrot.lane.b32.xlu0 %v5199, 40
  %v5201 = vpop.permute.xlu0 %5200
  %v5203 = vsel %vm192, %v5196, %v5201
  %v5205 = vsel %vm949, %v5203, 0
  %5207 = vmatpush.msra.mxu0 0.0
  %5208 = vmatpush.msra.mxu0 0.0
  %5209 = vmatpush.msra.mxu0 0.0
  %5210 = vmatpush.msra.mxu0 0.0
  %5211 = vmatpush.msra.mxu0 0.0
  %5212 = vmatpush.msra.mxu0 0.0
  %5213 = vmatpush.msra.mxu0 0.0
  %5214 = vmatpush.msra.mxu0 0.0
  %5215 = vmatpush.msra.mxu0 0.0
  %5216 = vmatpush.msra.mxu0 0.0
  %5217 = vmatpush.msra.mxu0 0.0
  %5218 = vmatpush.msra.mxu0 %v416
  %5219 = vmatpush.msra.mxu0 %v415
  %5220 = vmatpush.msra.mxu0 %v414
  %5221 = vmatpush.msra.mxu0 %v413
  %5222 = vmatpush.msra.mxu0 %v412
  %5223 = vmatmul.f32.gmra.mxu0 %v5205
  %v5224 = vpop.f32.mrf.mxu0
  %v5225 = vadd.f32 0.0, %v5224
  %5226 = vdwg.mxu0
  %v5227 = vadd.f32 %v404, %v5225
  %v5228 = vxor.u32 %v5227, 2147483648
  %v5229 = vmul.f32 %v5228, 1.442695
  %v5230 = vpow.pop %v5229
  %v5231 = vadd.f32 %v5230, 1.0
  %v5232 = vrcp.pop %v5231
  %v5233 = vmul.f32 %v5231, %v5232
  %v5234 = vsub.f32 1.0, %v5233
  %v5235 = vmul.f32 %v5232, %v5234
  %v5236 = vadd.f32 %v5232, %v5235
  %vm5237 = vweird.f32 %v5231
  %vm5238 = vweird.f32 %v5232
  %vm5239 = vmor %vm5237, %vm5238
  %v5240 = vsel %vm5239, %v5232, %v5236
  %v5241 = vand.u32 2147483647, %v5231
  %vm5242 = vcmp.eq.f32.partialorder %v5241, 8.507059e+37
  %v5243 = vand.u32 %v5231, 2147483648
  %v5244 = vor.u32 1.1754944e-38, %v5243
  %v5245 = vsel %vm5242, %v5244, %v5240
  %v5246 = vmul.f32 1.0, %v5245
  %v5247 = vtanh.pop %v5227
  %v5248 = vmul.f32 %v5246, %v4654
  %5250 = vrot.lane.b32.xlu0 %v5247, 64
  %v5251 = vpop.permute.xlu0 %5250
  %v5253 = vmul.f32 %v5246, %v5251
  %5255 = vrot.lane.b32.xlu0 %v5253, 32
  %v5256 = vpop.permute.xlu0 %5255
  %v5258 = vadd.f32 %v5248, %v5256
  %v5259 = vtanh.pop %v5258
  %5261 = vrot.lane.b32.xlu0 %v5259, 64
  %v5262 = vpop.permute.xlu0 %5261
  %v5264 = vmul.f32 %v5246, %v5262
  %5266 = vst [vmem:[#allocation1] ss:$4 sm:$0xff] %v5264
  %v5267 = vld.sshfl [vmem:[#allocation1] sm:$0xff pattern:$0x73625140]
  %5268 = vrot.lane.b32.xlu0 %v5267, 32
  %v5269 = vpop.permute.xlu0 %5268
  %v5270 = vsel %vm428, %v5269, 0
  %5272 = vmatpush.msra.mxu0 0.0
  %5273 = vmatpush.msra.mxu0 0.0
  %5274 = vmatpush.msra.mxu0 0.0
  %5275 = vmatpush.msra.mxu0 0.0
  %5276 = vmatpush.msra.mxu0 0.0
  %5277 = vmatpush.msra.mxu0 0.0
  %5278 = vmatpush.msra.mxu0 0.0
  %5279 = vmatpush.msra.mxu0 0.0
  %5280 = vmatpush.msra.mxu0 0.0
  %5281 = vmatpush.msra.mxu0 0.0
  %5282 = vmatpush.msra.mxu0 0.0
  %5283 = vmatpush.msra.mxu0 0.0
  %5284 = vmatpush.msra.mxu0 %v420
  %5285 = vmatpush.msra.mxu0 %v419
  %5286 = vmatpush.msra.mxu0 %v418
  %5287 = vmatpush.msra.mxu0 %v417
  %5288 = vmatmul.f32.gmra.mxu0 %v5270
  %v5289 = vpop.f32.mrf.mxu0
  %v5290 = vadd.f32 0.0, %v5289
  %5291 = vdwg.mxu0
  %v5292 = vadd.f32 %v5290, %v1054
  %v5293 = vperm.slane %v5059, %v592
  %v5294 = vperm.slane %v5064, %v596
  %v5295 = vsel %vm598, %v5294, %v5293
  %v5296 = vperm.slane %v5069, %v600
  %v5297 = vsel %vm602, %v5296, %v5295
  %v5298 = vperm.slane %v5074, %v604
  %v5299 = vsel %vm606, %v5298, %v5297
  %v5300 = vperm.slane %v5079, %v1064
  %v5301 = vsel %vm1066, %v5300, %v5299
  %v5302 = vperm.slane %v5084, %v1068
  %v5303 = vsel %vm1070, %v5302, %v5301
  %v5304 = vperm.slane %v5089, %v1072
  %v5305 = vsel %vm1074, %v5304, %v5303
  %v5306 = vperm.slane %v5094, %v1076
  %v5307 = vsel %vm1078, %v5306, %v5305
  %v5308 = vperm.slane %v5099, %v592
  %v5309 = vperm.slane %v5104, %v596
  %v5310 = vsel %vm598, %v5309, %v5308
  %v5311 = vperm.slane %v5109, %v600
  %v5312 = vsel %vm602, %v5311, %v5310
  %v5313 = vperm.slane %v5114, %v604
  %v5314 = vsel %vm606, %v5313, %v5312
  %v5315 = vperm.slane %v5119, %v1064
  %v5316 = vsel %vm1066, %v5315, %v5314
  %v5317 = vperm.slane %v5124, %v1068
  %v5318 = vsel %vm1070, %v5317, %v5316
  %v5319 = vperm.slane %v5129, %v1072
  %v5320 = vsel %vm1074, %v5319, %v5318
  %v5321 = vperm.slane %v5134, %v1076
  %v5322 = vsel %vm1078, %v5321, %v5320
  %v5323 = vsel %vm424, %v5322, %v5307
  %v5325 = vsel %vm428, %v5292, %v5323
  %v5326 = vsel %vm1098, %v5325, 0.0
  %s5327 = scalar_lea.vmem %s10, 14
  %5328 = vst [vmem:[%s5327] sm:$0x3] %v5326
  // Predicated region
  $region42: #{attention_decoder_forward.1} parent=0 // pred_check
    _
  $region43: #{attention_decoder_forward.1} parent=0 // pred_check_branch
    %5330 = sbr.rel (0) target = $region45
  $region44: #{attention_decoder_forward.1} parent=0 // pred_region
    _
  $region45: #{attention_decoder_forward.1} parent=0 // pred_fallthru
    _
  // Predicated region
  $region46: #{attention_decoder_forward.1} parent=0 // pred_check
    _
  $region47: #{attention_decoder_forward.1} parent=0 // pred_check_branch
    %5332 = sbr.rel (0) target = $region49
  $region48: #{attention_decoder_forward.1} parent=0 // pred_region
    _
  $region49: #{attention_decoder_forward.1} parent=0 // pred_fallthru
    _

</llo_original>
